<compile_context>
chip_gen: v7x
topology: tpu7x:2x2x1
jax: 0.10.0
libtpu: 0.0.40
codegen_flags: <defaults>
</compile_context>

<pallas_src>
from functools import partial

import jax
import jax.numpy as jnp
from jax.experimental import pallas as pl
from jax.experimental.pallas import tpu as pltpu


def _round_up(v, m):
    return -(-v // m) * m


def _upconv_ps_kernel(xs_ref, w_ref, b_ref, o_ref, pbuf_ref, *,
                      ks, strd, cin, new_ngf, th, w_in, p):
    """Fused conv + pixel-shuffle for one (batch, row-block) grid step.

    xs_ref:   (strd, Cin, CHL)        bf16  spread/flattened input chunk (with halo)
    w_ref:    (strd*new_ngf, K')      bf16  rows (dy, c); cols (dx, ky, kx, cin)
    b_ref:    (strd, new_ngf, Wout)   f32   bias, lane pattern dx = u % strd
    o_ref:    (new_ngf, TH, strd, Wout)     final (pixel-shuffled) output block
    pbuf_ref: (K', TH*Wout)           bf16  scratch: im2col-with-shuffle patch matrix
    """
    wout = w_in * strd
    m = th * wout
    dt = xs_ref.dtype

    # Width-boundary masks (one per kx), shared across all (dx, ky, cin) taps.
    u = jax.lax.broadcasted_iota(jnp.int32, (1, m), 1) % wout
    masks = []
    for kx in range(ks):
        shift = (kx - p) * strd
        if shift > 0:
            masks.append((u < (wout - shift)).astype(dt))
        elif shift < 0:
            masks.append((u >= (-shift)).astype(dt))
        else:
            masks.append(None)

    # Assemble the (K', M) patch matrix: each tap is ONE static, contiguous
    # lane-slice of the VMEM-resident chunk (zero repeated HBM row loads).
    for d in range(strd):
        for ky in range(ks):
            for kx in range(ks):
                start = ky * wout + kx * strd            # static offset inside chunk
                sl = xs_ref[d, :, start:start + m]       # (Cin, M)
                if masks[kx] is not None:
                    sl = sl * masks[kx]
                r0 = ((d * ks + ky) * ks + kx) * cin
                pbuf_ref[r0:r0 + cin, :] = sl

    # Single MXU contraction for the whole block, f32 accumulation.
    res = jnp.dot(w_ref[...], pbuf_ref[...],
                  preferred_element_type=jnp.float32)    # (strd*new_ngf, M) f32

    bias = b_ref[...]                                    # (strd, new_ngf, Wout) f32
    # Store directly in the final pixel-shuffled layout: row r of conv output
    # becomes output rows r*strd + dy; dx is already interleaved along lanes.
    for r in range(th):
        cb = r * wout
        for dy in range(strd):
            chunk = res[dy * new_ngf:(dy + 1) * new_ngf, cb:cb + wout]
            o_ref[:, r, dy, :] = (chunk + bias[dy]).astype(o_ref.dtype)


def _pick_block_rows(H, wout, n_batch, max_lanes):
    """Row-block TH: divisor of H, big slab (<= max_lanes lanes), bounded unroll,
    and >= 2 total grid steps when possible (feeds both v7x TensorCores)."""
    cands = [d for d in range(1, H + 1)
             if H % d == 0 and d * wout <= max_lanes and d <= 64]
    if not cands:
        cands = [1]
    th = max(cands)
    if n_batch * (H // th) < 2:
        two_step = [d for d in cands if H // d >= 2]
        if two_step:
            th = max(two_step)
    return th


def _derive_vmem_limit(strd, cin, new_ngf, chl, kp, th, wout, cdtype):
    """vmem_limit_bytes from actual tile-padded, double-buffered block footprints."""
    e = jnp.dtype(cdtype).itemsize
    sub = 8 * (4 // e)                      # sublane tile: 8 (f32) / 16 (bf16)
    tm = th * wout

    def tile2(s, l, esz, sb):
        return _round_up(max(s, 1), sb) * _round_up(max(l, 1), 128) * esz

    need = 0
    need += 2 * strd * tile2(cin, chl, e, sub)            # input chunk (double buffered)
    need += 2 * tile2(strd * new_ngf, kp, e, sub)         # weights
    need += 2 * strd * tile2(new_ngf, wout, 4, 8)         # bias
    need += 2 * new_ngf * th * tile2(strd, wout, 4, 8)    # output block
    need += tile2(kp, tm, e, sub)                         # patch scratch
    need += tile2(strd * new_ngf, tm, 4, 8)               # matmul result temp
    need = int(need * 1.5) + (4 << 20)                    # headroom
    try:
        cap = int(pltpu.get_tpu_info().vmem_capacity_bytes)
    except Exception:
        cap = 64 << 20                                    # v7x-safe fallback
    return int(max(16 << 20, min(need, int(cap * 0.9))))


def upconv_forward(x, weight, bias, *, ks, strd,
                   compute_dtype=jnp.bfloat16, out_dtype=None, max_lanes=8192):
    """UpConv forward.

    x:      (N, Cin, H, W) f32
    weight: (Cout, Cin, ks, ks) PyTorch OIHW, Cout = new_ngf * strd * strd
    bias:   (Cout,)
    returns (N, new_ngf, H*strd, W*strd)
    """
    N, Cin, H, W = x.shape
    Cout = weight.shape[0]
    assert Cout % (strd * strd) == 0
    new_ngf = Cout // (strd * strd)
    assert ks % 2 == 1, "fused path supports odd ks only"
    # TODO(synk): even ks (PyTorch pad=(ks-1)//2 shrinks spatial dims) not implemented.
    p = (ks - 1) // 2
    Hp = H + 2 * p
    Wout = W * strd
    Kp = strd * ks * ks * Cin
    out_dtype = x.dtype if out_dtype is None else out_dtype
    ebytes = jnp.dtype(compute_dtype).itemsize

    # Bound the patch-scratch size as well as the slab width.
    max_lanes = max(128, min(max_lanes, (4 << 20) // max(1, Kp * ebytes)))
    th = _pick_block_rows(H, Wout, N, max_lanes)
    nb = H // th
    tm = th * Wout
    halo = (ks - 1) * (Wout + strd)
    chl = _round_up(tm + halo, 128)
    pad0 = p * strd
    l_need = (nb - 1) * tm + chl

    # ---- input prep (input-sized layout glue in XLA) ----
    # Pad rows, cast, and "spread" columns by strd with the dx slot baked in:
    # xs[n, d, c, h*Wout + w*strd + d] = xpad[n, c, h, w], zeros elsewhere.
    xp = jnp.pad(x, ((0, 0), (0, 0), (p, p), (0, 0))).astype(compute_dtype)     # (N,Cin,Hp,W)
    eye = jnp.eye(strd, dtype=compute_dtype)
    xs = xp[:, None, :, :, :, None] * eye[None, :, None, None, None, :]         # (N,strd,Cin,Hp,W,strd)
    xs = xs.reshape(N, strd, Cin, Hp * Wout)
    xs = jnp.pad(xs, ((0, 0), (0, 0), (0, 0), (pad0, l_need - pad0 - Hp * Wout)))
    # Chunk per row block with the halo duplicated once (VMEM scales with TH).
    idx = jnp.arange(nb)[:, None] * tm + jnp.arange(chl)[None, :]
    xs = jnp.take(xs, idx, axis=3)                                              # (N,strd,Cin,nb,CHL)
    xs = jnp.moveaxis(xs, 3, 1)                                                 # (N,nb,strd,Cin,CHL)

    # ---- weights: (Cout,Cin,ks,ks) -> (strd*new_ngf, K'); rows (dy,c), cols (dx,ky,kx,cin)
    w6 = weight.reshape(new_ngf, strd, strd, Cin, ks, ks)   # [c, dy, dx, cin, ky, kx]
    w6 = jnp.transpose(w6, (1, 0, 2, 4, 5, 3))               # [dy, c, dx, ky, kx, cin]
    wmat = w6.reshape(strd * new_ngf, Kp).astype(compute_dtype)

    # ---- bias: (Cout,) -> (strd, new_ngf, Wout) f32 with lane pattern dx = u % strd
    b3 = jnp.transpose(bias.reshape(new_ngf, strd, strd), (1, 0, 2)).astype(jnp.float32)
    bfull = jnp.tile(b3, (1, 1, W))                          # (strd, new_ngf, Wout)

    kernel = partial(_upconv_ps_kernel, ks=ks, strd=strd, cin=Cin,
                     new_ngf=new_ngf, th=th, w_in=W, p=p)
    vmem_limit = _derive_vmem_limit(strd, Cin, new_ngf, chl, Kp, th, Wout, compute_dtype)

    y = pl.pallas_call(
        kernel,
        out_shape=jax.ShapeDtypeStruct((N, new_ngf, H, strd, Wout), out_dtype),
        grid_spec=pltpu.PrefetchScalarGridSpec(
            num_scalar_prefetch=0,
            grid=(N, nb),
            in_specs=[
                pl.BlockSpec((None, None, strd, Cin, chl),
                             lambda n, i: (n, i, 0, 0, 0)),
                pl.BlockSpec((strd * new_ngf, Kp), lambda n, i: (0, 0)),
                pl.BlockSpec((strd, new_ngf, Wout), lambda n, i: (0, 0, 0)),
            ],
            out_specs=pl.BlockSpec((None, new_ngf, th, strd, Wout),
                                   lambda n, i: (n, 0, i, 0, 0)),
            scratch_shapes=[pltpu.VMEM((Kp, tm), compute_dtype)],
        ),
        compiler_params=pltpu.CompilerParams(
            dimension_semantics=("parallel", "parallel"),
            vmem_limit_bytes=vmem_limit,
        ),
    )(xs, wmat, bfull)                                       # (N, new_ngf, H, strd, Wout)

    # Free (contiguous) reshape to the final pixel-shuffled layout.
    return y.reshape(N, new_ngf, H * strd, W * strd)


def _reference_upconv(x, weight, bias, *, ks, strd):
    """Pure-JAX reference (lax conv + pixel shuffle)."""
    N, Cin, H, W = x.shape
    Cout = weight.shape[0]
    new_ngf = Cout // (strd * strd)
    p = (ks - 1) // 2
    y = jax.lax.conv_general_dilated(
        x, weight, window_strides=(1, 1), padding=[(p, p), (p, p)],
        dimension_numbers=("NCHW", "OIHW", "NCHW"),
        precision=jax.lax.Precision.HIGHEST)
    y = y + bias.reshape(1, Cout, 1, 1)
    if strd != 1:
        y = y.reshape(N, new_ngf, strd, strd, H, W)
        y = jnp.transpose(y, (0, 1, 4, 2, 5, 3))
        y = y.reshape(N, new_ngf, H * strd, W * strd)
    return y


if __name__ == "__main__":
    # UpConv(ks=3, ngf=4, new_ngf=4, strd=2, bias=True)
    ks, ngf, new_ngf, strd = 3, 4, 4, 2
    cout = new_ngf * strd * strd
    N, H, W = 2, 16, 16

    key = jax.random.PRNGKey(0)
    kx_, kw_, kb_ = jax.random.split(key, 3)
    x = jax.random.normal(kx_, (N, ngf, H, W), dtype=jnp.float32)
    weight = 0.1 * jax.random.normal(kw_, (cout, ngf, ks, ks), dtype=jnp.float32)
    bias = 0.1 * jax.random.normal(kb_, (cout,), dtype=jnp.float32)

    fwd = jax.jit(partial(upconv_forward, ks=ks, strd=strd))
    out = jax.block_until_ready(fwd(x, weight, bias))
    assert out.shape == (N, new_ngf, H * strd, W * strd), out.shape

    # Tight check: reference fed the same bf16-rounded inputs (f32 accumulation).
    ref_q = _reference_upconv(
        x.astype(jnp.bfloat16).astype(jnp.float32),
        weight.astype(jnp.bfloat16).astype(jnp.float32),
        bias, ks=ks, strd=strd)
    assert jnp.allclose(out, ref_q, atol=2e-3, rtol=2e-3), "mismatch vs bf16-input reference"

    # Loose check: exact f32 PyTorch-equivalent module (documents bf16 input quantization).
    ref = _reference_upconv(x, weight, bias, ks=ks, strd=strd)
    assert jnp.allclose(out, ref, atol=3e-2, rtol=3e-2), "mismatch vs f32 reference"

    print("KERNEL_OK")
</pallas_src>

<mosaic_0001>
module attributes {stable_mosaic.version = 11 : i64} {
  func.func @_upconv_ps_kernel(%arg0: i32, %arg1: i32, %arg2: memref<1x1x2x4x640xbf16, #tpu.memory_space<vmem>>, %arg3: memref<8x72xbf16, #tpu.memory_space<vmem>>, %arg4: memref<2x4x32xf32, #tpu.memory_space<vmem>>, %arg5: memref<1x4x16x2x32xf32, #tpu.memory_space<vmem>>, %arg6: memref<72x512xbf16, #tpu.memory_space<vmem>>) attributes {dimension_semantics = [#tpu.dimension_semantics<parallel>, #tpu.dimension_semantics<parallel>], iteration_bounds = array<i64: 2, 1>, scalar_prefetch = 0 : i64, scratch_operands = 1 : i64, tpu.core_type = #tpu.core_type<tc>, window_params = [{transform_indices = @transform_0, window_bounds = array<i64: 1, 1, 2, 4, 640>}, {pipeline_mode = #tpu.pipeline_mode<synchronous>, transform_indices = @transform_1, window_bounds = array<i64: 8, 72>}, {pipeline_mode = #tpu.pipeline_mode<synchronous>, transform_indices = @transform_2, window_bounds = array<i64: 2, 4, 32>}, {transform_indices = @transform_3, window_bounds = array<i64: 1, 4, 16, 2, 32>}]} {
    %0 = tpu.iota {dimensions = array<i32: 1>} : vector<1x512xi32>
    %c32_i32 = arith.constant 32 : i32
    %c0_i32 = arith.constant 0 : i32
    %1 = arith.cmpi eq, %c32_i32, %c0_i32 : i32
    %c1_i32 = arith.constant 1 : i32
    %2 = arith.select %1, %c1_i32, %c32_i32 : i32
    %3 = vector.broadcast %2 : i32 to vector<1x512xi32>
    %4 = arith.remsi %0, %3 : vector<1x512xi32>
    %c0_i32_0 = arith.constant 0 : i32
    %5 = vector.broadcast %c0_i32_0 : i32 to vector<1x512xi32>
    %6 = arith.cmpi ne, %4, %5 : vector<1x512xi32>
    %c0_i32_1 = arith.constant 0 : i32
    %7 = vector.broadcast %c0_i32_1 : i32 to vector<1x512xi32>
    %8 = arith.cmpi slt, %4, %7 : vector<1x512xi32>
    %c0_i32_2 = arith.constant 0 : i32
    %9 = arith.cmpi slt, %2, %c0_i32_2 : i32
    %10 = vector.broadcast %9 : i1 to vector<1x512xi1>
    %11 = vector.broadcast %10 : vector<1x512xi1> to vector<1x512xi1>
    %12 = arith.xori %8, %11 : vector<1x512xi1>
    %13 = arith.andi %12, %6 : vector<1x512xi1>
    %14 = vector.broadcast %2 : i32 to vector<1x512xi32>
    %15 = arith.addi %4, %14 : vector<1x512xi32>
    %16 = arith.select %13, %15, %4 : vector<1x512xi1>, vector<1x512xi32>
    %c2_i32 = arith.constant 2 : i32
    %17 = vector.broadcast %c2_i32 : i32 to vector<1x512xi32>
    %18 = arith.cmpi sge, %16, %17 : vector<1x512xi32>
    %19 = arith.extui %18 : vector<1x512xi1> to vector<1x512xi32>
    %20 = arith.sitofp %19 : vector<1x512xi32> to vector<1x512xf32>
    %21 = arith.truncf %20 : vector<1x512xf32> to vector<1x512xbf16>
    %c30_i32 = arith.constant 30 : i32
    %22 = vector.broadcast %c30_i32 : i32 to vector<1x512xi32>
    %23 = arith.cmpi slt, %16, %22 : vector<1x512xi32>
    %24 = arith.extui %23 : vector<1x512xi1> to vector<1x512xi32>
    %25 = arith.sitofp %24 : vector<1x512xi32> to vector<1x512xf32>
    %26 = arith.truncf %25 : vector<1x512xf32> to vector<1x512xbf16>
    %c0 = arith.constant 0 : index
    %c0_3 = arith.constant 0 : index
    %c0_4 = arith.constant 0 : index
    %c0_5 = arith.constant 0 : index
    %c0_6 = arith.constant 0 : index
    %27 = vector.load %arg2[%c0, %c0_3, %c0_4, %c0_5, %c0_6] : memref<1x1x2x4x640xbf16, #tpu.memory_space<vmem>>, vector<1x1x1x4x512xbf16>
    %28 = vector.shape_cast %27 : vector<1x1x1x4x512xbf16> to vector<4x512xbf16>
    %29 = vector.broadcast %21 : vector<1x512xbf16> to vector<4x512xbf16>
    %30 = arith.mulf %28, %29 : vector<4x512xbf16>
    %c0_7 = arith.constant 0 : index
    %c0_8 = arith.constant 0 : index
    %31 = vector.load %arg6[%c0_7, %c0_8] : memref<72x512xbf16, #tpu.memory_space<vmem>>, vector<4x512xbf16>
    tpu.vector_store %arg6[%c0_7, %c0_8], %30 {strides = array<i32>} : memref<72x512xbf16, #tpu.memory_space<vmem>>, vector<4x512xbf16>,
    %c0_9 = arith.constant 0 : index
    %c0_10 = arith.constant 0 : index
    %c0_11 = arith.constant 0 : index
    %c0_12 = arith.constant 0 : index
    %c2 = arith.constant 2 : index
    %32 = vector.load %arg2[%c0_9, %c0_10, %c0_11, %c0_12, %c2] : memref<1x1x2x4x640xbf16, #tpu.memory_space<vmem>>, vector<1x1x1x4x512xbf16>
    %33 = vector.shape_cast %32 : vector<1x1x1x4x512xbf16> to vector<4x512xbf16>
    %c4 = arith.constant 4 : index
    %c0_13 = arith.constant 0 : index
    %34 = vector.load %arg6[%c4, %c0_13] : memref<72x512xbf16, #tpu.memory_space<vmem>>, vector<4x512xbf16>
    tpu.vector_store %arg6[%c4, %c0_13], %33 {strides = array<i32>} : memref<72x512xbf16, #tpu.memory_space<vmem>>, vector<4x512xbf16>,
    %c0_14 = arith.constant 0 : index
    %c0_15 = arith.constant 0 : index
    %c0_16 = arith.constant 0 : index
    %c0_17 = arith.constant 0 : index
    %c4_18 = arith.constant 4 : index
    %35 = vector.load %arg2[%c0_14, %c0_15, %c0_16, %c0_17, %c4_18] : memref<1x1x2x4x640xbf16, #tpu.memory_space<vmem>>, vector<1x1x1x4x512xbf16>
    %36 = vector.shape_cast %35 : vector<1x1x1x4x512xbf16> to vector<4x512xbf16>
    %37 = vector.broadcast %26 : vector<1x512xbf16> to vector<4x512xbf16>
    %38 = arith.mulf %36, %37 : vector<4x512xbf16>
    %c8 = arith.constant 8 : index
    %c0_19 = arith.constant 0 : index
    %39 = vector.load %arg6[%c8, %c0_19] : memref<72x512xbf16, #tpu.memory_space<vmem>>, vector<4x512xbf16>
    tpu.vector_store %arg6[%c8, %c0_19], %38 {strides = array<i32>} : memref<72x512xbf16, #tpu.memory_space<vmem>>, vector<4x512xbf16>,
    %c0_20 = arith.constant 0 : index
    %c0_21 = arith.constant 0 : index
    %c0_22 = arith.constant 0 : index
    %c0_23 = arith.constant 0 : index
    %c32 = arith.constant 32 : index
    %40 = vector.load %arg2[%c0_20, %c0_21, %c0_22, %c0_23, %c32] : memref<1x1x2x4x640xbf16, #tpu.memory_space<vmem>>, vector<1x1x1x4x512xbf16>
    %41 = vector.shape_cast %40 : vector<1x1x1x4x512xbf16> to vector<4x512xbf16>
    %42 = vector.broadcast %21 : vector<1x512xbf16> to vector<4x512xbf16>
    %43 = arith.mulf %41, %42 : vector<4x512xbf16>
    %c12 = arith.constant 12 : index
    %c0_24 = arith.constant 0 : index
    %44 = vector.load %arg6[%c12, %c0_24] : memref<72x512xbf16, #tpu.memory_space<vmem>>, vector<4x512xbf16>
    tpu.vector_store %arg6[%c12, %c0_24], %43 {strides = array<i32>} : memref<72x512xbf16, #tpu.memory_space<vmem>>, vector<4x512xbf16>,
    %c0_25 = arith.constant 0 : index
    %c0_26 = arith.constant 0 : index
    %c0_27 = arith.constant 0 : index
    %c0_28 = arith.constant 0 : index
    %c34 = arith.constant 34 : index
    %45 = vector.load %arg2[%c0_25, %c0_26, %c0_27, %c0_28, %c34] : memref<1x1x2x4x640xbf16, #tpu.memory_space<vmem>>, vector<1x1x1x4x512xbf16>
    %46 = vector.shape_cast %45 : vector<1x1x1x4x512xbf16> to vector<4x512xbf16>
    %c16 = arith.constant 16 : index
    %c0_29 = arith.constant 0 : index
    %47 = vector.load %arg6[%c16, %c0_29] : memref<72x512xbf16, #tpu.memory_space<vmem>>, vector<4x512xbf16>
    tpu.vector_store %arg6[%c16, %c0_29], %46 {strides = array<i32>} : memref<72x512xbf16, #tpu.memory_space<vmem>>, vector<4x512xbf16>,
    %c0_30 = arith.constant 0 : index
    %c0_31 = arith.constant 0 : index
    %c0_32 = arith.constant 0 : index
    %c0_33 = arith.constant 0 : index
    %c36 = arith.constant 36 : index
    %48 = vector.load %arg2[%c0_30, %c0_31, %c0_32, %c0_33, %c36] : memref<1x1x2x4x640xbf16, #tpu.memory_space<vmem>>, vector<1x1x1x4x512xbf16>
    %49 = vector.shape_cast %48 : vector<1x1x1x4x512xbf16> to vector<4x512xbf16>
    %50 = vector.broadcast %26 : vector<1x512xbf16> to vector<4x512xbf16>
    %51 = arith.mulf %49, %50 : vector<4x512xbf16>
    %c20 = arith.constant 20 : index
    %c0_34 = arith.constant 0 : index
    %52 = vector.load %arg6[%c20, %c0_34] : memref<72x512xbf16, #tpu.memory_space<vmem>>, vector<4x512xbf16>
    tpu.vector_store %arg6[%c20, %c0_34], %51 {strides = array<i32>} : memref<72x512xbf16, #tpu.memory_space<vmem>>, vector<4x512xbf16>,
    %c0_35 = arith.constant 0 : index
    %c0_36 = arith.constant 0 : index
    %c0_37 = arith.constant 0 : index
    %c0_38 = arith.constant 0 : index
    %c64 = arith.constant 64 : index
    %53 = vector.load %arg2[%c0_35, %c0_36, %c0_37, %c0_38, %c64] : memref<1x1x2x4x640xbf16, #tpu.memory_space<vmem>>, vector<1x1x1x4x512xbf16>
    %54 = vector.shape_cast %53 : vector<1x1x1x4x512xbf16> to vector<4x512xbf16>
    %55 = vector.broadcast %21 : vector<1x512xbf16> to vector<4x512xbf16>
    %56 = arith.mulf %54, %55 : vector<4x512xbf16>
    %c24 = arith.constant 24 : index
    %c0_39 = arith.constant 0 : index
    %57 = vector.load %arg6[%c24, %c0_39] : memref<72x512xbf16, #tpu.memory_space<vmem>>, vector<4x512xbf16>
    tpu.vector_store %arg6[%c24, %c0_39], %56 {strides = array<i32>} : memref<72x512xbf16, #tpu.memory_space<vmem>>, vector<4x512xbf16>,
    %c0_40 = arith.constant 0 : index
    %c0_41 = arith.constant 0 : index
    %c0_42 = arith.constant 0 : index
    %c0_43 = arith.constant 0 : index
    %c66 = arith.constant 66 : index
    %58 = vector.load %arg2[%c0_40, %c0_41, %c0_42, %c0_43, %c66] : memref<1x1x2x4x640xbf16, #tpu.memory_space<vmem>>, vector<1x1x1x4x512xbf16>
    %59 = vector.shape_cast %58 : vector<1x1x1x4x512xbf16> to vector<4x512xbf16>
    %c28 = arith.constant 28 : index
    %c0_44 = arith.constant 0 : index
    %60 = vector.load %arg6[%c28, %c0_44] : memref<72x512xbf16, #tpu.memory_space<vmem>>, vector<4x512xbf16>
    tpu.vector_store %arg6[%c28, %c0_44], %59 {strides = array<i32>} : memref<72x512xbf16, #tpu.memory_space<vmem>>, vector<4x512xbf16>,
    %c0_45 = arith.constant 0 : index
    %c0_46 = arith.constant 0 : index
    %c0_47 = arith.constant 0 : index
    %c0_48 = arith.constant 0 : index
    %c68 = arith.constant 68 : index
    %61 = vector.load %arg2[%c0_45, %c0_46, %c0_47, %c0_48, %c68] : memref<1x1x2x4x640xbf16, #tpu.memory_space<vmem>>, vector<1x1x1x4x512xbf16>
    %62 = vector.shape_cast %61 : vector<1x1x1x4x512xbf16> to vector<4x512xbf16>
    %63 = vector.broadcast %26 : vector<1x512xbf16> to vector<4x512xbf16>
    %64 = arith.mulf %62, %63 : vector<4x512xbf16>
    %c32_49 = arith.constant 32 : index
    %c0_50 = arith.constant 0 : index
    %65 = vector.load %arg6[%c32_49, %c0_50] : memref<72x512xbf16, #tpu.memory_space<vmem>>, vector<4x512xbf16>
    tpu.vector_store %arg6[%c32_49, %c0_50], %64 {strides = array<i32>} : memref<72x512xbf16, #tpu.memory_space<vmem>>, vector<4x512xbf16>,
    %c0_51 = arith.constant 0 : index
    %c0_52 = arith.constant 0 : index
    %c1 = arith.constant 1 : index
    %c0_53 = arith.constant 0 : index
    %c0_54 = arith.constant 0 : index
    %66 = vector.load %arg2[%c0_51, %c0_52, %c1, %c0_53, %c0_54] : memref<1x1x2x4x640xbf16, #tpu.memory_space<vmem>>, vector<1x1x1x4x512xbf16>
    %67 = vector.shape_cast %66 : vector<1x1x1x4x512xbf16> to vector<4x512xbf16>
    %68 = vector.broadcast %21 : vector<1x512xbf16> to vector<4x512xbf16>
    %69 = arith.mulf %67, %68 : vector<4x512xbf16>
    %c36_55 = arith.constant 36 : index
    %c0_56 = arith.constant 0 : index
    %70 = vector.load %arg6[%c36_55, %c0_56] : memref<72x512xbf16, #tpu.memory_space<vmem>>, vector<4x512xbf16>
    tpu.vector_store %arg6[%c36_55, %c0_56], %69 {strides = array<i32>} : memref<72x512xbf16, #tpu.memory_space<vmem>>, vector<4x512xbf16>,
    %c0_57 = arith.constant 0 : index
    %c0_58 = arith.constant 0 : index
    %c1_59 = arith.constant 1 : index
    %c0_60 = arith.constant 0 : index
    %c2_61 = arith.constant 2 : index
    %71 = vector.load %arg2[%c0_57, %c0_58, %c1_59, %c0_60, %c2_61] : memref<1x1x2x4x640xbf16, #tpu.memory_space<vmem>>, vector<1x1x1x4x512xbf16>
    %72 = vector.shape_cast %71 : vector<1x1x1x4x512xbf16> to vector<4x512xbf16>
    %c40 = arith.constant 40 : index
    %c0_62 = arith.constant 0 : index
    %73 = vector.load %arg6[%c40, %c0_62] : memref<72x512xbf16, #tpu.memory_space<vmem>>, vector<4x512xbf16>
    tpu.vector_store %arg6[%c40, %c0_62], %72 {strides = array<i32>} : memref<72x512xbf16, #tpu.memory_space<vmem>>, vector<4x512xbf16>,
    %c0_63 = arith.constant 0 : index
    %c0_64 = arith.constant 0 : index
    %c1_65 = arith.constant 1 : index
    %c0_66 = arith.constant 0 : index
    %c4_67 = arith.constant 4 : index
    %74 = vector.load %arg2[%c0_63, %c0_64, %c1_65, %c0_66, %c4_67] : memref<1x1x2x4x640xbf16, #tpu.memory_space<vmem>>, vector<1x1x1x4x512xbf16>
    %75 = vector.shape_cast %74 : vector<1x1x1x4x512xbf16> to vector<4x512xbf16>
    %76 = vector.broadcast %26 : vector<1x512xbf16> to vector<4x512xbf16>
    %77 = arith.mulf %75, %76 : vector<4x512xbf16>
    %c44 = arith.constant 44 : index
    %c0_68 = arith.constant 0 : index
    %78 = vector.load %arg6[%c44, %c0_68] : memref<72x512xbf16, #tpu.memory_space<vmem>>, vector<4x512xbf16>
    tpu.vector_store %arg6[%c44, %c0_68], %77 {strides = array<i32>} : memref<72x512xbf16, #tpu.memory_space<vmem>>, vector<4x512xbf16>,
    %c0_69 = arith.constant 0 : index
    %c0_70 = arith.constant 0 : index
    %c1_71 = arith.constant 1 : index
    %c0_72 = arith.constant 0 : index
    %c32_73 = arith.constant 32 : index
    %79 = vector.load %arg2[%c0_69, %c0_70, %c1_71, %c0_72, %c32_73] : memref<1x1x2x4x640xbf16, #tpu.memory_space<vmem>>, vector<1x1x1x4x512xbf16>
    %80 = vector.shape_cast %79 : vector<1x1x1x4x512xbf16> to vector<4x512xbf16>
    %81 = vector.broadcast %21 : vector<1x512xbf16> to vector<4x512xbf16>
    %82 = arith.mulf %80, %81 : vector<4x512xbf16>
    %c48 = arith.constant 48 : index
    %c0_74 = arith.constant 0 : index
    %83 = vector.load %arg6[%c48, %c0_74] : memref<72x512xbf16, #tpu.memory_space<vmem>>, vector<4x512xbf16>
    tpu.vector_store %arg6[%c48, %c0_74], %82 {strides = array<i32>} : memref<72x512xbf16, #tpu.memory_space<vmem>>, vector<4x512xbf16>,
    %c0_75 = arith.constant 0 : index
    %c0_76 = arith.constant 0 : index
    %c1_77 = arith.constant 1 : index
    %c0_78 = arith.constant 0 : index
    %c34_79 = arith.constant 34 : index
    %84 = vector.load %arg2[%c0_75, %c0_76, %c1_77, %c0_78, %c34_79] : memref<1x1x2x4x640xbf16, #tpu.memory_space<vmem>>, vector<1x1x1x4x512xbf16>
    %85 = vector.shape_cast %84 : vector<1x1x1x4x512xbf16> to vector<4x512xbf16>
    %c52 = arith.constant 52 : index
    %c0_80 = arith.constant 0 : index
    %86 = vector.load %arg6[%c52, %c0_80] : memref<72x512xbf16, #tpu.memory_space<vmem>>, vector<4x512xbf16>
    tpu.vector_store %arg6[%c52, %c0_80], %85 {strides = array<i32>} : memref<72x512xbf16, #tpu.memory_space<vmem>>, vector<4x512xbf16>,
    %c0_81 = arith.constant 0 : index
    %c0_82 = arith.constant 0 : index
    %c1_83 = arith.constant 1 : index
    %c0_84 = arith.constant 0 : index
    %c36_85 = arith.constant 36 : index
    %87 = vector.load %arg2[%c0_81, %c0_82, %c1_83, %c0_84, %c36_85] : memref<1x1x2x4x640xbf16, #tpu.memory_space<vmem>>, vector<1x1x1x4x512xbf16>
    %88 = vector.shape_cast %87 : vector<1x1x1x4x512xbf16> to vector<4x512xbf16>
    %89 = vector.broadcast %26 : vector<1x512xbf16> to vector<4x512xbf16>
    %90 = arith.mulf %88, %89 : vector<4x512xbf16>
    %c56 = arith.constant 56 : index
    %c0_86 = arith.constant 0 : index
    %91 = vector.load %arg6[%c56, %c0_86] : memref<72x512xbf16, #tpu.memory_space<vmem>>, vector<4x512xbf16>
    tpu.vector_store %arg6[%c56, %c0_86], %90 {strides = array<i32>} : memref<72x512xbf16, #tpu.memory_space<vmem>>, vector<4x512xbf16>,
    %c0_87 = arith.constant 0 : index
    %c0_88 = arith.constant 0 : index
    %c1_89 = arith.constant 1 : index
    %c0_90 = arith.constant 0 : index
    %c64_91 = arith.constant 64 : index
    %92 = vector.load %arg2[%c0_87, %c0_88, %c1_89, %c0_90, %c64_91] : memref<1x1x2x4x640xbf16, #tpu.memory_space<vmem>>, vector<1x1x1x4x512xbf16>
    %93 = vector.shape_cast %92 : vector<1x1x1x4x512xbf16> to vector<4x512xbf16>
    %94 = vector.broadcast %21 : vector<1x512xbf16> to vector<4x512xbf16>
    %95 = arith.mulf %93, %94 : vector<4x512xbf16>
    %c60 = arith.constant 60 : index
    %c0_92 = arith.constant 0 : index
    %96 = vector.load %arg6[%c60, %c0_92] : memref<72x512xbf16, #tpu.memory_space<vmem>>, vector<4x512xbf16>
    tpu.vector_store %arg6[%c60, %c0_92], %95 {strides = array<i32>} : memref<72x512xbf16, #tpu.memory_space<vmem>>, vector<4x512xbf16>,
    %c0_93 = arith.constant 0 : index
    %c0_94 = arith.constant 0 : index
    %c1_95 = arith.constant 1 : index
    %c0_96 = arith.constant 0 : index
    %c66_97 = arith.constant 66 : index
    %97 = vector.load %arg2[%c0_93, %c0_94, %c1_95, %c0_96, %c66_97] : memref<1x1x2x4x640xbf16, #tpu.memory_space<vmem>>, vector<1x1x1x4x512xbf16>
    %98 = vector.shape_cast %97 : vector<1x1x1x4x512xbf16> to vector<4x512xbf16>
    %c64_98 = arith.constant 64 : index
    %c0_99 = arith.constant 0 : index
    %99 = vector.load %arg6[%c64_98, %c0_99] : memref<72x512xbf16, #tpu.memory_space<vmem>>, vector<4x512xbf16>
    tpu.vector_store %arg6[%c64_98, %c0_99], %98 {strides = array<i32>} : memref<72x512xbf16, #tpu.memory_space<vmem>>, vector<4x512xbf16>,
    %c0_100 = arith.constant 0 : index
    %c0_101 = arith.constant 0 : index
    %c1_102 = arith.constant 1 : index
    %c0_103 = arith.constant 0 : index
    %c68_104 = arith.constant 68 : index
    %100 = vector.load %arg2[%c0_100, %c0_101, %c1_102, %c0_103, %c68_104] : memref<1x1x2x4x640xbf16, #tpu.memory_space<vmem>>, vector<1x1x1x4x512xbf16>
    %101 = vector.shape_cast %100 : vector<1x1x1x4x512xbf16> to vector<4x512xbf16>
    %102 = vector.broadcast %26 : vector<1x512xbf16> to vector<4x512xbf16>
    %103 = arith.mulf %101, %102 : vector<4x512xbf16>
    %c68_105 = arith.constant 68 : index
    %c0_106 = arith.constant 0 : index
    %104 = vector.load %arg6[%c68_105, %c0_106] : memref<72x512xbf16, #tpu.memory_space<vmem>>, vector<4x512xbf16>
    tpu.vector_store %arg6[%c68_105, %c0_106], %103 {strides = array<i32>} : memref<72x512xbf16, #tpu.memory_space<vmem>>, vector<4x512xbf16>,
    %c0_107 = arith.constant 0 : index
    %c0_108 = arith.constant 0 : index
    %105 = vector.load %arg3[%c0_107, %c0_108] : memref<8x72xbf16, #tpu.memory_space<vmem>>, vector<8x72xbf16>
    %c0_109 = arith.constant 0 : index
    %c0_110 = arith.constant 0 : index
    %106 = vector.load %arg6[%c0_109, %c0_110] : memref<72x512xbf16, #tpu.memory_space<vmem>>, vector<72x512xbf16>
    %cst = arith.constant dense<0.000000e+00> : vector<8x512xf32>
    %107 = tpu.matmul %105, %106, %cst {dimension_numbers = #tpu.dot_dimension_numbers<[1], [0], [0], [1], [0, 0, 1, 1], [], []>} : vector<8x72xbf16>, vector<72x512xbf16>, vector<8x512xf32> -> vector<8x512xf32>
    %c0_111 = arith.constant 0 : index
    %c0_112 = arith.constant 0 : index
    %c0_113 = arith.constant 0 : index
    %108 = vector.load %arg4[%c0_111, %c0_112, %c0_113] : memref<2x4x32xf32, #tpu.memory_space<vmem>>, vector<2x4x32xf32>
    %109 = vector.extract_strided_slice %107 {offsets = [0, 0], sizes = [4, 32], strides = [1, 1]} : vector<8x512xf32> to vector<4x32xf32>
    %110 = vector.extract_strided_slice %108 {offsets = [0, 0, 0], sizes = [1, 4, 32], strides = [1, 1, 1]} : vector<2x4x32xf32> to vector<1x4x32xf32>
    %111 = vector.shape_cast %110 : vector<1x4x32xf32> to vector<4x32xf32>
    %112 = arith.addf %109, %111 : vector<4x32xf32>
    %c0_114 = arith.constant 0 : index
    %c0_115 = arith.constant 0 : index
    %c0_116 = arith.constant 0 : index
    %c0_117 = arith.constant 0 : index
    %c0_118 = arith.constant 0 : index
    %113 = vector.load %arg5[%c0_114, %c0_115, %c0_116, %c0_117, %c0_118] : memref<1x4x16x2x32xf32, #tpu.memory_space<vmem>>, vector<1x4x1x1x32xf32>
    %114 = vector.shape_cast %113 : vector<1x4x1x1x32xf32> to vector<4x32xf32>
    %115 = vector.shape_cast %112 : vector<4x32xf32> to vector<1x4x1x1x32xf32>
    tpu.vector_store %arg5[%c0_114, %c0_115, %c0_116, %c0_117, %c0_118], %115 {strides = array<i32>} : memref<1x4x16x2x32xf32, #tpu.memory_space<vmem>>, vector<1x4x1x1x32xf32>,
    %116 = vector.extract_strided_slice %107 {offsets = [4, 0], sizes = [4, 32], strides = [1, 1]} : vector<8x512xf32> to vector<4x32xf32>
    %117 = vector.extract_strided_slice %108 {offsets = [1, 0, 0], sizes = [1, 4, 32], strides = [1, 1, 1]} : vector<2x4x32xf32> to vector<1x4x32xf32>
    %118 = vector.shape_cast %117 : vector<1x4x32xf32> to vector<4x32xf32>
    %119 = arith.addf %116, %118 : vector<4x32xf32>
    %c0_119 = arith.constant 0 : index
    %c0_120 = arith.constant 0 : index
    %c0_121 = arith.constant 0 : index
    %c1_122 = arith.constant 1 : index
    %c0_123 = arith.constant 0 : index
    %120 = vector.load %arg5[%c0_119, %c0_120, %c0_121, %c1_122, %c0_123] : memref<1x4x16x2x32xf32, #tpu.memory_space<vmem>>, vector<1x4x1x1x32xf32>
    %121 = vector.shape_cast %120 : vector<1x4x1x1x32xf32> to vector<4x32xf32>
    %122 = vector.shape_cast %119 : vector<4x32xf32> to vector<1x4x1x1x32xf32>
    tpu.vector_store %arg5[%c0_119, %c0_120, %c0_121, %c1_122, %c0_123], %122 {strides = array<i32>} : memref<1x4x16x2x32xf32, #tpu.memory_space<vmem>>, vector<1x4x1x1x32xf32>,
    %123 = vector.extract_strided_slice %107 {offsets = [0, 32], sizes = [4, 32], strides = [1, 1]} : vector<8x512xf32> to vector<4x32xf32>
    %124 = vector.extract_strided_slice %108 {offsets = [0, 0, 0], sizes = [1, 4, 32], strides = [1, 1, 1]} : vector<2x4x32xf32> to vector<1x4x32xf32>
    %125 = vector.shape_cast %124 : vector<1x4x32xf32> to vector<4x32xf32>
    %126 = arith.addf %123, %125 : vector<4x32xf32>
    %c0_124 = arith.constant 0 : index
    %c0_125 = arith.constant 0 : index
    %c1_126 = arith.constant 1 : index
    %c0_127 = arith.constant 0 : index
    %c0_128 = arith.constant 0 : index
    %127 = vector.load %arg5[%c0_124, %c0_125, %c1_126, %c0_127, %c0_128] : memref<1x4x16x2x32xf32, #tpu.memory_space<vmem>>, vector<1x4x1x1x32xf32>
    %128 = vector.shape_cast %127 : vector<1x4x1x1x32xf32> to vector<4x32xf32>
    %129 = vector.shape_cast %126 : vector<4x32xf32> to vector<1x4x1x1x32xf32>
    tpu.vector_store %arg5[%c0_124, %c0_125, %c1_126, %c0_127, %c0_128], %129 {strides = array<i32>} : memref<1x4x16x2x32xf32, #tpu.memory_space<vmem>>, vector<1x4x1x1x32xf32>,
    %130 = vector.extract_strided_slice %107 {offsets = [4, 32], sizes = [4, 32], strides = [1, 1]} : vector<8x512xf32> to vector<4x32xf32>
    %131 = vector.extract_strided_slice %108 {offsets = [1, 0, 0], sizes = [1, 4, 32], strides = [1, 1, 1]} : vector<2x4x32xf32> to vector<1x4x32xf32>
    %132 = vector.shape_cast %131 : vector<1x4x32xf32> to vector<4x32xf32>
    %133 = arith.addf %130, %132 : vector<4x32xf32>
    %c0_129 = arith.constant 0 : index
    %c0_130 = arith.constant 0 : index
    %c1_131 = arith.constant 1 : index
    %c1_132 = arith.constant 1 : index
    %c0_133 = arith.constant 0 : index
    %134 = vector.load %arg5[%c0_129, %c0_130, %c1_131, %c1_132, %c0_133] : memref<1x4x16x2x32xf32, #tpu.memory_space<vmem>>, vector<1x4x1x1x32xf32>
    %135 = vector.shape_cast %134 : vector<1x4x1x1x32xf32> to vector<4x32xf32>
    %136 = vector.shape_cast %133 : vector<4x32xf32> to vector<1x4x1x1x32xf32>
    tpu.vector_store %arg5[%c0_129, %c0_130, %c1_131, %c1_132, %c0_133], %136 {strides = array<i32>} : memref<1x4x16x2x32xf32, #tpu.memory_space<vmem>>, vector<1x4x1x1x32xf32>,
    %137 = vector.extract_strided_slice %107 {offsets = [0, 64], sizes = [4, 32], strides = [1, 1]} : vector<8x512xf32> to vector<4x32xf32>
    %138 = vector.extract_strided_slice %108 {offsets = [0, 0, 0], sizes = [1, 4, 32], strides = [1, 1, 1]} : vector<2x4x32xf32> to vector<1x4x32xf32>
    %139 = vector.shape_cast %138 : vector<1x4x32xf32> to vector<4x32xf32>
    %140 = arith.addf %137, %139 : vector<4x32xf32>
    %c0_134 = arith.constant 0 : index
    %c0_135 = arith.constant 0 : index
    %c2_136 = arith.constant 2 : index
    %c0_137 = arith.constant 0 : index
    %c0_138 = arith.constant 0 : index
    %141 = vector.load %arg5[%c0_134, %c0_135, %c2_136, %c0_137, %c0_138] : memref<1x4x16x2x32xf32, #tpu.memory_space<vmem>>, vector<1x4x1x1x32xf32>
    %142 = vector.shape_cast %141 : vector<1x4x1x1x32xf32> to vector<4x32xf32>
    %143 = vector.shape_cast %140 : vector<4x32xf32> to vector<1x4x1x1x32xf32>
    tpu.vector_store %arg5[%c0_134, %c0_135, %c2_136, %c0_137, %c0_138], %143 {strides = array<i32>} : memref<1x4x16x2x32xf32, #tpu.memory_space<vmem>>, vector<1x4x1x1x32xf32>,
    %144 = vector.extract_strided_slice %107 {offsets = [4, 64], sizes = [4, 32], strides = [1, 1]} : vector<8x512xf32> to vector<4x32xf32>
    %145 = vector.extract_strided_slice %108 {offsets = [1, 0, 0], sizes = [1, 4, 32], strides = [1, 1, 1]} : vector<2x4x32xf32> to vector<1x4x32xf32>
    %146 = vector.shape_cast %145 : vector<1x4x32xf32> to vector<4x32xf32>
    %147 = arith.addf %144, %146 : vector<4x32xf32>
    %c0_139 = arith.constant 0 : index
    %c0_140 = arith.constant 0 : index
    %c2_141 = arith.constant 2 : index
    %c1_142 = arith.constant 1 : index
    %c0_143 = arith.constant 0 : index
    %148 = vector.load %arg5[%c0_139, %c0_140, %c2_141, %c1_142, %c0_143] : memref<1x4x16x2x32xf32, #tpu.memory_space<vmem>>, vector<1x4x1x1x32xf32>
    %149 = vector.shape_cast %148 : vector<1x4x1x1x32xf32> to vector<4x32xf32>
    %150 = vector.shape_cast %147 : vector<4x32xf32> to vector<1x4x1x1x32xf32>
    tpu.vector_store %arg5[%c0_139, %c0_140, %c2_141, %c1_142, %c0_143], %150 {strides = array<i32>} : memref<1x4x16x2x32xf32, #tpu.memory_space<vmem>>, vector<1x4x1x1x32xf32>,
    %151 = vector.extract_strided_slice %107 {offsets = [0, 96], sizes = [4, 32], strides = [1, 1]} : vector<8x512xf32> to vector<4x32xf32>
    %152 = vector.extract_strided_slice %108 {offsets = [0, 0, 0], sizes = [1, 4, 32], strides = [1, 1, 1]} : vector<2x4x32xf32> to vector<1x4x32xf32>
    %153 = vector.shape_cast %152 : vector<1x4x32xf32> to vector<4x32xf32>
    %154 = arith.addf %151, %153 : vector<4x32xf32>
    %c0_144 = arith.constant 0 : index
    %c0_145 = arith.constant 0 : index
    %c3 = arith.constant 3 : index
    %c0_146 = arith.constant 0 : index
    %c0_147 = arith.constant 0 : index
    %155 = vector.load %arg5[%c0_144, %c0_145, %c3, %c0_146, %c0_147] : memref<1x4x16x2x32xf32, #tpu.memory_space<vmem>>, vector<1x4x1x1x32xf32>
    %156 = vector.shape_cast %155 : vector<1x4x1x1x32xf32> to vector<4x32xf32>
    %157 = vector.shape_cast %154 : vector<4x32xf32> to vector<1x4x1x1x32xf32>
    tpu.vector_store %arg5[%c0_144, %c0_145, %c3, %c0_146, %c0_147], %157 {strides = array<i32>} : memref<1x4x16x2x32xf32, #tpu.memory_space<vmem>>, vector<1x4x1x1x32xf32>,
    %158 = vector.extract_strided_slice %107 {offsets = [4, 96], sizes = [4, 32], strides = [1, 1]} : vector<8x512xf32> to vector<4x32xf32>
    %159 = vector.extract_strided_slice %108 {offsets = [1, 0, 0], sizes = [1, 4, 32], strides = [1, 1, 1]} : vector<2x4x32xf32> to vector<1x4x32xf32>
    %160 = vector.shape_cast %159 : vector<1x4x32xf32> to vector<4x32xf32>
    %161 = arith.addf %158, %160 : vector<4x32xf32>
    %c0_148 = arith.constant 0 : index
    %c0_149 = arith.constant 0 : index
    %c3_150 = arith.constant 3 : index
    %c1_151 = arith.constant 1 : index
    %c0_152 = arith.constant 0 : index
    %162 = vector.load %arg5[%c0_148, %c0_149, %c3_150, %c1_151, %c0_152] : memref<1x4x16x2x32xf32, #tpu.memory_space<vmem>>, vector<1x4x1x1x32xf32>
    %163 = vector.shape_cast %162 : vector<1x4x1x1x32xf32> to vector<4x32xf32>
    %164 = vector.shape_cast %161 : vector<4x32xf32> to vector<1x4x1x1x32xf32>
    tpu.vector_store %arg5[%c0_148, %c0_149, %c3_150, %c1_151, %c0_152], %164 {strides = array<i32>} : memref<1x4x16x2x32xf32, #tpu.memory_space<vmem>>, vector<1x4x1x1x32xf32>,
    %165 = vector.extract_strided_slice %107 {offsets = [0, 128], sizes = [4, 32], strides = [1, 1]} : vector<8x512xf32> to vector<4x32xf32>
    %166 = vector.extract_strided_slice %108 {offsets = [0, 0, 0], sizes = [1, 4, 32], strides = [1, 1, 1]} : vector<2x4x32xf32> to vector<1x4x32xf32>
    %167 = vector.shape_cast %166 : vector<1x4x32xf32> to vector<4x32xf32>
    %168 = arith.addf %165, %167 : vector<4x32xf32>
    %c0_153 = arith.constant 0 : index
    %c0_154 = arith.constant 0 : index
    %c4_155 = arith.constant 4 : index
    %c0_156 = arith.constant 0 : index
    %c0_157 = arith.constant 0 : index
    %169 = vector.load %arg5[%c0_153, %c0_154, %c4_155, %c0_156, %c0_157] : memref<1x4x16x2x32xf32, #tpu.memory_space<vmem>>, vector<1x4x1x1x32xf32>
    %170 = vector.shape_cast %169 : vector<1x4x1x1x32xf32> to vector<4x32xf32>
    %171 = vector.shape_cast %168 : vector<4x32xf32> to vector<1x4x1x1x32xf32>
    tpu.vector_store %arg5[%c0_153, %c0_154, %c4_155, %c0_156, %c0_157], %171 {strides = array<i32>} : memref<1x4x16x2x32xf32, #tpu.memory_space<vmem>>, vector<1x4x1x1x32xf32>,
    %172 = vector.extract_strided_slice %107 {offsets = [4, 128], sizes = [4, 32], strides = [1, 1]} : vector<8x512xf32> to vector<4x32xf32>
    %173 = vector.extract_strided_slice %108 {offsets = [1, 0, 0], sizes = [1, 4, 32], strides = [1, 1, 1]} : vector<2x4x32xf32> to vector<1x4x32xf32>
    %174 = vector.shape_cast %173 : vector<1x4x32xf32> to vector<4x32xf32>
    %175 = arith.addf %172, %174 : vector<4x32xf32>
    %c0_158 = arith.constant 0 : index
    %c0_159 = arith.constant 0 : index
    %c4_160 = arith.constant 4 : index
    %c1_161 = arith.constant 1 : index
    %c0_162 = arith.constant 0 : index
    %176 = vector.load %arg5[%c0_158, %c0_159, %c4_160, %c1_161, %c0_162] : memref<1x4x16x2x32xf32, #tpu.memory_space<vmem>>, vector<1x4x1x1x32xf32>
    %177 = vector.shape_cast %176 : vector<1x4x1x1x32xf32> to vector<4x32xf32>
    %178 = vector.shape_cast %175 : vector<4x32xf32> to vector<1x4x1x1x32xf32>
    tpu.vector_store %arg5[%c0_158, %c0_159, %c4_160, %c1_161, %c0_162], %178 {strides = array<i32>} : memref<1x4x16x2x32xf32, #tpu.memory_space<vmem>>, vector<1x4x1x1x32xf32>,
    %179 = vector.extract_strided_slice %107 {offsets = [0, 160], sizes = [4, 32], strides = [1, 1]} : vector<8x512xf32> to vector<4x32xf32>
    %180 = vector.extract_strided_slice %108 {offsets = [0, 0, 0], sizes = [1, 4, 32], strides = [1, 1, 1]} : vector<2x4x32xf32> to vector<1x4x32xf32>
    %181 = vector.shape_cast %180 : vector<1x4x32xf32> to vector<4x32xf32>
    %182 = arith.addf %179, %181 : vector<4x32xf32>
    %c0_163 = arith.constant 0 : index
    %c0_164 = arith.constant 0 : index
    %c5 = arith.constant 5 : index
    %c0_165 = arith.constant 0 : index
    %c0_166 = arith.constant 0 : index
    %183 = vector.load %arg5[%c0_163, %c0_164, %c5, %c0_165, %c0_166] : memref<1x4x16x2x32xf32, #tpu.memory_space<vmem>>, vector<1x4x1x1x32xf32>
    %184 = vector.shape_cast %183 : vector<1x4x1x1x32xf32> to vector<4x32xf32>
    %185 = vector.shape_cast %182 : vector<4x32xf32> to vector<1x4x1x1x32xf32>
    tpu.vector_store %arg5[%c0_163, %c0_164, %c5, %c0_165, %c0_166], %185 {strides = array<i32>} : memref<1x4x16x2x32xf32, #tpu.memory_space<vmem>>, vector<1x4x1x1x32xf32>,
    %186 = vector.extract_strided_slice %107 {offsets = [4, 160], sizes = [4, 32], strides = [1, 1]} : vector<8x512xf32> to vector<4x32xf32>
    %187 = vector.extract_strided_slice %108 {offsets = [1, 0, 0], sizes = [1, 4, 32], strides = [1, 1, 1]} : vector<2x4x32xf32> to vector<1x4x32xf32>
    %188 = vector.shape_cast %187 : vector<1x4x32xf32> to vector<4x32xf32>
    %189 = arith.addf %186, %188 : vector<4x32xf32>
    %c0_167 = arith.constant 0 : index
    %c0_168 = arith.constant 0 : index
    %c5_169 = arith.constant 5 : index
    %c1_170 = arith.constant 1 : index
    %c0_171 = arith.constant 0 : index
    %190 = vector.load %arg5[%c0_167, %c0_168, %c5_169, %c1_170, %c0_171] : memref<1x4x16x2x32xf32, #tpu.memory_space<vmem>>, vector<1x4x1x1x32xf32>
    %191 = vector.shape_cast %190 : vector<1x4x1x1x32xf32> to vector<4x32xf32>
    %192 = vector.shape_cast %189 : vector<4x32xf32> to vector<1x4x1x1x32xf32>
    tpu.vector_store %arg5[%c0_167, %c0_168, %c5_169, %c1_170, %c0_171], %192 {strides = array<i32>} : memref<1x4x16x2x32xf32, #tpu.memory_space<vmem>>, vector<1x4x1x1x32xf32>,
    %193 = vector.extract_strided_slice %107 {offsets = [0, 192], sizes = [4, 32], strides = [1, 1]} : vector<8x512xf32> to vector<4x32xf32>
    %194 = vector.extract_strided_slice %108 {offsets = [0, 0, 0], sizes = [1, 4, 32], strides = [1, 1, 1]} : vector<2x4x32xf32> to vector<1x4x32xf32>
    %195 = vector.shape_cast %194 : vector<1x4x32xf32> to vector<4x32xf32>
    %196 = arith.addf %193, %195 : vector<4x32xf32>
    %c0_172 = arith.constant 0 : index
    %c0_173 = arith.constant 0 : index
    %c6 = arith.constant 6 : index
    %c0_174 = arith.constant 0 : index
    %c0_175 = arith.constant 0 : index
    %197 = vector.load %arg5[%c0_172, %c0_173, %c6, %c0_174, %c0_175] : memref<1x4x16x2x32xf32, #tpu.memory_space<vmem>>, vector<1x4x1x1x32xf32>
    %198 = vector.shape_cast %197 : vector<1x4x1x1x32xf32> to vector<4x32xf32>
    %199 = vector.shape_cast %196 : vector<4x32xf32> to vector<1x4x1x1x32xf32>
    tpu.vector_store %arg5[%c0_172, %c0_173, %c6, %c0_174, %c0_175], %199 {strides = array<i32>} : memref<1x4x16x2x32xf32, #tpu.memory_space<vmem>>, vector<1x4x1x1x32xf32>,
    %200 = vector.extract_strided_slice %107 {offsets = [4, 192], sizes = [4, 32], strides = [1, 1]} : vector<8x512xf32> to vector<4x32xf32>
    %201 = vector.extract_strided_slice %108 {offsets = [1, 0, 0], sizes = [1, 4, 32], strides = [1, 1, 1]} : vector<2x4x32xf32> to vector<1x4x32xf32>
    %202 = vector.shape_cast %201 : vector<1x4x32xf32> to vector<4x32xf32>
    %203 = arith.addf %200, %202 : vector<4x32xf32>
    %c0_176 = arith.constant 0 : index
    %c0_177 = arith.constant 0 : index
    %c6_178 = arith.constant 6 : index
    %c1_179 = arith.constant 1 : index
    %c0_180 = arith.constant 0 : index
    %204 = vector.load %arg5[%c0_176, %c0_177, %c6_178, %c1_179, %c0_180] : memref<1x4x16x2x32xf32, #tpu.memory_space<vmem>>, vector<1x4x1x1x32xf32>
    %205 = vector.shape_cast %204 : vector<1x4x1x1x32xf32> to vector<4x32xf32>
    %206 = vector.shape_cast %203 : vector<4x32xf32> to vector<1x4x1x1x32xf32>
    tpu.vector_store %arg5[%c0_176, %c0_177, %c6_178, %c1_179, %c0_180], %206 {strides = array<i32>} : memref<1x4x16x2x32xf32, #tpu.memory_space<vmem>>, vector<1x4x1x1x32xf32>,
    %207 = vector.extract_strided_slice %107 {offsets = [0, 224], sizes = [4, 32], strides = [1, 1]} : vector<8x512xf32> to vector<4x32xf32>
    %208 = vector.extract_strided_slice %108 {offsets = [0, 0, 0], sizes = [1, 4, 32], strides = [1, 1, 1]} : vector<2x4x32xf32> to vector<1x4x32xf32>
    %209 = vector.shape_cast %208 : vector<1x4x32xf32> to vector<4x32xf32>
    %210 = arith.addf %207, %209 : vector<4x32xf32>
    %c0_181 = arith.constant 0 : index
    %c0_182 = arith.constant 0 : index
    %c7 = arith.constant 7 : index
    %c0_183 = arith.constant 0 : index
    %c0_184 = arith.constant 0 : index
    %211 = vector.load %arg5[%c0_181, %c0_182, %c7, %c0_183, %c0_184] : memref<1x4x16x2x32xf32, #tpu.memory_space<vmem>>, vector<1x4x1x1x32xf32>
    %212 = vector.shape_cast %211 : vector<1x4x1x1x32xf32> to vector<4x32xf32>
    %213 = vector.shape_cast %210 : vector<4x32xf32> to vector<1x4x1x1x32xf32>
    tpu.vector_store %arg5[%c0_181, %c0_182, %c7, %c0_183, %c0_184], %213 {strides = array<i32>} : memref<1x4x16x2x32xf32, #tpu.memory_space<vmem>>, vector<1x4x1x1x32xf32>,
    %214 = vector.extract_strided_slice %107 {offsets = [4, 224], sizes = [4, 32], strides = [1, 1]} : vector<8x512xf32> to vector<4x32xf32>
    %215 = vector.extract_strided_slice %108 {offsets = [1, 0, 0], sizes = [1, 4, 32], strides = [1, 1, 1]} : vector<2x4x32xf32> to vector<1x4x32xf32>
    %216 = vector.shape_cast %215 : vector<1x4x32xf32> to vector<4x32xf32>
    %217 = arith.addf %214, %216 : vector<4x32xf32>
    %c0_185 = arith.constant 0 : index
    %c0_186 = arith.constant 0 : index
    %c7_187 = arith.constant 7 : index
    %c1_188 = arith.constant 1 : index
    %c0_189 = arith.constant 0 : index
    %218 = vector.load %arg5[%c0_185, %c0_186, %c7_187, %c1_188, %c0_189] : memref<1x4x16x2x32xf32, #tpu.memory_space<vmem>>, vector<1x4x1x1x32xf32>
    %219 = vector.shape_cast %218 : vector<1x4x1x1x32xf32> to vector<4x32xf32>
    %220 = vector.shape_cast %217 : vector<4x32xf32> to vector<1x4x1x1x32xf32>
    tpu.vector_store %arg5[%c0_185, %c0_186, %c7_187, %c1_188, %c0_189], %220 {strides = array<i32>} : memref<1x4x16x2x32xf32, #tpu.memory_space<vmem>>, vector<1x4x1x1x32xf32>,
    %221 = vector.extract_strided_slice %107 {offsets = [0, 256], sizes = [4, 32], strides = [1, 1]} : vector<8x512xf32> to vector<4x32xf32>
    %222 = vector.extract_strided_slice %108 {offsets = [0, 0, 0], sizes = [1, 4, 32], strides = [1, 1, 1]} : vector<2x4x32xf32> to vector<1x4x32xf32>
    %223 = vector.shape_cast %222 : vector<1x4x32xf32> to vector<4x32xf32>
    %224 = arith.addf %221, %223 : vector<4x32xf32>
    %c0_190 = arith.constant 0 : index
    %c0_191 = arith.constant 0 : index
    %c8_192 = arith.constant 8 : index
    %c0_193 = arith.constant 0 : index
    %c0_194 = arith.constant 0 : index
    %225 = vector.load %arg5[%c0_190, %c0_191, %c8_192, %c0_193, %c0_194] : memref<1x4x16x2x32xf32, #tpu.memory_space<vmem>>, vector<1x4x1x1x32xf32>
    %226 = vector.shape_cast %225 : vector<1x4x1x1x32xf32> to vector<4x32xf32>
    %227 = vector.shape_cast %224 : vector<4x32xf32> to vector<1x4x1x1x32xf32>
    tpu.vector_store %arg5[%c0_190, %c0_191, %c8_192, %c0_193, %c0_194], %227 {strides = array<i32>} : memref<1x4x16x2x32xf32, #tpu.memory_space<vmem>>, vector<1x4x1x1x32xf32>,
    %228 = vector.extract_strided_slice %107 {offsets = [4, 256], sizes = [4, 32], strides = [1, 1]} : vector<8x512xf32> to vector<4x32xf32>
    %229 = vector.extract_strided_slice %108 {offsets = [1, 0, 0], sizes = [1, 4, 32], strides = [1, 1, 1]} : vector<2x4x32xf32> to vector<1x4x32xf32>
    %230 = vector.shape_cast %229 : vector<1x4x32xf32> to vector<4x32xf32>
    %231 = arith.addf %228, %230 : vector<4x32xf32>
    %c0_195 = arith.constant 0 : index
    %c0_196 = arith.constant 0 : index
    %c8_197 = arith.constant 8 : index
    %c1_198 = arith.constant 1 : index
    %c0_199 = arith.constant 0 : index
    %232 = vector.load %arg5[%c0_195, %c0_196, %c8_197, %c1_198, %c0_199] : memref<1x4x16x2x32xf32, #tpu.memory_space<vmem>>, vector<1x4x1x1x32xf32>
    %233 = vector.shape_cast %232 : vector<1x4x1x1x32xf32> to vector<4x32xf32>
    %234 = vector.shape_cast %231 : vector<4x32xf32> to vector<1x4x1x1x32xf32>
    tpu.vector_store %arg5[%c0_195, %c0_196, %c8_197, %c1_198, %c0_199], %234 {strides = array<i32>} : memref<1x4x16x2x32xf32, #tpu.memory_space<vmem>>, vector<1x4x1x1x32xf32>,
    %235 = vector.extract_strided_slice %107 {offsets = [0, 288], sizes = [4, 32], strides = [1, 1]} : vector<8x512xf32> to vector<4x32xf32>
    %236 = vector.extract_strided_slice %108 {offsets = [0, 0, 0], sizes = [1, 4, 32], strides = [1, 1, 1]} : vector<2x4x32xf32> to vector<1x4x32xf32>
    %237 = vector.shape_cast %236 : vector<1x4x32xf32> to vector<4x32xf32>
    %238 = arith.addf %235, %237 : vector<4x32xf32>
    %c0_200 = arith.constant 0 : index
    %c0_201 = arith.constant 0 : index
    %c9 = arith.constant 9 : index
    %c0_202 = arith.constant 0 : index
    %c0_203 = arith.constant 0 : index
    %239 = vector.load %arg5[%c0_200, %c0_201, %c9, %c0_202, %c0_203] : memref<1x4x16x2x32xf32, #tpu.memory_space<vmem>>, vector<1x4x1x1x32xf32>
    %240 = vector.shape_cast %239 : vector<1x4x1x1x32xf32> to vector<4x32xf32>
    %241 = vector.shape_cast %238 : vector<4x32xf32> to vector<1x4x1x1x32xf32>
    tpu.vector_store %arg5[%c0_200, %c0_201, %c9, %c0_202, %c0_203], %241 {strides = array<i32>} : memref<1x4x16x2x32xf32, #tpu.memory_space<vmem>>, vector<1x4x1x1x32xf32>,
    %242 = vector.extract_strided_slice %107 {offsets = [4, 288], sizes = [4, 32], strides = [1, 1]} : vector<8x512xf32> to vector<4x32xf32>
    %243 = vector.extract_strided_slice %108 {offsets = [1, 0, 0], sizes = [1, 4, 32], strides = [1, 1, 1]} : vector<2x4x32xf32> to vector<1x4x32xf32>
    %244 = vector.shape_cast %243 : vector<1x4x32xf32> to vector<4x32xf32>
    %245 = arith.addf %242, %244 : vector<4x32xf32>
    %c0_204 = arith.constant 0 : index
    %c0_205 = arith.constant 0 : index
    %c9_206 = arith.constant 9 : index
    %c1_207 = arith.constant 1 : index
    %c0_208 = arith.constant 0 : index
    %246 = vector.load %arg5[%c0_204, %c0_205, %c9_206, %c1_207, %c0_208] : memref<1x4x16x2x32xf32, #tpu.memory_space<vmem>>, vector<1x4x1x1x32xf32>
    %247 = vector.shape_cast %246 : vector<1x4x1x1x32xf32> to vector<4x32xf32>
    %248 = vector.shape_cast %245 : vector<4x32xf32> to vector<1x4x1x1x32xf32>
    tpu.vector_store %arg5[%c0_204, %c0_205, %c9_206, %c1_207, %c0_208], %248 {strides = array<i32>} : memref<1x4x16x2x32xf32, #tpu.memory_space<vmem>>, vector<1x4x1x1x32xf32>,
    %249 = vector.extract_strided_slice %107 {offsets = [0, 320], sizes = [4, 32], strides = [1, 1]} : vector<8x512xf32> to vector<4x32xf32>
    %250 = vector.extract_strided_slice %108 {offsets = [0, 0, 0], sizes = [1, 4, 32], strides = [1, 1, 1]} : vector<2x4x32xf32> to vector<1x4x32xf32>
    %251 = vector.shape_cast %250 : vector<1x4x32xf32> to vector<4x32xf32>
    %252 = arith.addf %249, %251 : vector<4x32xf32>
    %c0_209 = arith.constant 0 : index
    %c0_210 = arith.constant 0 : index
    %c10 = arith.constant 10 : index
    %c0_211 = arith.constant 0 : index
    %c0_212 = arith.constant 0 : index
    %253 = vector.load %arg5[%c0_209, %c0_210, %c10, %c0_211, %c0_212] : memref<1x4x16x2x32xf32, #tpu.memory_space<vmem>>, vector<1x4x1x1x32xf32>
    %254 = vector.shape_cast %253 : vector<1x4x1x1x32xf32> to vector<4x32xf32>
    %255 = vector.shape_cast %252 : vector<4x32xf32> to vector<1x4x1x1x32xf32>
    tpu.vector_store %arg5[%c0_209, %c0_210, %c10, %c0_211, %c0_212], %255 {strides = array<i32>} : memref<1x4x16x2x32xf32, #tpu.memory_space<vmem>>, vector<1x4x1x1x32xf32>,
    %256 = vector.extract_strided_slice %107 {offsets = [4, 320], sizes = [4, 32], strides = [1, 1]} : vector<8x512xf32> to vector<4x32xf32>
    %257 = vector.extract_strided_slice %108 {offsets = [1, 0, 0], sizes = [1, 4, 32], strides = [1, 1, 1]} : vector<2x4x32xf32> to vector<1x4x32xf32>
    %258 = vector.shape_cast %257 : vector<1x4x32xf32> to vector<4x32xf32>
    %259 = arith.addf %256, %258 : vector<4x32xf32>
    %c0_213 = arith.constant 0 : index
    %c0_214 = arith.constant 0 : index
    %c10_215 = arith.constant 10 : index
    %c1_216 = arith.constant 1 : index
    %c0_217 = arith.constant 0 : index
    %260 = vector.load %arg5[%c0_213, %c0_214, %c10_215, %c1_216, %c0_217] : memref<1x4x16x2x32xf32, #tpu.memory_space<vmem>>, vector<1x4x1x1x32xf32>
    %261 = vector.shape_cast %260 : vector<1x4x1x1x32xf32> to vector<4x32xf32>
    %262 = vector.shape_cast %259 : vector<4x32xf32> to vector<1x4x1x1x32xf32>
    tpu.vector_store %arg5[%c0_213, %c0_214, %c10_215, %c1_216, %c0_217], %262 {strides = array<i32>} : memref<1x4x16x2x32xf32, #tpu.memory_space<vmem>>, vector<1x4x1x1x32xf32>,
    %263 = vector.extract_strided_slice %107 {offsets = [0, 352], sizes = [4, 32], strides = [1, 1]} : vector<8x512xf32> to vector<4x32xf32>
    %264 = vector.extract_strided_slice %108 {offsets = [0, 0, 0], sizes = [1, 4, 32], strides = [1, 1, 1]} : vector<2x4x32xf32> to vector<1x4x32xf32>
    %265 = vector.shape_cast %264 : vector<1x4x32xf32> to vector<4x32xf32>
    %266 = arith.addf %263, %265 : vector<4x32xf32>
    %c0_218 = arith.constant 0 : index
    %c0_219 = arith.constant 0 : index
    %c11 = arith.constant 11 : index
    %c0_220 = arith.constant 0 : index
    %c0_221 = arith.constant 0 : index
    %267 = vector.load %arg5[%c0_218, %c0_219, %c11, %c0_220, %c0_221] : memref<1x4x16x2x32xf32, #tpu.memory_space<vmem>>, vector<1x4x1x1x32xf32>
    %268 = vector.shape_cast %267 : vector<1x4x1x1x32xf32> to vector<4x32xf32>
    %269 = vector.shape_cast %266 : vector<4x32xf32> to vector<1x4x1x1x32xf32>
    tpu.vector_store %arg5[%c0_218, %c0_219, %c11, %c0_220, %c0_221], %269 {strides = array<i32>} : memref<1x4x16x2x32xf32, #tpu.memory_space<vmem>>, vector<1x4x1x1x32xf32>,
    %270 = vector.extract_strided_slice %107 {offsets = [4, 352], sizes = [4, 32], strides = [1, 1]} : vector<8x512xf32> to vector<4x32xf32>
    %271 = vector.extract_strided_slice %108 {offsets = [1, 0, 0], sizes = [1, 4, 32], strides = [1, 1, 1]} : vector<2x4x32xf32> to vector<1x4x32xf32>
    %272 = vector.shape_cast %271 : vector<1x4x32xf32> to vector<4x32xf32>
    %273 = arith.addf %270, %272 : vector<4x32xf32>
    %c0_222 = arith.constant 0 : index
    %c0_223 = arith.constant 0 : index
    %c11_224 = arith.constant 11 : index
    %c1_225 = arith.constant 1 : index
    %c0_226 = arith.constant 0 : index
    %274 = vector.load %arg5[%c0_222, %c0_223, %c11_224, %c1_225, %c0_226] : memref<1x4x16x2x32xf32, #tpu.memory_space<vmem>>, vector<1x4x1x1x32xf32>
    %275 = vector.shape_cast %274 : vector<1x4x1x1x32xf32> to vector<4x32xf32>
    %276 = vector.shape_cast %273 : vector<4x32xf32> to vector<1x4x1x1x32xf32>
    tpu.vector_store %arg5[%c0_222, %c0_223, %c11_224, %c1_225, %c0_226], %276 {strides = array<i32>} : memref<1x4x16x2x32xf32, #tpu.memory_space<vmem>>, vector<1x4x1x1x32xf32>,
    %277 = vector.extract_strided_slice %107 {offsets = [0, 384], sizes = [4, 32], strides = [1, 1]} : vector<8x512xf32> to vector<4x32xf32>
    %278 = vector.extract_strided_slice %108 {offsets = [0, 0, 0], sizes = [1, 4, 32], strides = [1, 1, 1]} : vector<2x4x32xf32> to vector<1x4x32xf32>
    %279 = vector.shape_cast %278 : vector<1x4x32xf32> to vector<4x32xf32>
    %280 = arith.addf %277, %279 : vector<4x32xf32>
    %c0_227 = arith.constant 0 : index
    %c0_228 = arith.constant 0 : index
    %c12_229 = arith.constant 12 : index
    %c0_230 = arith.constant 0 : index
    %c0_231 = arith.constant 0 : index
    %281 = vector.load %arg5[%c0_227, %c0_228, %c12_229, %c0_230, %c0_231] : memref<1x4x16x2x32xf32, #tpu.memory_space<vmem>>, vector<1x4x1x1x32xf32>
    %282 = vector.shape_cast %281 : vector<1x4x1x1x32xf32> to vector<4x32xf32>
    %283 = vector.shape_cast %280 : vector<4x32xf32> to vector<1x4x1x1x32xf32>
    tpu.vector_store %arg5[%c0_227, %c0_228, %c12_229, %c0_230, %c0_231], %283 {strides = array<i32>} : memref<1x4x16x2x32xf32, #tpu.memory_space<vmem>>, vector<1x4x1x1x32xf32>,
    %284 = vector.extract_strided_slice %107 {offsets = [4, 384], sizes = [4, 32], strides = [1, 1]} : vector<8x512xf32> to vector<4x32xf32>
    %285 = vector.extract_strided_slice %108 {offsets = [1, 0, 0], sizes = [1, 4, 32], strides = [1, 1, 1]} : vector<2x4x32xf32> to vector<1x4x32xf32>
    %286 = vector.shape_cast %285 : vector<1x4x32xf32> to vector<4x32xf32>
    %287 = arith.addf %284, %286 : vector<4x32xf32>
    %c0_232 = arith.constant 0 : index
    %c0_233 = arith.constant 0 : index
    %c12_234 = arith.constant 12 : index
    %c1_235 = arith.constant 1 : index
    %c0_236 = arith.constant 0 : index
    %288 = vector.load %arg5[%c0_232, %c0_233, %c12_234, %c1_235, %c0_236] : memref<1x4x16x2x32xf32, #tpu.memory_space<vmem>>, vector<1x4x1x1x32xf32>
    %289 = vector.shape_cast %288 : vector<1x4x1x1x32xf32> to vector<4x32xf32>
    %290 = vector.shape_cast %287 : vector<4x32xf32> to vector<1x4x1x1x32xf32>
    tpu.vector_store %arg5[%c0_232, %c0_233, %c12_234, %c1_235, %c0_236], %290 {strides = array<i32>} : memref<1x4x16x2x32xf32, #tpu.memory_space<vmem>>, vector<1x4x1x1x32xf32>,
    %291 = vector.extract_strided_slice %107 {offsets = [0, 416], sizes = [4, 32], strides = [1, 1]} : vector<8x512xf32> to vector<4x32xf32>
    %292 = vector.extract_strided_slice %108 {offsets = [0, 0, 0], sizes = [1, 4, 32], strides = [1, 1, 1]} : vector<2x4x32xf32> to vector<1x4x32xf32>
    %293 = vector.shape_cast %292 : vector<1x4x32xf32> to vector<4x32xf32>
    %294 = arith.addf %291, %293 : vector<4x32xf32>
    %c0_237 = arith.constant 0 : index
    %c0_238 = arith.constant 0 : index
    %c13 = arith.constant 13 : index
    %c0_239 = arith.constant 0 : index
    %c0_240 = arith.constant 0 : index
    %295 = vector.load %arg5[%c0_237, %c0_238, %c13, %c0_239, %c0_240] : memref<1x4x16x2x32xf32, #tpu.memory_space<vmem>>, vector<1x4x1x1x32xf32>
    %296 = vector.shape_cast %295 : vector<1x4x1x1x32xf32> to vector<4x32xf32>
    %297 = vector.shape_cast %294 : vector<4x32xf32> to vector<1x4x1x1x32xf32>
    tpu.vector_store %arg5[%c0_237, %c0_238, %c13, %c0_239, %c0_240], %297 {strides = array<i32>} : memref<1x4x16x2x32xf32, #tpu.memory_space<vmem>>, vector<1x4x1x1x32xf32>,
    %298 = vector.extract_strided_slice %107 {offsets = [4, 416], sizes = [4, 32], strides = [1, 1]} : vector<8x512xf32> to vector<4x32xf32>
    %299 = vector.extract_strided_slice %108 {offsets = [1, 0, 0], sizes = [1, 4, 32], strides = [1, 1, 1]} : vector<2x4x32xf32> to vector<1x4x32xf32>
    %300 = vector.shape_cast %299 : vector<1x4x32xf32> to vector<4x32xf32>
    %301 = arith.addf %298, %300 : vector<4x32xf32>
    %c0_241 = arith.constant 0 : index
    %c0_242 = arith.constant 0 : index
    %c13_243 = arith.constant 13 : index
    %c1_244 = arith.constant 1 : index
    %c0_245 = arith.constant 0 : index
    %302 = vector.load %arg5[%c0_241, %c0_242, %c13_243, %c1_244, %c0_245] : memref<1x4x16x2x32xf32, #tpu.memory_space<vmem>>, vector<1x4x1x1x32xf32>
    %303 = vector.shape_cast %302 : vector<1x4x1x1x32xf32> to vector<4x32xf32>
    %304 = vector.shape_cast %301 : vector<4x32xf32> to vector<1x4x1x1x32xf32>
    tpu.vector_store %arg5[%c0_241, %c0_242, %c13_243, %c1_244, %c0_245], %304 {strides = array<i32>} : memref<1x4x16x2x32xf32, #tpu.memory_space<vmem>>, vector<1x4x1x1x32xf32>,
    %305 = vector.extract_strided_slice %107 {offsets = [0, 448], sizes = [4, 32], strides = [1, 1]} : vector<8x512xf32> to vector<4x32xf32>
    %306 = vector.extract_strided_slice %108 {offsets = [0, 0, 0], sizes = [1, 4, 32], strides = [1, 1, 1]} : vector<2x4x32xf32> to vector<1x4x32xf32>
    %307 = vector.shape_cast %306 : vector<1x4x32xf32> to vector<4x32xf32>
    %308 = arith.addf %305, %307 : vector<4x32xf32>
    %c0_246 = arith.constant 0 : index
    %c0_247 = arith.constant 0 : index
    %c14 = arith.constant 14 : index
    %c0_248 = arith.constant 0 : index
    %c0_249 = arith.constant 0 : index
    %309 = vector.load %arg5[%c0_246, %c0_247, %c14, %c0_248, %c0_249] : memref<1x4x16x2x32xf32, #tpu.memory_space<vmem>>, vector<1x4x1x1x32xf32>
    %310 = vector.shape_cast %309 : vector<1x4x1x1x32xf32> to vector<4x32xf32>
    %311 = vector.shape_cast %308 : vector<4x32xf32> to vector<1x4x1x1x32xf32>
    tpu.vector_store %arg5[%c0_246, %c0_247, %c14, %c0_248, %c0_249], %311 {strides = array<i32>} : memref<1x4x16x2x32xf32, #tpu.memory_space<vmem>>, vector<1x4x1x1x32xf32>,
    %312 = vector.extract_strided_slice %107 {offsets = [4, 448], sizes = [4, 32], strides = [1, 1]} : vector<8x512xf32> to vector<4x32xf32>
    %313 = vector.extract_strided_slice %108 {offsets = [1, 0, 0], sizes = [1, 4, 32], strides = [1, 1, 1]} : vector<2x4x32xf32> to vector<1x4x32xf32>
    %314 = vector.shape_cast %313 : vector<1x4x32xf32> to vector<4x32xf32>
    %315 = arith.addf %312, %314 : vector<4x32xf32>
    %c0_250 = arith.constant 0 : index
    %c0_251 = arith.constant 0 : index
    %c14_252 = arith.constant 14 : index
    %c1_253 = arith.constant 1 : index
    %c0_254 = arith.constant 0 : index
    %316 = vector.load %arg5[%c0_250, %c0_251, %c14_252, %c1_253, %c0_254] : memref<1x4x16x2x32xf32, #tpu.memory_space<vmem>>, vector<1x4x1x1x32xf32>
    %317 = vector.shape_cast %316 : vector<1x4x1x1x32xf32> to vector<4x32xf32>
    %318 = vector.shape_cast %315 : vector<4x32xf32> to vector<1x4x1x1x32xf32>
    tpu.vector_store %arg5[%c0_250, %c0_251, %c14_252, %c1_253, %c0_254], %318 {strides = array<i32>} : memref<1x4x16x2x32xf32, #tpu.memory_space<vmem>>, vector<1x4x1x1x32xf32>,
    %319 = vector.extract_strided_slice %107 {offsets = [0, 480], sizes = [4, 32], strides = [1, 1]} : vector<8x512xf32> to vector<4x32xf32>
    %320 = vector.extract_strided_slice %108 {offsets = [0, 0, 0], sizes = [1, 4, 32], strides = [1, 1, 1]} : vector<2x4x32xf32> to vector<1x4x32xf32>
    %321 = vector.shape_cast %320 : vector<1x4x32xf32> to vector<4x32xf32>
    %322 = arith.addf %319, %321 : vector<4x32xf32>
    %c0_255 = arith.constant 0 : index
    %c0_256 = arith.constant 0 : index
    %c15 = arith.constant 15 : index
    %c0_257 = arith.constant 0 : index
    %c0_258 = arith.constant 0 : index
    %323 = vector.load %arg5[%c0_255, %c0_256, %c15, %c0_257, %c0_258] : memref<1x4x16x2x32xf32, #tpu.memory_space<vmem>>, vector<1x4x1x1x32xf32>
    %324 = vector.shape_cast %323 : vector<1x4x1x1x32xf32> to vector<4x32xf32>
    %325 = vector.shape_cast %322 : vector<4x32xf32> to vector<1x4x1x1x32xf32>
    tpu.vector_store %arg5[%c0_255, %c0_256, %c15, %c0_257, %c0_258], %325 {strides = array<i32>} : memref<1x4x16x2x32xf32, #tpu.memory_space<vmem>>, vector<1x4x1x1x32xf32>,
    %326 = vector.extract_strided_slice %107 {offsets = [4, 480], sizes = [4, 32], strides = [1, 1]} : vector<8x512xf32> to vector<4x32xf32>
    %327 = vector.extract_strided_slice %108 {offsets = [1, 0, 0], sizes = [1, 4, 32], strides = [1, 1, 1]} : vector<2x4x32xf32> to vector<1x4x32xf32>
    %328 = vector.shape_cast %327 : vector<1x4x32xf32> to vector<4x32xf32>
    %329 = arith.addf %326, %328 : vector<4x32xf32>
    %c0_259 = arith.constant 0 : index
    %c0_260 = arith.constant 0 : index
    %c15_261 = arith.constant 15 : index
    %c1_262 = arith.constant 1 : index
    %c0_263 = arith.constant 0 : index
    %330 = vector.load %arg5[%c0_259, %c0_260, %c15_261, %c1_262, %c0_263] : memref<1x4x16x2x32xf32, #tpu.memory_space<vmem>>, vector<1x4x1x1x32xf32>
    %331 = vector.shape_cast %330 : vector<1x4x1x1x32xf32> to vector<4x32xf32>
    %332 = vector.shape_cast %329 : vector<4x32xf32> to vector<1x4x1x1x32xf32>
    tpu.vector_store %arg5[%c0_259, %c0_260, %c15_261, %c1_262, %c0_263], %332 {strides = array<i32>} : memref<1x4x16x2x32xf32, #tpu.memory_space<vmem>>, vector<1x4x1x1x32xf32>,
    return
  }
  func.func @transform_0(%arg0: i32, %arg1: i32) -> (i32, i32, i32, i32, i32) {
    %c0_i32 = arith.constant 0 : i32
    %c0_i32_0 = arith.constant 0 : i32
    %c0_i32_1 = arith.constant 0 : i32
    %c0_i32_2 = arith.constant 0 : i32
    return %arg0, %arg1, %c0_i32, %c0_i32_0, %c0_i32_1 : i32, i32, i32, i32, i32
  }
  func.func @transform_1(%arg0: i32, %arg1: i32) -> (i32, i32) {
    %c0_i32 = arith.constant 0 : i32
    %c0_i32_0 = arith.constant 0 : i32
    %c0_i32_1 = arith.constant 0 : i32
    return %c0_i32, %c0_i32_0 : i32, i32
  }
  func.func @transform_2(%arg0: i32, %arg1: i32) -> (i32, i32, i32) {
    %c0_i32 = arith.constant 0 : i32
    %c0_i32_0 = arith.constant 0 : i32
    %c0_i32_1 = arith.constant 0 : i32
    %c0_i32_2 = arith.constant 0 : i32
    return %c0_i32, %c0_i32_0, %c0_i32_1 : i32, i32, i32
  }
  func.func @transform_3(%arg0: i32, %arg1: i32) -> (i32, i32, i32, i32, i32) {
    %c0_i32 = arith.constant 0 : i32
    %c0_i32_0 = arith.constant 0 : i32
    %c0_i32_1 = arith.constant 0 : i32
    %c0_i32_2 = arith.constant 0 : i32
    return %arg0, %c0_i32, %arg1, %c0_i32_0, %c0_i32_1 : i32, i32, i32, i32, i32
  }
}

</mosaic_0001>

<llo_original>
// kernel: upconv_forward.1
$region0: #{upconv_forward.1}
  #allocation0 [shape = 'u32[]', space=smem, size = 0x4, offset = 0x4, fixed_abs, tag = 'smem constant byte address 0x4 - core index']
  #allocation1 [shape = 'u32[144,128]{1,0:T(1,128)}', space=vmem, size = 0x12000, scoped, tag = 'internal scratch']
  #allocation2 [shape = 'bf16[72,512]{1,0:T(8,128)(2,1)}', space=vmem, size = 0x12000, scoped, tag = 'scratch operand']
  %s0 = inlined_call_operand.vmem [shape: bf16[2,1,2,4,640], index: 0, kind: input, shape index: {}]
  %s1 = inlined_call_operand.vmem [shape: bf16[8,72], index: 1, kind: input, shape index: {}]
  %s2 = inlined_call_operand.vmem [shape: f32[2,4,32], index: 2, kind: input, shape index: {}]
  %s3 = inlined_call_operand.hbm [shape: f32[2,4,16,2,32], index: 3, kind: output, shape index: {}]
  %s4 = sld [smem:[#allocation0]]
  $region45: #{upconv_forward.1} parent=0
    _
  %s6 = ssub.s32 1, %s4
  %s7 = scalar_select 0, %s6, %s4
  $region1: #{upconv_forward.1} parent=0
    #allocation3 [shape = 'u8[131072]{0}', space=vmem, size = 0x20000, scoped, tag = 'output window, operand 0']
    #allocation4 [shape = 's32[2]{0}', space=sflag, size = 0x8, scoped, tag = 'scoped memory for upconv_forward.1']
    %8 = vsyncpa [#allocation4], 0
    %s9 = scalar_lea.sflag [#allocation4], 1
    %10 = vsyncpa %s9, 0
    loop: start=0, step=1, limit=4
    $region2: #{upconv_forward.1} parent=1 // loop_pre_header
      _
    $region3: #{upconv_forward.1} parent=1 // loop_header
      %s12 = sphi 0, %s16
      %p13 = scmp.ge.s32.totalorder %s12, 4
      %s19 = sphi 0, %s31
      %s20 = sphi 0, %s27
      %s21 = sphi 0, %s19
      %s22 = sphi 0, %s20
      %s23 = sphi 0, %s21
      %s24 = sphi 0, %s22
      %s36 = sphi 0, %s38
      %s39 = sphi 0, %s36
      %s40 = sphi 0, %s39
      %s56 = sphi 0, %s40
      %s60 = sphi 0, %s60
      %s62 = sphi 0, %s60
      %s63 = sphi 0, %s62
      %s77 = sphi 0, %s63
      %s81 = sphi 0, %s81
      %s83 = sphi 0, %s81
      %s84 = sphi 0, %s83
      %s98 = sphi 0, %s84
      %s106 = sphi 0, %s108
      %s109 = sphi 0, %s106
      %s110 = sphi 0, %s109
      %s126 = sphi 0, %s110
    $region4: #{upconv_forward.1} parent=1 // loop_header_branch
      %15 = sbr.rel (%p13) target = $region8
    $region5: #{upconv_forward.1} parent=1 // loop_body
      %s17 = ssub.s32 %s12, 1
      %s18 = ssub.s32 %s12, 2
      %s25 = sadd.s32 1, %s20
      %p26 = scmp.ge.s32.totalorder %s25, 1
      %s27 = scalar_select %p26, 0, %s25
      %s28 = sadd.s32 1, %s19
      %s29 = scalar_select %p26, %s28, %s19
      %p30 = scmp.ge.s32.totalorder %s29, 2
      %s31 = scalar_select %p30, 0, %s29
      %s32 = ssub.s32 %s19, %s31
      %s33 = ssub.s32 %s20, %s27
      %s34 = sor.u32 %s32, %s33
      %p35 = scmp.eq.s32.totalorder %s34, 0
      %s37 = sadd.s32 %s36, 1
      %s38 = scalar_select %p35, %s36, %s37
      %p41 = pneg %p35
      %p42 = scmp.eq.s32.totalorder %s12, 1
      %p43 = por %p41, %p42
      %p44 = scmp.ne.s32.totalorder %s36, %s39
      %p45 = scmp.eq.s32.totalorder %s12, 0
      %p46 = por %p44, %p45
      %p47 = scmp.ne.s32.totalorder %s36, %s39
      %p48 = scmp.eq.s32.totalorder %s17, 1
      %p49 = por %p47, %p48
      %p50 = scmp.ne.s32.totalorder %s39, %s40
      %p51 = scmp.eq.s32.totalorder %s17, 0
      %p52 = por %p50, %p51
      %p53 = scmp.ne.s32.totalorder %s39, %s40
      %p54 = scmp.eq.s32.totalorder %s18, 1
      %p55 = por %p53, %p54
      %p57 = scmp.ne.s32.totalorder %s40, %s56
      %p58 = scmp.eq.s32.totalorder %s18, 0
      %p59 = por %p57, %p58
      %s61 = sadd.s32 %s60, 1
      %p64 = scmp.eq.s32.totalorder %s12, 1
      %p65 = scmp.ne.s32.totalorder %s60, %s62
      %p66 = scmp.eq.s32.totalorder %s12, 0
      %p67 = por %p65, %p66
      %p68 = scmp.ne.s32.totalorder %s60, %s62
      %p69 = scmp.eq.s32.totalorder %s17, 1
      %p70 = por %p68, %p69
      %p71 = scmp.ne.s32.totalorder %s62, %s63
      %p72 = scmp.eq.s32.totalorder %s17, 0
      %p73 = por %p71, %p72
      %p74 = scmp.ne.s32.totalorder %s62, %s63
      %p75 = scmp.eq.s32.totalorder %s18, 1
      %p76 = por %p74, %p75
      %p78 = scmp.ne.s32.totalorder %s63, %s77
      %p79 = scmp.eq.s32.totalorder %s18, 0
      %p80 = por %p78, %p79
      %s82 = sadd.s32 %s81, 1
      %p85 = scmp.eq.s32.totalorder %s12, 1
      %p86 = scmp.ne.s32.totalorder %s81, %s83
      %p87 = scmp.eq.s32.totalorder %s12, 0
      %p88 = por %p86, %p87
      %p89 = scmp.ne.s32.totalorder %s81, %s83
      %p90 = scmp.eq.s32.totalorder %s17, 1
      %p91 = por %p89, %p90
      %p92 = scmp.ne.s32.totalorder %s83, %s84
      %p93 = scmp.eq.s32.totalorder %s17, 0
      %p94 = por %p92, %p93
      %p95 = scmp.ne.s32.totalorder %s83, %s84
      %p96 = scmp.eq.s32.totalorder %s18, 1
      %p97 = por %p95, %p96
      %p99 = scmp.ne.s32.totalorder %s84, %s98
      %p100 = scmp.eq.s32.totalorder %s18, 0
      %p101 = por %p99, %p100
      %s102 = ssub.s32 %s19, %s31
      %s103 = ssub.s32 %s20, %s27
      %s104 = sor.u32 %s102, %s103
      %p105 = scmp.eq.s32.totalorder %s104, 0
      %s107 = sadd.s32 %s106, 1
      %s108 = scalar_select %p105, %s106, %s107
      %p111 = pneg %p105
      %p112 = scmp.eq.s32.totalorder %s12, 1
      %p113 = por %p111, %p112
      %p114 = scmp.ne.s32.totalorder %s106, %s109
      %p115 = scmp.eq.s32.totalorder %s12, 0
      %p116 = por %p114, %p115
      %p117 = scmp.ne.s32.totalorder %s106, %s109
      %p118 = scmp.eq.s32.totalorder %s17, 1
      %p119 = por %p117, %p118
      %p120 = scmp.ne.s32.totalorder %s109, %s110
      %p121 = scmp.eq.s32.totalorder %s17, 0
      %p122 = por %p120, %p121
      %p123 = scmp.ne.s32.totalorder %s109, %s110
      %p124 = scmp.eq.s32.totalorder %s18, 1
      %p125 = por %p123, %p124
      %p127 = scmp.ne.s32.totalorder %s110, %s126
      %p128 = scmp.eq.s32.totalorder %s18, 0
      %p129 = por %p127, %p128
      %p130 = scmp.le.s32.totalorder 1, %s12
      %p131 = scmp.lt.s32.totalorder %s12, 3
      %p132 = pnand %p130, %p131
      %p133 = pneg %p132
      // Predicated region
      $region9: #{upconv_forward.1} parent=5 // pred_check
        _
      $region10: #{upconv_forward.1} parent=5 // pred_check_branch
        %135 = sbr.rel (%p132) target = $region12
      $region11: #{upconv_forward.1} parent=5 // pred_region
        %s136 = ssub.s32 %s12, 1
        // Predicated region
        $region13: #{upconv_forward.1} parent=11 // pred_check
          %p137 = pneg %p73
        $region14: #{upconv_forward.1} parent=11 // pred_check_branch
          %139 = sbr.rel (%p137) target = $region16
        $region15: #{upconv_forward.1} parent=11 // pred_region
          _
        $region16: #{upconv_forward.1} parent=11 // pred_fallthru
          _
        // Predicated region
        $region17: #{upconv_forward.1} parent=11 // pred_check
          %p140 = pneg %p94
        $region18: #{upconv_forward.1} parent=11 // pred_check_branch
          %142 = sbr.rel (%p140) target = $region20
        $region19: #{upconv_forward.1} parent=11 // pred_region
          _
        $region20: #{upconv_forward.1} parent=11 // pred_fallthru
          _
      $region12: #{upconv_forward.1} parent=5 // pred_fallthru
        _
      %p143 = scmp.lt.s32.totalorder %s12, 2
      // Predicated region
      $region21: #{upconv_forward.1} parent=5 // pred_check
        %p144 = pneg %p143
      $region22: #{upconv_forward.1} parent=5 // pred_check_branch
        %146 = sbr.rel (%p144) target = $region24
      $region23: #{upconv_forward.1} parent=5 // pred_region
        // Predicated region
        $region25: #{upconv_forward.1} parent=23 // pred_check
          %p147 = pneg %p46
        $region26: #{upconv_forward.1} parent=23 // pred_check_branch
          %149 = sbr.rel (%p147) target = $region28
        $region27: #{upconv_forward.1} parent=23 // pred_region
          %p150 = scmp.lt.s32.totalorder %s19, 1
          %s151 = scalar_select %p150, %s19, 1
          %p152 = scmp.lt.s32.totalorder %s20, 0
          %s153 = scalar_select %p152, %s20, 0
          %s154 = smul.addr %s153, 10
          %s155 = smul.addr %s151, 10
          %s156 = sadd.s32 %s154, %s155
          %s157 = smul.addr %s156, 2
          %s158 = scalar_lea.vmem %s0, %s157
        $region28: #{upconv_forward.1} parent=23 // pred_fallthru
          _
      $region24: #{upconv_forward.1} parent=5 // pred_fallthru
        _
      %p159 = scmp.le.s32.totalorder 1, %s12
      %p160 = scmp.lt.s32.totalorder %s12, 3
      %p161 = pnand %p159, %p160
      %p162 = pneg %p161
      // Predicated region
      $region29: #{upconv_forward.1} parent=5 // pred_check
        _
      $region30: #{upconv_forward.1} parent=5 // pred_check_branch
        %164 = sbr.rel (%p161) target = $region32
      $region31: #{upconv_forward.1} parent=5 // pred_region
        %s165 = ssub.s32 %s12, 1
        %p166 = scmp.lt.s32.totalorder %s21, 1
        %s167 = scalar_select %p166, %s21, 1
        %p168 = scmp.lt.s32.totalorder %s22, 0
        %s169 = scalar_select %p168, %s22, 0
        %s170 = smul.addr %s169, 10
        %s171 = smul.addr %s167, 10
        %s172 = sadd.s32 %s170, %s171
        %s173 = smul.addr %s172, 2
        %s174 = scalar_lea.vmem %s0, %s173
        %p175 = pneg %p52
        %p176 = pneg %p49
        %p177 = pneg %p73
        %p178 = pneg %p70
        %p179 = pneg %p94
        %p180 = pneg %p91
        %p181 = pneg %p122
        %p182 = pneg %p119
        %s183 = sand.u32 %s109, 1
        %s184 = scalar_lea.sflag [#allocation4], %s183
        %s185 = sand.u32 %s109, 1
        %s186 = smul.addr %s185, 128
        %s187 = scalar_lea.vmem [#allocation3], %s186
        %p188 = scmp.lt.s32.totalorder %s21, 1
        %s189 = scalar_select %p188, %s21, 1
        %p190 = scmp.lt.s32.totalorder %s22, 0
        %s191 = scalar_select %p190, %s22, 0
        %s192 = smul.addr %s191, 10
        %s193 = smul.addr %s189, 10
        %s194 = sadd.s32 %s192, %s193
        %s195 = smul.addr %s194, 2
        %s196 = scalar_lea.vmem %s0, %s195
        %s197 = smul.u32 16, %s22
        %v199 = vlaneseq
        %v200 = vand.u32 %v199, 127
        %v201 = vadd.s32 %v200, 128
        %v202 = vadd.s32 %v200, 256
        %v203 = vadd.s32 %v200, 384
        %vm204 = vcmp.lt.s32.totalorder %v200, 0
        %v205 = vsub.s32 0, %v200
        %v206 = vsel %vm204, %v205, %v200
        %v207 = vshrl.u32 %v206, 5
        %v208 = vand.u32 %v206, 31
        %v209 = vsub.s32 0, %v208
        %v210 = vsel %vm204, %v209, %v208
        %vm211 = vcmp.lt.s32.totalorder %v201, 0
        %v212 = vsub.s32 0, %v201
        %v213 = vsel %vm211, %v212, %v201
        %v214 = vshrl.u32 %v213, 5
        %v215 = vand.u32 %v213, 31
        %v216 = vsub.s32 0, %v215
        %v217 = vsel %vm211, %v216, %v215
        %vm218 = vcmp.lt.s32.totalorder %v202, 0
        %v219 = vsub.s32 0, %v202
        %v220 = vsel %vm218, %v219, %v202
        %v221 = vshrl.u32 %v220, 5
        %v222 = vand.u32 %v220, 31
        %v223 = vsub.s32 0, %v222
        %v224 = vsel %vm218, %v223, %v222
        %vm225 = vcmp.lt.s32.totalorder %v203, 0
        %v226 = vsub.s32 0, %v203
        %v227 = vsel %vm225, %v226, %v203
        %v228 = vshrl.u32 %v227, 5
        %v229 = vand.u32 %v227, 31
        %v230 = vsub.s32 0, %v229
        %v231 = vsel %vm225, %v230, %v229
        %vm232 = vcmp.ne.s32.totalorder %v210, 0
        %vm233 = vcmp.ne.s32.totalorder %v217, 0
        %vm234 = vcmp.ne.s32.totalorder %v224, 0
        %vm235 = vcmp.ne.s32.totalorder %v231, 0
        %vm236 = vcmp.lt.s32.totalorder %v210, 0
        %vm237 = vcmp.lt.s32.totalorder %v217, 0
        %vm238 = vcmp.lt.s32.totalorder %v224, 0
        %vm239 = vcmp.lt.s32.totalorder %v231, 0
        %vm240 = vmand %vm236, %vm232
        %vm241 = vmand %vm237, %vm233
        %vm242 = vmand %vm238, %vm234
        %vm243 = vmand %vm239, %vm235
        %v244 = vadd.s32 %v210, 32
        %v245 = vadd.s32 %v217, 32
        %v246 = vadd.s32 %v224, 32
        %v247 = vadd.s32 %v231, 32
        %v248 = vsel %vm240, %v244, %v210
        %v249 = vsel %vm241, %v245, %v217
        %v250 = vsel %vm242, %v246, %v224
        %v251 = vsel %vm243, %v247, %v231
        %vm252 = vcmp.ge.s32.totalorder %v248, 2
        %vm253 = vcmp.ge.s32.totalorder %v249, 2
        %vm254 = vcmp.ge.s32.totalorder %v250, 2
        %vm255 = vcmp.ge.s32.totalorder %v251, 2
        %v256 = vsel %vm252, 1, 0
        %v257 = vsel %vm253, 1, 0
        %v258 = vsel %vm254, 1, 0
        %v259 = vsel %vm255, 1, 0
        %v260 = vcvt.s32.f32 %v256
        %v261 = vcvt.s32.f32 %v257
        %v262 = vcvt.s32.f32 %v258
        %v263 = vcvt.s32.f32 %v259
        %v264 = vpack.c.bf16 %v260, %v260
        %v265 = vpack.c.bf16 %v261, %v261
        %v266 = vpack.c.bf16 %v262, %v262
        %v267 = vpack.c.bf16 %v263, %v263
        %vm268 = vcmp.lt.s32.totalorder %v248, 30
        %vm269 = vcmp.lt.s32.totalorder %v249, 30
        %vm270 = vcmp.lt.s32.totalorder %v250, 30
        %vm271 = vcmp.lt.s32.totalorder %v251, 30
        %v272 = vsel %vm268, 1, 0
        %v273 = vsel %vm269, 1, 0
        %v274 = vsel %vm270, 1, 0
        %v275 = vsel %vm271, 1, 0
        %v276 = vcvt.s32.f32 %v272
        %v277 = vcvt.s32.f32 %v273
        %v278 = vcvt.s32.f32 %v274
        %v279 = vcvt.s32.f32 %v275
        %v280 = vpack.c.bf16 %v276, %v276
        %v281 = vpack.c.bf16 %v277, %v277
        %v282 = vpack.c.bf16 %v278, %v278
        %v283 = vpack.c.bf16 %v279, %v279
        %v284 = vld [vmem:[%s196] sm:$0xff]
        %v289 = vcombine.low %v264, %v265
        %v290 = vcombine.low %v266, %v267
        %v292 = vunpack.c.l.s4 1983009808
        %v293 = vunpack.c.0.s8 %v292
        %v294 = vlaneseq
        %v295 = vshrl.u32 %v294, 7
        %v296 = vsub.s32 %v293, %v295
        %v297 = vrot.slane %v289, %v296
        %v299 = vunpack.c.l.s4 1983009808
        %v300 = vunpack.c.0.s8 %v299
        %v301 = vlaneseq
        %v302 = vshrl.u32 %v301, 7
        %v303 = vsub.s32 %v300, %v302
        %v304 = vrot.slane %v290, %v303
        %v305 = vcombine.low %v297, %v304
        %v307 = vmul.bf16 %v284, %v305
        %v309 = vcombine.high %v307, %v307
        %v311 = vunpack.c.l.s4 1983009808
        %v312 = vunpack.c.0.s8 %v311
        %v313 = vlaneseq
        %v314 = vshrl.u32 %v313, 7
        %v315 = vsub.s32 %v312, %v314
        %v316 = vrot.slane %v307, %v315
        %v318 = vunpack.c.l.s4 1983009808
        %v319 = vunpack.c.0.s8 %v318
        %v320 = vlaneseq
        %v321 = vshrl.u32 %v320, 7
        %v322 = vsub.s32 %v319, %v321
        %v323 = vrot.slane %v309, %v322
        %326 = vst [vmem:[#allocation2] sm:$0x33] %v316
        %327 = vst [vmem:[#allocation2 + $0x8] sm:$0x33] %v323
        %v328 = vld [vmem:[%s196] sm:$0xff]
        %v329 = vld [vmem:[%s196 + $0x8] sm:$0x3]
        %v332 = vcombine.low %v328, %v328
        %v334 = vunpack.c.l.s4 1983009808
        %v335 = vunpack.c.0.s8 %v334
        %v336 = vlaneseq
        %v337 = vshrl.u32 %v336, 7
        %v338 = vsub.s32 %v335, %v337
        %v339 = vrot.slane %v332, %v338
        %v341 = vunpack.c.l.s4 1983009808
        %v342 = vunpack.c.0.s8 %v341
        %v343 = vlaneseq
        %v344 = vshrl.u32 %v343, 7
        %v345 = vsub.s32 %v342, %v344
        %v346 = vrot.slane %v328, %v345
        %v347 = vcombine.low %v329, %v329
        %v349 = vunpack.c.l.s4 1983009808
        %v350 = vunpack.c.0.s8 %v349
        %v351 = vlaneseq
        %v352 = vshrl.u32 %v351, 7
        %v353 = vsub.s32 %v350, %v352
        %v354 = vrot.slane %v347, %v353
        %355 = vrot.lane.b32.xlu0 %v339, 126
        %v356 = vpop.permute.xlu0 %355
        %357 = vrot.lane.b32.xlu0 %v346, 126
        %v358 = vpop.permute.xlu0 %357
        %359 = vrot.lane.b32.xlu0 %v354, 126
        %v360 = vpop.permute.xlu0 %359
        %v361 = vrot.slane %v356, 4
        %v362 = vrot.slane %v358, 4
        %v363 = vrot.slane %v360, 4
        %vm364 = vcmask 1043456
        %v365 = vsel %vm364, %v361, %v362
        %vm366 = vcmask 1031168
        %v367 = vsel %vm366, %v356, %v365
        %v368 = vsel %vm364, %v362, %v363
        %v369 = vsel %vm366, %v358, %v368
        %372 = vst [vmem:[#allocation2] sm:$0xcc] %v367
        %373 = vst [vmem:[#allocation2 + $0x8] sm:$0xcc] %v369
        %v374 = vld [vmem:[%s196] sm:$0xff]
        %v375 = vld [vmem:[%s196 + $0x8] sm:$0x3]
        %v380 = vcombine.low %v280, %v281
        %v381 = vcombine.low %v282, %v283
        %v383 = vunpack.c.l.s4 1983009808
        %v384 = vunpack.c.0.s8 %v383
        %v385 = vlaneseq
        %v386 = vshrl.u32 %v385, 7
        %v387 = vsub.s32 %v384, %v386
        %v388 = vrot.slane %v380, %v387
        %v390 = vunpack.c.l.s4 1983009808
        %v391 = vunpack.c.0.s8 %v390
        %v392 = vlaneseq
        %v393 = vshrl.u32 %v392, 7
        %v394 = vsub.s32 %v391, %v393
        %v395 = vrot.slane %v381, %v394
        %v396 = vcombine.low %v388, %v395
        %397 = vrot.lane.b32.xlu0 %v396, 4
        %v398 = vpop.permute.xlu0 %397
        %v399 = vrot.slane %v398, 6
        %vm400 = vcmask 31744
        %v401 = vsel %vm400, %v399, %v398
        %v404 = vmul.bf16 %v374, %v401
        %v405 = vmul.bf16 %v375, %v399
        %v408 = vcombine.high %v404, %v404
        %v410 = vunpack.c.l.s4 1983009808
        %v411 = vunpack.c.0.s8 %v410
        %v412 = vlaneseq
        %v413 = vshrl.u32 %v412, 7
        %v414 = vsub.s32 %v411, %v413
        %v415 = vrot.slane %v404, %v414
        %v417 = vunpack.c.l.s4 1983009808
        %v418 = vunpack.c.0.s8 %v417
        %v419 = vlaneseq
        %v420 = vshrl.u32 %v419, 7
        %v421 = vsub.s32 %v418, %v420
        %v422 = vrot.slane %v408, %v421
        %v424 = vunpack.c.l.s4 1983009808
        %v425 = vunpack.c.0.s8 %v424
        %v426 = vlaneseq
        %v427 = vshrl.u32 %v426, 7
        %v428 = vsub.s32 %v425, %v427
        %v429 = vrot.slane %v405, %v428
        %430 = vrot.lane.b32.xlu0 %v415, 124
        %v431 = vpop.permute.xlu0 %430
        %432 = vrot.lane.b32.xlu0 %v422, 124
        %v433 = vpop.permute.xlu0 %432
        %434 = vrot.lane.b32.xlu0 %v429, 124
        %v435 = vpop.permute.xlu0 %434
        %v436 = vrot.slane %v431, 4
        %v437 = vrot.slane %v433, 4
        %v438 = vrot.slane %v435, 4
        %v439 = vsel %vm364, %v436, %v437
        %vm440 = vcmask 1014784
        %v441 = vsel %vm440, %v431, %v439
        %v442 = vsel %vm364, %v437, %v438
        %v443 = vsel %vm440, %v433, %v442
        %446 = vst [vmem:[#allocation2 + $0x10] sm:$0x33] %v441
        %447 = vst [vmem:[#allocation2 + $0x18] sm:$0x33] %v443
        %v448 = vld [vmem:[%s196] sm:$0xff]
        %v449 = vld [vmem:[%s196 + $0x8] sm:$0x3]
        %450 = vrot.lane.b32.xlu0 %v305, 32
        %v451 = vpop.permute.xlu0 %450
        %v452 = vrot.slane %v451, 6
        %vm453 = vcmask 261120
        %v454 = vsel %vm453, %v452, %v451
        %v457 = vmul.bf16 %v448, %v454
        %v458 = vmul.bf16 %v449, %v452
        %v461 = vcombine.low %v457, %v457
        %v463 = vunpack.c.l.s4 1983009808
        %v464 = vunpack.c.0.s8 %v463
        %v465 = vlaneseq
        %v466 = vshrl.u32 %v465, 7
        %v467 = vsub.s32 %v464, %v466
        %v468 = vrot.slane %v461, %v467
        %v470 = vunpack.c.l.s4 1983009808
        %v471 = vunpack.c.0.s8 %v470
        %v472 = vlaneseq
        %v473 = vshrl.u32 %v472, 7
        %v474 = vsub.s32 %v471, %v473
        %v475 = vrot.slane %v457, %v474
        %v476 = vcombine.low %v458, %v458
        %v478 = vunpack.c.l.s4 1983009808
        %v479 = vunpack.c.0.s8 %v478
        %v480 = vlaneseq
        %v481 = vshrl.u32 %v480, 7
        %v482 = vsub.s32 %v479, %v481
        %v483 = vrot.slane %v476, %v482
        %484 = vrot.lane.b32.xlu0 %v468, 96
        %v485 = vpop.permute.xlu0 %484
        %486 = vrot.lane.b32.xlu0 %v475, 96
        %v487 = vpop.permute.xlu0 %486
        %488 = vrot.lane.b32.xlu0 %v483, 96
        %v489 = vpop.permute.xlu0 %488
        %v490 = vrot.slane %v485, 4
        %v491 = vrot.slane %v487, 4
        %v492 = vrot.slane %v489, 4
        %v493 = vsel %vm364, %v490, %v491
        %vm494 = vcmask 785408
        %v495 = vsel %vm494, %v485, %v493
        %v496 = vsel %vm364, %v491, %v492
        %v497 = vsel %vm494, %v487, %v496
        %500 = vst [vmem:[#allocation2 + $0x10] sm:$0xcc] %v495
        %501 = vst [vmem:[#allocation2 + $0x18] sm:$0xcc] %v497
        %v502 = vld [vmem:[%s196] sm:$0xff]
        %v503 = vld [vmem:[%s196 + $0x8] sm:$0x3]
        %v506 = vcombine.high %v502, %v502
        %v508 = vunpack.c.l.s4 1983009808
        %v509 = vunpack.c.0.s8 %v508
        %v510 = vlaneseq
        %v511 = vshrl.u32 %v510, 7
        %v512 = vsub.s32 %v509, %v511
        %v513 = vrot.slane %v502, %v512
        %v515 = vunpack.c.l.s4 1983009808
        %v516 = vunpack.c.0.s8 %v515
        %v517 = vlaneseq
        %v518 = vshrl.u32 %v517, 7
        %v519 = vsub.s32 %v516, %v518
        %v520 = vrot.slane %v506, %v519
        %v522 = vunpack.c.l.s4 1983009808
        %v523 = vunpack.c.0.s8 %v522
        %v524 = vlaneseq
        %v525 = vshrl.u32 %v524, 7
        %v526 = vsub.s32 %v523, %v525
        %v527 = vrot.slane %v503, %v526
        %528 = vrot.lane.b32.xlu0 %v513, 94
        %v529 = vpop.permute.xlu0 %528
        %530 = vrot.lane.b32.xlu0 %v520, 94
        %v531 = vpop.permute.xlu0 %530
        %532 = vrot.lane.b32.xlu0 %v527, 94
        %v533 = vpop.permute.xlu0 %532
        %v534 = vrot.slane %v529, 4
        %v535 = vrot.slane %v531, 4
        %v536 = vrot.slane %v533, 4
        %v537 = vsel %vm364, %v534, %v535
        %vm538 = vcmask 769024
        %v539 = vsel %vm538, %v529, %v537
        %v540 = vsel %vm364, %v535, %v536
        %v541 = vsel %vm538, %v531, %v540
        %544 = vst [vmem:[#allocation2 + $0x20] sm:$0x33] %v539
        %545 = vst [vmem:[#allocation2 + $0x28] sm:$0x33] %v541
        %v546 = vld [vmem:[%s196] sm:$0xff]
        %v547 = vld [vmem:[%s196 + $0x8] sm:$0x3]
        %548 = vrot.lane.b32.xlu0 %v396, 36
        %v549 = vpop.permute.xlu0 %548
        %v550 = vrot.slane %v549, 6
        %vm551 = vcmask 293888
        %v552 = vsel %vm551, %v550, %v549
        %v555 = vmul.bf16 %v546, %v552
        %v556 = vmul.bf16 %v547, %v550
        %v559 = vcombine.low %v555, %v555
        %v561 = vunpack.c.l.s4 1983009808
        %v562 = vunpack.c.0.s8 %v561
        %v563 = vlaneseq
        %v564 = vshrl.u32 %v563, 7
        %v565 = vsub.s32 %v562, %v564
        %v566 = vrot.slane %v559, %v565
        %v568 = vunpack.c.l.s4 1983009808
        %v569 = vunpack.c.0.s8 %v568
        %v570 = vlaneseq
        %v571 = vshrl.u32 %v570, 7
        %v572 = vsub.s32 %v569, %v571
        %v573 = vrot.slane %v555, %v572
        %v574 = vcombine.low %v556, %v556
        %v576 = vunpack.c.l.s4 1983009808
        %v577 = vunpack.c.0.s8 %v576
        %v578 = vlaneseq
        %v579 = vshrl.u32 %v578, 7
        %v580 = vsub.s32 %v577, %v579
        %v581 = vrot.slane %v574, %v580
        %582 = vrot.lane.b32.xlu0 %v566, 92
        %v583 = vpop.permute.xlu0 %582
        %584 = vrot.lane.b32.xlu0 %v573, 92
        %v585 = vpop.permute.xlu0 %584
        %586 = vrot.lane.b32.xlu0 %v581, 92
        %v587 = vpop.permute.xlu0 %586
        %v588 = vrot.slane %v583, 4
        %v589 = vrot.slane %v585, 4
        %v590 = vrot.slane %v587, 4
        %v591 = vsel %vm364, %v588, %v589
        %vm592 = vcmask 752640
        %v593 = vsel %vm592, %v583, %v591
        %v594 = vsel %vm364, %v589, %v590
        %v595 = vsel %vm592, %v585, %v594
        %598 = vst [vmem:[#allocation2 + $0x20] sm:$0xcc] %v593
        %599 = vst [vmem:[#allocation2 + $0x28] sm:$0xcc] %v595
        %v600 = vld [vmem:[%s196] sm:$0xff]
        %v601 = vld [vmem:[%s196 + $0x8] sm:$0x3]
        %602 = vrot.lane.b32.xlu0 %v305, 64
        %v603 = vpop.permute.xlu0 %602
        %v604 = vrot.slane %v603, 6
        %vm605 = vcmask 523264
        %v606 = vsel %vm605, %v604, %v603
        %v609 = vmul.bf16 %v600, %v606
        %v610 = vmul.bf16 %v601, %v604
        %v613 = vcombine.high %v609, %v609
        %v615 = vunpack.c.l.s4 1983009808
        %v616 = vunpack.c.0.s8 %v615
        %v617 = vlaneseq
        %v618 = vshrl.u32 %v617, 7
        %v619 = vsub.s32 %v616, %v618
        %v620 = vrot.slane %v609, %v619
        %v622 = vunpack.c.l.s4 1983009808
        %v623 = vunpack.c.0.s8 %v622
        %v624 = vlaneseq
        %v625 = vshrl.u32 %v624, 7
        %v626 = vsub.s32 %v623, %v625
        %v627 = vrot.slane %v613, %v626
        %v629 = vunpack.c.l.s4 1983009808
        %v630 = vunpack.c.0.s8 %v629
        %v631 = vlaneseq
        %v632 = vshrl.u32 %v631, 7
        %v633 = vsub.s32 %v630, %v632
        %v634 = vrot.slane %v610, %v633
        %635 = vrot.lane.b32.xlu0 %v620, 64
        %v636 = vpop.permute.xlu0 %635
        %637 = vrot.lane.b32.xlu0 %v627, 64
        %v638 = vpop.permute.xlu0 %637
        %639 = vrot.lane.b32.xlu0 %v634, 64
        %v640 = vpop.permute.xlu0 %639
        %v641 = vrot.slane %v636, 4
        %v642 = vrot.slane %v638, 4
        %v643 = vrot.slane %v640, 4
        %v644 = vsel %vm364, %v641, %v642
        %v645 = vsel %vm605, %v636, %v644
        %v646 = vsel %vm364, %v642, %v643
        %v647 = vsel %vm605, %v638, %v646
        %650 = vst [vmem:[#allocation2 + $0x30] sm:$0x33] %v645
        %651 = vst [vmem:[#allocation2 + $0x38] sm:$0x33] %v647
        %v652 = vld [vmem:[%s196] sm:$0xff]
        %v653 = vld [vmem:[%s196 + $0x8] sm:$0x3]
        %v656 = vcombine.low %v652, %v652
        %v658 = vunpack.c.l.s4 1983009808
        %v659 = vunpack.c.0.s8 %v658
        %v660 = vlaneseq
        %v661 = vshrl.u32 %v660, 7
        %v662 = vsub.s32 %v659, %v661
        %v663 = vrot.slane %v656, %v662
        %v665 = vunpack.c.l.s4 1983009808
        %v666 = vunpack.c.0.s8 %v665
        %v667 = vlaneseq
        %v668 = vshrl.u32 %v667, 7
        %v669 = vsub.s32 %v666, %v668
        %v670 = vrot.slane %v652, %v669
        %v671 = vcombine.low %v653, %v653
        %v673 = vunpack.c.l.s4 1983009808
        %v674 = vunpack.c.0.s8 %v673
        %v675 = vlaneseq
        %v676 = vshrl.u32 %v675, 7
        %v677 = vsub.s32 %v674, %v676
        %v678 = vrot.slane %v671, %v677
        %679 = vrot.lane.b32.xlu0 %v663, 62
        %v680 = vpop.permute.xlu0 %679
        %681 = vrot.lane.b32.xlu0 %v670, 62
        %v682 = vpop.permute.xlu0 %681
        %683 = vrot.lane.b32.xlu0 %v678, 62
        %v684 = vpop.permute.xlu0 %683
        %v685 = vrot.slane %v680, 4
        %v686 = vrot.slane %v682, 4
        %v687 = vrot.slane %v684, 4
        %v688 = vsel %vm364, %v685, %v686
        %vm689 = vcmask 506880
        %v690 = vsel %vm689, %v680, %v688
        %v691 = vsel %vm364, %v686, %v687
        %v692 = vsel %vm689, %v682, %v691
        %695 = vst [vmem:[#allocation2 + $0x30] sm:$0xcc] %v690
        %696 = vst [vmem:[#allocation2 + $0x38] sm:$0xcc] %v692
        %v697 = vld [vmem:[%s196] sm:$0xff]
        %v698 = vld [vmem:[%s196 + $0x8] sm:$0x3]
        %699 = vrot.lane.b32.xlu0 %v396, 68
        %v700 = vpop.permute.xlu0 %699
        %v701 = vrot.slane %v700, 6
        %vm702 = vcmask 556032
        %v703 = vsel %vm702, %v701, %v700
        %v706 = vmul.bf16 %v697, %v703
        %v707 = vmul.bf16 %v698, %v701
        %v710 = vcombine.high %v706, %v706
        %v712 = vunpack.c.l.s4 1983009808
        %v713 = vunpack.c.0.s8 %v712
        %v714 = vlaneseq
        %v715 = vshrl.u32 %v714, 7
        %v716 = vsub.s32 %v713, %v715
        %v717 = vrot.slane %v706, %v716
        %v719 = vunpack.c.l.s4 1983009808
        %v720 = vunpack.c.0.s8 %v719
        %v721 = vlaneseq
        %v722 = vshrl.u32 %v721, 7
        %v723 = vsub.s32 %v720, %v722
        %v724 = vrot.slane %v710, %v723
        %v726 = vunpack.c.l.s4 1983009808
        %v727 = vunpack.c.0.s8 %v726
        %v728 = vlaneseq
        %v729 = vshrl.u32 %v728, 7
        %v730 = vsub.s32 %v727, %v729
        %v731 = vrot.slane %v707, %v730
        %732 = vrot.lane.b32.xlu0 %v717, 60
        %v733 = vpop.permute.xlu0 %732
        %734 = vrot.lane.b32.xlu0 %v724, 60
        %v735 = vpop.permute.xlu0 %734
        %736 = vrot.lane.b32.xlu0 %v731, 60
        %v737 = vpop.permute.xlu0 %736
        %v738 = vrot.slane %v733, 4
        %v739 = vrot.slane %v735, 4
        %v740 = vrot.slane %v737, 4
        %v741 = vsel %vm364, %v738, %v739
        %vm742 = vcmask 490496
        %v743 = vsel %vm742, %v733, %v741
        %v744 = vsel %vm364, %v739, %v740
        %v745 = vsel %vm742, %v735, %v744
        %748 = vst [vmem:[#allocation2 + $0x40] sm:$0x33] %v743
        %749 = vst [vmem:[#allocation2 + $0x48] sm:$0x33] %v745
        %s750 = scalar_lea.vmem %s196, 10
        %v751 = vld [vmem:[%s750] sm:$0xff]
        %v752 = vmul.bf16 %v751, %v305
        %v754 = vcombine.low %v752, %v752
        %v756 = vunpack.c.l.s4 1983009808
        %v757 = vunpack.c.0.s8 %v756
        %v758 = vlaneseq
        %v759 = vshrl.u32 %v758, 7
        %v760 = vsub.s32 %v757, %v759
        %v761 = vrot.slane %v754, %v760
        %v763 = vunpack.c.l.s4 1983009808
        %v764 = vunpack.c.0.s8 %v763
        %v765 = vlaneseq
        %v766 = vshrl.u32 %v765, 7
        %v767 = vsub.s32 %v764, %v766
        %v768 = vrot.slane %v752, %v767
        %771 = vst [vmem:[#allocation2 + $0x40] sm:$0xcc] %v761
        %772 = vst [vmem:[#allocation2 + $0x48] sm:$0xcc] %v768
        %v773 = vld [vmem:[%s750] sm:$0xff]
        %v774 = vld [vmem:[%s750 + $0x8] sm:$0x3]
        %v777 = vcombine.high %v773, %v773
        %v779 = vunpack.c.l.s4 1983009808
        %v780 = vunpack.c.0.s8 %v779
        %v781 = vlaneseq
        %v782 = vshrl.u32 %v781, 7
        %v783 = vsub.s32 %v780, %v782
        %v784 = vrot.slane %v773, %v783
        %v786 = vunpack.c.l.s4 1983009808
        %v787 = vunpack.c.0.s8 %v786
        %v788 = vlaneseq
        %v789 = vshrl.u32 %v788, 7
        %v790 = vsub.s32 %v787, %v789
        %v791 = vrot.slane %v777, %v790
        %v793 = vunpack.c.l.s4 1983009808
        %v794 = vunpack.c.0.s8 %v793
        %v795 = vlaneseq
        %v796 = vshrl.u32 %v795, 7
        %v797 = vsub.s32 %v794, %v796
        %v798 = vrot.slane %v774, %v797
        %799 = vrot.lane.b32.xlu0 %v784, 126
        %v800 = vpop.permute.xlu0 %799
        %801 = vrot.lane.b32.xlu0 %v791, 126
        %v802 = vpop.permute.xlu0 %801
        %803 = vrot.lane.b32.xlu0 %v798, 126
        %v804 = vpop.permute.xlu0 %803
        %v805 = vrot.slane %v800, 4
        %v806 = vrot.slane %v802, 4
        %v807 = vrot.slane %v804, 4
        %v808 = vsel %vm364, %v805, %v806
        %v809 = vsel %vm366, %v800, %v808
        %v810 = vsel %vm364, %v806, %v807
        %v811 = vsel %vm366, %v802, %v810
        %814 = vst [vmem:[#allocation2 + $0x50] sm:$0x33] %v809
        %815 = vst [vmem:[#allocation2 + $0x58] sm:$0x33] %v811
        %v816 = vld [vmem:[%s750] sm:$0xff]
        %v817 = vld [vmem:[%s750 + $0x8] sm:$0x3]
        %v818 = vmul.bf16 %v816, %v401
        %v819 = vmul.bf16 %v817, %v399
        %v822 = vcombine.low %v818, %v818
        %v824 = vunpack.c.l.s4 1983009808
        %v825 = vunpack.c.0.s8 %v824
        %v826 = vlaneseq
        %v827 = vshrl.u32 %v826, 7
        %v828 = vsub.s32 %v825, %v827
        %v829 = vrot.slane %v822, %v828
        %v831 = vunpack.c.l.s4 1983009808
        %v832 = vunpack.c.0.s8 %v831
        %v833 = vlaneseq
        %v834 = vshrl.u32 %v833, 7
        %v835 = vsub.s32 %v832, %v834
        %v836 = vrot.slane %v818, %v835
        %v837 = vcombine.low %v819, %v819
        %v839 = vunpack.c.l.s4 1983009808
        %v840 = vunpack.c.0.s8 %v839
        %v841 = vlaneseq
        %v842 = vshrl.u32 %v841, 7
        %v843 = vsub.s32 %v840, %v842
        %v844 = vrot.slane %v837, %v843
        %845 = vrot.lane.b32.xlu0 %v829, 124
        %v846 = vpop.permute.xlu0 %845
        %847 = vrot.lane.b32.xlu0 %v836, 124
        %v848 = vpop.permute.xlu0 %847
        %849 = vrot.lane.b32.xlu0 %v844, 124
        %v850 = vpop.permute.xlu0 %849
        %v851 = vrot.slane %v846, 4
        %v852 = vrot.slane %v848, 4
        %v853 = vrot.slane %v850, 4
        %v854 = vsel %vm364, %v851, %v852
        %v855 = vsel %vm440, %v846, %v854
        %v856 = vsel %vm364, %v852, %v853
        %v857 = vsel %vm440, %v848, %v856
        %860 = vst [vmem:[#allocation2 + $0x50] sm:$0xcc] %v855
        %861 = vst [vmem:[#allocation2 + $0x58] sm:$0xcc] %v857
        %v862 = vld [vmem:[%s750] sm:$0xff]
        %v863 = vld [vmem:[%s750 + $0x8] sm:$0x3]
        %v864 = vmul.bf16 %v862, %v454
        %v865 = vmul.bf16 %v863, %v452
        %v868 = vcombine.high %v864, %v864
        %v870 = vunpack.c.l.s4 1983009808
        %v871 = vunpack.c.0.s8 %v870
        %v872 = vlaneseq
        %v873 = vshrl.u32 %v872, 7
        %v874 = vsub.s32 %v871, %v873
        %v875 = vrot.slane %v864, %v874
        %v877 = vunpack.c.l.s4 1983009808
        %v878 = vunpack.c.0.s8 %v877
        %v879 = vlaneseq
        %v880 = vshrl.u32 %v879, 7
        %v881 = vsub.s32 %v878, %v880
        %v882 = vrot.slane %v868, %v881
        %v884 = vunpack.c.l.s4 1983009808
        %v885 = vunpack.c.0.s8 %v884
        %v886 = vlaneseq
        %v887 = vshrl.u32 %v886, 7
        %v888 = vsub.s32 %v885, %v887
        %v889 = vrot.slane %v865, %v888
        %890 = vrot.lane.b32.xlu0 %v875, 96
        %v891 = vpop.permute.xlu0 %890
        %892 = vrot.lane.b32.xlu0 %v882, 96
        %v893 = vpop.permute.xlu0 %892
        %894 = vrot.lane.b32.xlu0 %v889, 96
        %v895 = vpop.permute.xlu0 %894
        %v896 = vrot.slane %v891, 4
        %v897 = vrot.slane %v893, 4
        %v898 = vrot.slane %v895, 4
        %v899 = vsel %vm364, %v896, %v897
        %v900 = vsel %vm494, %v891, %v899
        %v901 = vsel %vm364, %v897, %v898
        %v902 = vsel %vm494, %v893, %v901
        %905 = vst [vmem:[#allocation2 + $0x60] sm:$0x33] %v900
        %906 = vst [vmem:[#allocation2 + $0x68] sm:$0x33] %v902
        %v907 = vld [vmem:[%s750] sm:$0xff]
        %v908 = vld [vmem:[%s750 + $0x8] sm:$0x3]
        %v911 = vcombine.low %v907, %v907
        %v913 = vunpack.c.l.s4 1983009808
        %v914 = vunpack.c.0.s8 %v913
        %v915 = vlaneseq
        %v916 = vshrl.u32 %v915, 7
        %v917 = vsub.s32 %v914, %v916
        %v918 = vrot.slane %v911, %v917
        %v920 = vunpack.c.l.s4 1983009808
        %v921 = vunpack.c.0.s8 %v920
        %v922 = vlaneseq
        %v923 = vshrl.u32 %v922, 7
        %v924 = vsub.s32 %v921, %v923
        %v925 = vrot.slane %v907, %v924
        %v926 = vcombine.low %v908, %v908
        %v928 = vunpack.c.l.s4 1983009808
        %v929 = vunpack.c.0.s8 %v928
        %v930 = vlaneseq
        %v931 = vshrl.u32 %v930, 7
        %v932 = vsub.s32 %v929, %v931
        %v933 = vrot.slane %v926, %v932
        %934 = vrot.lane.b32.xlu0 %v918, 94
        %v935 = vpop.permute.xlu0 %934
        %936 = vrot.lane.b32.xlu0 %v925, 94
        %v937 = vpop.permute.xlu0 %936
        %938 = vrot.lane.b32.xlu0 %v933, 94
        %v939 = vpop.permute.xlu0 %938
        %v940 = vrot.slane %v935, 4
        %v941 = vrot.slane %v937, 4
        %v942 = vrot.slane %v939, 4
        %v943 = vsel %vm364, %v940, %v941
        %v944 = vsel %vm538, %v935, %v943
        %v945 = vsel %vm364, %v941, %v942
        %v946 = vsel %vm538, %v937, %v945
        %949 = vst [vmem:[#allocation2 + $0x60] sm:$0xcc] %v944
        %950 = vst [vmem:[#allocation2 + $0x68] sm:$0xcc] %v946
        %v951 = vld [vmem:[%s750] sm:$0xff]
        %v952 = vld [vmem:[%s750 + $0x8] sm:$0x3]
        %v953 = vmul.bf16 %v951, %v552
        %v954 = vmul.bf16 %v952, %v550
        %v957 = vcombine.high %v953, %v953
        %v959 = vunpack.c.l.s4 1983009808
        %v960 = vunpack.c.0.s8 %v959
        %v961 = vlaneseq
        %v962 = vshrl.u32 %v961, 7
        %v963 = vsub.s32 %v960, %v962
        %v964 = vrot.slane %v953, %v963
        %v966 = vunpack.c.l.s4 1983009808
        %v967 = vunpack.c.0.s8 %v966
        %v968 = vlaneseq
        %v969 = vshrl.u32 %v968, 7
        %v970 = vsub.s32 %v967, %v969
        %v971 = vrot.slane %v957, %v970
        %v973 = vunpack.c.l.s4 1983009808
        %v974 = vunpack.c.0.s8 %v973
        %v975 = vlaneseq
        %v976 = vshrl.u32 %v975, 7
        %v977 = vsub.s32 %v974, %v976
        %v978 = vrot.slane %v954, %v977
        %979 = vrot.lane.b32.xlu0 %v964, 92
        %v980 = vpop.permute.xlu0 %979
        %981 = vrot.lane.b32.xlu0 %v971, 92
        %v982 = vpop.permute.xlu0 %981
        %983 = vrot.lane.b32.xlu0 %v978, 92
        %v984 = vpop.permute.xlu0 %983
        %v985 = vrot.slane %v980, 4
        %v986 = vrot.slane %v982, 4
        %v987 = vrot.slane %v984, 4
        %v988 = vsel %vm364, %v985, %v986
        %v989 = vsel %vm592, %v980, %v988
        %v990 = vsel %vm364, %v986, %v987
        %v991 = vsel %vm592, %v982, %v990
        %994 = vst [vmem:[#allocation2 + $0x70] sm:$0x33] %v989
        %995 = vst [vmem:[#allocation2 + $0x78] sm:$0x33] %v991
        %v996 = vld [vmem:[%s750] sm:$0xff]
        %v997 = vld [vmem:[%s750 + $0x8] sm:$0x3]
        %v998 = vmul.bf16 %v996, %v606
        %v999 = vmul.bf16 %v997, %v604
        %v1002 = vcombine.low %v998, %v998
        %v1004 = vunpack.c.l.s4 1983009808
        %v1005 = vunpack.c.0.s8 %v1004
        %v1006 = vlaneseq
        %v1007 = vshrl.u32 %v1006, 7
        %v1008 = vsub.s32 %v1005, %v1007
        %v1009 = vrot.slane %v1002, %v1008
        %v1011 = vunpack.c.l.s4 1983009808
        %v1012 = vunpack.c.0.s8 %v1011
        %v1013 = vlaneseq
        %v1014 = vshrl.u32 %v1013, 7
        %v1015 = vsub.s32 %v1012, %v1014
        %v1016 = vrot.slane %v998, %v1015
        %v1017 = vcombine.low %v999, %v999
        %v1019 = vunpack.c.l.s4 1983009808
        %v1020 = vunpack.c.0.s8 %v1019
        %v1021 = vlaneseq
        %v1022 = vshrl.u32 %v1021, 7
        %v1023 = vsub.s32 %v1020, %v1022
        %v1024 = vrot.slane %v1017, %v1023
        %1025 = vrot.lane.b32.xlu0 %v1009, 64
        %v1026 = vpop.permute.xlu0 %1025
        %1027 = vrot.lane.b32.xlu0 %v1016, 64
        %v1028 = vpop.permute.xlu0 %1027
        %1029 = vrot.lane.b32.xlu0 %v1024, 64
        %v1030 = vpop.permute.xlu0 %1029
        %v1031 = vrot.slane %v1026, 4
        %v1032 = vrot.slane %v1028, 4
        %v1033 = vrot.slane %v1030, 4
        %v1034 = vsel %vm364, %v1031, %v1032
        %v1035 = vsel %vm605, %v1026, %v1034
        %v1036 = vsel %vm364, %v1032, %v1033
        %v1037 = vsel %vm605, %v1028, %v1036
        %1040 = vst [vmem:[#allocation2 + $0x70] sm:$0xcc] %v1035
        %1041 = vst [vmem:[#allocation2 + $0x78] sm:$0xcc] %v1037
        %v1042 = vld [vmem:[%s750] sm:$0xff]
        %v1043 = vld [vmem:[%s750 + $0x8] sm:$0x3]
        %v1046 = vcombine.high %v1042, %v1042
        %v1048 = vunpack.c.l.s4 1983009808
        %v1049 = vunpack.c.0.s8 %v1048
        %v1050 = vlaneseq
        %v1051 = vshrl.u32 %v1050, 7
        %v1052 = vsub.s32 %v1049, %v1051
        %v1053 = vrot.slane %v1042, %v1052
        %v1055 = vunpack.c.l.s4 1983009808
        %v1056 = vunpack.c.0.s8 %v1055
        %v1057 = vlaneseq
        %v1058 = vshrl.u32 %v1057, 7
        %v1059 = vsub.s32 %v1056, %v1058
        %v1060 = vrot.slane %v1046, %v1059
        %v1062 = vunpack.c.l.s4 1983009808
        %v1063 = vunpack.c.0.s8 %v1062
        %v1064 = vlaneseq
        %v1065 = vshrl.u32 %v1064, 7
        %v1066 = vsub.s32 %v1063, %v1065
        %v1067 = vrot.slane %v1043, %v1066
        %1068 = vrot.lane.b32.xlu0 %v1053, 62
        %v1069 = vpop.permute.xlu0 %1068
        %1070 = vrot.lane.b32.xlu0 %v1060, 62
        %v1071 = vpop.permute.xlu0 %1070
        %1072 = vrot.lane.b32.xlu0 %v1067, 62
        %v1073 = vpop.permute.xlu0 %1072
        %v1074 = vrot.slane %v1069, 4
        %v1075 = vrot.slane %v1071, 4
        %v1076 = vrot.slane %v1073, 4
        %v1077 = vsel %vm364, %v1074, %v1075
        %v1078 = vsel %vm689, %v1069, %v1077
        %v1079 = vsel %vm364, %v1075, %v1076
        %v1080 = vsel %vm689, %v1071, %v1079
        %1083 = vst [vmem:[#allocation2 + $0x80] sm:$0x33] %v1078
        %1084 = vst [vmem:[#allocation2 + $0x88] sm:$0x33] %v1080
        %v1085 = vld [vmem:[%s750] sm:$0xff]
        %v1086 = vld [vmem:[%s750 + $0x8] sm:$0x3]
        %v1087 = vmul.bf16 %v1085, %v703
        %v1088 = vmul.bf16 %v1086, %v701
        %v1091 = vcombine.low %v1087, %v1087
        %v1093 = vunpack.c.l.s4 1983009808
        %v1094 = vunpack.c.0.s8 %v1093
        %v1095 = vlaneseq
        %v1096 = vshrl.u32 %v1095, 7
        %v1097 = vsub.s32 %v1094, %v1096
        %v1098 = vrot.slane %v1091, %v1097
        %v1100 = vunpack.c.l.s4 1983009808
        %v1101 = vunpack.c.0.s8 %v1100
        %v1102 = vlaneseq
        %v1103 = vshrl.u32 %v1102, 7
        %v1104 = vsub.s32 %v1101, %v1103
        %v1105 = vrot.slane %v1087, %v1104
        %v1106 = vcombine.low %v1088, %v1088
        %v1108 = vunpack.c.l.s4 1983009808
        %v1109 = vunpack.c.0.s8 %v1108
        %v1110 = vlaneseq
        %v1111 = vshrl.u32 %v1110, 7
        %v1112 = vsub.s32 %v1109, %v1111
        %v1113 = vrot.slane %v1106, %v1112
        %1114 = vrot.lane.b32.xlu0 %v1098, 60
        %v1115 = vpop.permute.xlu0 %1114
        %1116 = vrot.lane.b32.xlu0 %v1105, 60
        %v1117 = vpop.permute.xlu0 %1116
        %1118 = vrot.lane.b32.xlu0 %v1113, 60
        %v1119 = vpop.permute.xlu0 %1118
        %v1120 = vrot.slane %v1115, 4
        %v1121 = vrot.slane %v1117, 4
        %v1122 = vrot.slane %v1119, 4
        %v1123 = vsel %vm364, %v1120, %v1121
        %v1124 = vsel %vm742, %v1115, %v1123
        %v1125 = vsel %vm364, %v1121, %v1122
        %v1126 = vsel %vm742, %v1117, %v1125
        %1129 = vst [vmem:[#allocation2 + $0x80] sm:$0xcc] %v1124
        %1130 = vst [vmem:[#allocation2 + $0x88] sm:$0xcc] %v1126
        %v1131 = vld [vmem:[%s1] sm:$0xf]
        %v1132 = vld [vmem:[#allocation2] sm:$0xff]
        %v1133 = vld [vmem:[#allocation2 + $0x8] sm:$0xff]
        %v1134 = vld [vmem:[#allocation2 + $0x10] sm:$0xff]
        %v1135 = vld [vmem:[#allocation2 + $0x18] sm:$0xff]
        %v1136 = vld [vmem:[#allocation2 + $0x20] sm:$0xff]
        %v1137 = vld [vmem:[#allocation2 + $0x28] sm:$0xff]
        %v1138 = vld [vmem:[#allocation2 + $0x30] sm:$0xff]
        %v1139 = vld [vmem:[#allocation2 + $0x38] sm:$0xff]
        %v1140 = vld [vmem:[#allocation2 + $0x40] sm:$0xff]
        %v1141 = vld [vmem:[#allocation2 + $0x48] sm:$0xff]
        %v1142 = vld [vmem:[#allocation2 + $0x50] sm:$0xff]
        %v1143 = vld [vmem:[#allocation2 + $0x58] sm:$0xff]
        %v1144 = vld [vmem:[#allocation2 + $0x60] sm:$0xff]
        %v1145 = vld [vmem:[#allocation2 + $0x68] sm:$0xff]
        %v1146 = vld [vmem:[#allocation2 + $0x70] sm:$0xff]
        %v1147 = vld [vmem:[#allocation2 + $0x78] sm:$0xff]
        %v1148 = vld [vmem:[#allocation2 + $0x80] sm:$0xff]
        %v1149 = vld [vmem:[#allocation2 + $0x88] sm:$0xff]
        %v1168 = vunpack.c.l.b16 %v1132
        %v1169 = vunpack.c.h.b16 %v1132
        %v1170 = vunpack.c.l.b16 %v1133
        %v1171 = vunpack.c.h.b16 %v1133
        %v1172 = vunpack.c.l.b16 %v1134
        %v1173 = vunpack.c.h.b16 %v1134
        %v1174 = vunpack.c.l.b16 %v1135
        %v1175 = vunpack.c.h.b16 %v1135
        %v1176 = vunpack.c.l.b16 %v1136
        %v1177 = vunpack.c.h.b16 %v1136
        %v1178 = vunpack.c.l.b16 %v1137
        %v1179 = vunpack.c.h.b16 %v1137
        %v1180 = vunpack.c.l.b16 %v1138
        %v1181 = vunpack.c.h.b16 %v1138
        %v1182 = vunpack.c.l.b16 %v1139
        %v1183 = vunpack.c.h.b16 %v1139
        %v1184 = vunpack.c.l.b16 %v1140
        %v1185 = vunpack.c.h.b16 %v1140
        %v1186 = vunpack.c.l.b16 %v1141
        %v1187 = vunpack.c.h.b16 %v1141
        %v1188 = vunpack.c.l.b16 %v1142
        %v1189 = vunpack.c.h.b16 %v1142
        %v1190 = vunpack.c.l.b16 %v1143
        %v1191 = vunpack.c.h.b16 %v1143
        %v1192 = vunpack.c.l.b16 %v1144
        %v1193 = vunpack.c.h.b16 %v1144
        %v1194 = vunpack.c.l.b16 %v1145
        %v1195 = vunpack.c.h.b16 %v1145
        %v1196 = vunpack.c.l.b16 %v1146
        %v1197 = vunpack.c.h.b16 %v1146
        %v1198 = vunpack.c.l.b16 %v1147
        %v1199 = vunpack.c.h.b16 %v1147
        %v1200 = vunpack.c.l.b16 %v1148
        %v1201 = vunpack.c.h.b16 %v1148
        %v1202 = vunpack.c.l.b16 %v1149
        %v1203 = vunpack.c.h.b16 %v1149
        %v1204 = vpack.c.b16 %v1172, %v1168
        %v1205 = vpack.c.b16 %v1173, %v1169
        %v1206 = vpack.c.b16 %v1174, %v1170
        %v1207 = vpack.c.b16 %v1175, %v1171
        %v1208 = vpack.c.b16 %v1180, %v1176
        %v1209 = vpack.c.b16 %v1181, %v1177
        %v1210 = vpack.c.b16 %v1182, %v1178
        %v1211 = vpack.c.b16 %v1183, %v1179
        %v1212 = vpack.c.b16 %v1188, %v1184
        %v1213 = vpack.c.b16 %v1189, %v1185
        %v1214 = vpack.c.b16 %v1190, %v1186
        %v1215 = vpack.c.b16 %v1191, %v1187
        %v1216 = vpack.c.b16 %v1196, %v1192
        %v1217 = vpack.c.b16 %v1197, %v1193
        %v1218 = vpack.c.b16 %v1198, %v1194
        %v1219 = vpack.c.b16 %v1199, %v1195
        %v1220 = vpack.c.b16 %v1200, %v1200
        %v1221 = vpack.c.b16 %v1201, %v1201
        %v1222 = vpack.c.b16 %v1202, %v1202
        %v1223 = vpack.c.b16 %v1203, %v1203
        %vm1240 = vcmask 588800
        %v1242 = vsel %vm1240, %v1131, 0
        %vm1244 = vcmask 1043456
        %v1246 = vsel %vm1244, %v1220, 0
        %v1249 = vsel %vm1244, %v1221, 0
        %v1252 = vsel %vm1244, %v1222, 0
        %v1255 = vsel %vm1244, %v1223, 0
        %1257 = vmatprep.subr.bf16.mxu0 %v1205
        %1258 = vmatpush1.bf16.msra.mxu0 %v1204
        %1259 = vmatprep.subr.bf16.mxu0 %v1209
        %1260 = vmatpush1.bf16.msra.mxu0 %v1208
        %1261 = vmatprep.subr.bf16.mxu0 %v1213
        %1262 = vmatpush1.bf16.msra.mxu0 %v1212
        %1263 = vmatprep.subr.bf16.mxu0 %v1217
        %1264 = vmatpush1.bf16.msra.mxu0 %v1216
        %1265 = vmatprep.subr.bf16.mxu0 %v1249
        %1266 = vmatpush1.bf16.msra.mxu0 %v1246
        %1267 = vmatprep.subr.bf16.mxu0 0
        %1268 = vmatpush1.bf16.msra.mxu0 0
        %1269 = vmatprep.subr.bf16.mxu0 0
        %1270 = vmatpush1.bf16.msra.mxu0 0
        %1271 = vmatprep.subr.bf16.mxu0 0
        %1272 = vmatpush1.bf16.msra.mxu0 0
        %1273 = vmatprep.subr.bf16.mxu0 0
        %1274 = vmatpush1.bf16.msra.mxu0 0
        %1275 = vmatprep.subr.bf16.mxu0 0
        %1276 = vmatpush1.bf16.msra.mxu0 0
        %1277 = vmatprep.subr.bf16.mxu0 0
        %1278 = vmatpush1.bf16.msra.mxu0 0
        %1279 = vmatprep.subr.bf16.mxu0 0
        %1280 = vmatpush1.bf16.msra.mxu0 0
        %1281 = vmatprep.subr.bf16.mxu0 0
        %1282 = vmatpush1.bf16.msra.mxu0 0
        %1283 = vmatprep.subr.bf16.mxu0 0
        %1284 = vmatpush1.bf16.msra.mxu0 0
        %1285 = vmatprep.subr.bf16.mxu0 0
        %1286 = vmatpush1.bf16.msra.mxu0 0
        %1287 = vmatprep.subr.bf16.mxu0 0
        %1288 = vmatpush1.bf16.msra.mxu0 0
        %1289 = vmatprep.mubr.bf16.mxu0 0
        %1290 = vmatmul.mubr.bf16.gmra.mrb[0].mxu0 %v1242
        %v1291 = vpop.f32.mrb[0].mxu0
        %v1292 = vadd.f32 0.0, %v1291
        %v1293 = vpop.f32.mrb[0].mxu0
        %v1294 = vadd.f32 0.0, %v1293
        %v1295 = vpop.f32.mrb[0].mxu0
        %v1296 = vpop.f32.mrb[0].mxu0
        %1297 = vdwg.mxu0
        %1298 = vmatprep.subr.bf16.mxu0 %v1207
        %1299 = vmatpush1.bf16.msra.mxu0 %v1206
        %1300 = vmatprep.subr.bf16.mxu0 %v1211
        %1301 = vmatpush1.bf16.msra.mxu0 %v1210
        %1302 = vmatprep.subr.bf16.mxu0 %v1215
        %1303 = vmatpush1.bf16.msra.mxu0 %v1214
        %1304 = vmatprep.subr.bf16.mxu0 %v1219
        %1305 = vmatpush1.bf16.msra.mxu0 %v1218
        %1306 = vmatprep.subr.bf16.mxu0 %v1255
        %1307 = vmatpush1.bf16.msra.mxu0 %v1252
        %1308 = vmatprep.subr.bf16.mxu0 0
        %1309 = vmatpush1.bf16.msra.mxu0 0
        %1310 = vmatprep.subr.bf16.mxu0 0
        %1311 = vmatpush1.bf16.msra.mxu0 0
        %1312 = vmatprep.subr.bf16.mxu0 0
        %1313 = vmatpush1.bf16.msra.mxu0 0
        %1314 = vmatprep.subr.bf16.mxu0 0
        %1315 = vmatpush1.bf16.msra.mxu0 0
        %1316 = vmatprep.subr.bf16.mxu0 0
        %1317 = vmatpush1.bf16.msra.mxu0 0
        %1318 = vmatprep.subr.bf16.mxu0 0
        %1319 = vmatpush1.bf16.msra.mxu0 0
        %1320 = vmatprep.subr.bf16.mxu0 0
        %1321 = vmatpush1.bf16.msra.mxu0 0
        %1322 = vmatprep.subr.bf16.mxu0 0
        %1323 = vmatpush1.bf16.msra.mxu0 0
        %1324 = vmatprep.subr.bf16.mxu0 0
        %1325 = vmatpush1.bf16.msra.mxu0 0
        %1326 = vmatprep.subr.bf16.mxu0 0
        %1327 = vmatpush1.bf16.msra.mxu0 0
        %1328 = vmatprep.subr.bf16.mxu0 0
        %1329 = vmatpush1.bf16.msra.mxu0 0
        %1330 = vmatprep.mubr.bf16.mxu0 0
        %1331 = vmatmul.mubr.bf16.gmra.mrb[0].mxu0 %v1242
        %v1332 = vpop.f32.mrb[0].mxu0
        %v1333 = vadd.f32 0.0, %v1332
        %v1334 = vpop.f32.mrb[0].mxu0
        %v1335 = vadd.f32 0.0, %v1334
        %v1336 = vpop.f32.mrb[0].mxu0
        %v1337 = vpop.f32.mrb[0].mxu0
        %1338 = vdwg.mxu0
        %v1339 = vld [vmem:[%s2] sm:$0xf]
        %v1340 = vld [vmem:[%s2 + $0x4] sm:$0xf]
        %v1341 = vadd.f32 %v1292, %v1339
        %v1344 = vunpack.c.l.s4 1966171168
        %v1345 = vunpack.c.0.s8 %v1344
        %v1346 = vlaneseq
        %v1347 = vshrl.u32 %v1346, 7
        %v1348 = vsub.s32 %v1345, %v1347
        %v1349 = vrot.slane %v1341, %v1348
        %v1350 = vcombine.high %v1349, %v1349
        %v1352 = vunpack.c.l.s4 1966171168
        %v1353 = vunpack.c.0.s8 %v1352
        %v1354 = vlaneseq
        %v1355 = vshrl.u32 %v1354, 7
        %v1356 = vsub.s32 %v1353, %v1355
        %v1357 = vrot.slane %v1349, %v1356
        %v1359 = vunpack.c.l.s4 1966171168
        %v1360 = vunpack.c.0.s8 %v1359
        %v1361 = vlaneseq
        %v1362 = vshrl.u32 %v1361, 7
        %v1363 = vsub.s32 %v1360, %v1362
        %v1364 = vrot.slane %v1350, %v1363
        %v1365 = vcombine.high %v1357, %v1357
        %v1366 = vcombine.high %v1364, %v1364
        %vm1371 = vcmask 253952
        %1372 = vst.msk [vmem:[%s187] sm:$0x1] %vm1371, %v1357
        %1373 = vst.msk [vmem:[%s187 + $0x20] sm:$0x1] %vm1371, %v1364
        %1374 = vst.msk [vmem:[%s187 + $0x40] sm:$0x1] %vm1371, %v1365
        %1375 = vst.msk [vmem:[%s187 + $0x60] sm:$0x1] %vm1371, %v1366
        %v1377 = vrot.slane %v1340, 4
        %v1379 = vadd.f32 %v1292, %v1377
        %v1381 = vcombine.high %v1379, %v1379
        %v1383 = vunpack.c.l.s4 1966171168
        %v1384 = vunpack.c.0.s8 %v1383
        %v1385 = vlaneseq
        %v1386 = vshrl.u32 %v1385, 7
        %v1387 = vsub.s32 %v1384, %v1386
        %v1388 = vrot.slane %v1381, %v1387
        %v1389 = vcombine.high %v1388, %v1388
        %v1391 = vunpack.c.l.s4 1966171168
        %v1392 = vunpack.c.0.s8 %v1391
        %v1393 = vlaneseq
        %v1394 = vshrl.u32 %v1393, 7
        %v1395 = vsub.s32 %v1392, %v1394
        %v1396 = vrot.slane %v1388, %v1395
        %v1398 = vunpack.c.l.s4 1966171168
        %v1399 = vunpack.c.0.s8 %v1398
        %v1400 = vlaneseq
        %v1401 = vshrl.u32 %v1400, 7
        %v1402 = vsub.s32 %v1399, %v1401
        %v1403 = vrot.slane %v1389, %v1402
        %v1404 = vcombine.high %v1396, %v1396
        %v1405 = vcombine.high %v1403, %v1403
        %1410 = vst.msk [vmem:[%s187 + $0x1] sm:$0x1] %vm1371, %v1396
        %1411 = vst.msk [vmem:[%s187 + $0x21] sm:$0x1] %vm1371, %v1403
        %1412 = vst.msk [vmem:[%s187 + $0x41] sm:$0x1] %vm1371, %v1404
        %1413 = vst.msk [vmem:[%s187 + $0x61] sm:$0x1] %vm1371, %v1405
        %1415 = vrot.lane.b32.xlu0 %v1339, 32
        %v1416 = vpop.permute.xlu0 %1415
        %v1418 = vadd.f32 %v1292, %v1416
        %v1421 = vunpack.c.l.s4 1966171168
        %v1422 = vunpack.c.0.s8 %v1421
        %v1423 = vlaneseq
        %v1424 = vshrl.u32 %v1423, 7
        %v1425 = vsub.s32 %v1422, %v1424
        %v1426 = vrot.slane %v1418, %v1425
        %v1427 = vcombine.high %v1426, %v1426
        %v1429 = vunpack.c.l.s4 1966171168
        %v1430 = vunpack.c.0.s8 %v1429
        %v1431 = vlaneseq
        %v1432 = vshrl.u32 %v1431, 7
        %v1433 = vsub.s32 %v1430, %v1432
        %v1434 = vrot.slane %v1426, %v1433
        %v1436 = vunpack.c.l.s4 1966171168
        %v1437 = vunpack.c.0.s8 %v1436
        %v1438 = vlaneseq
        %v1439 = vshrl.u32 %v1438, 7
        %v1440 = vsub.s32 %v1437, %v1439
        %v1441 = vrot.slane %v1427, %v1440
        %v1442 = vcombine.high %v1434, %v1434
        %v1443 = vcombine.high %v1441, %v1441
        %v1444 = vlaneseq
        %v1445 = vshrl.u32 %v1444, 7
        %v1446 = vsub.s32 0, %v1445
        %v1447 = vrot.slane %v1434, %v1446
        %v1448 = vlaneseq
        %v1449 = vshrl.u32 %v1448, 7
        %v1450 = vsub.s32 0, %v1449
        %v1451 = vrot.slane %v1441, %v1450
        %v1452 = vlaneseq
        %v1453 = vshrl.u32 %v1452, 7
        %v1454 = vsub.s32 0, %v1453
        %v1455 = vrot.slane %v1442, %v1454
        %v1456 = vlaneseq
        %v1457 = vshrl.u32 %v1456, 7
        %v1458 = vsub.s32 0, %v1457
        %v1459 = vrot.slane %v1443, %v1458
        %1460 = vrot.lane.b32.xlu0 %v1447, 96
        %v1461 = vpop.permute.xlu0 %1460
        %1462 = vrot.lane.b32.xlu0 %v1451, 96
        %v1463 = vpop.permute.xlu0 %1462
        %1464 = vrot.lane.b32.xlu0 %v1455, 96
        %v1465 = vpop.permute.xlu0 %1464
        %1466 = vrot.lane.b32.xlu0 %v1459, 96
        %v1467 = vpop.permute.xlu0 %1466
        %s1472 = scalar_lea.vmem %s187, 2 [#allocation3]
        %1473 = vst.msk [vmem:[%s1472] sm:$0x1] %vm1371, %v1461
        %1474 = vst.msk [vmem:[%s1472 + $0x20] sm:$0x1] %vm1371, %v1463
        %1475 = vst.msk [vmem:[%s1472 + $0x40] sm:$0x1] %vm1371, %v1465
        %1476 = vst.msk [vmem:[%s1472 + $0x60] sm:$0x1] %vm1371, %v1467
        %1477 = vrot.lane.b32.xlu0 %v1377, 32
        %v1478 = vpop.permute.xlu0 %1477
        %v1480 = vadd.f32 %v1292, %v1478
        %v1482 = vcombine.high %v1480, %v1480
        %v1484 = vunpack.c.l.s4 1966171168
        %v1485 = vunpack.c.0.s8 %v1484
        %v1486 = vlaneseq
        %v1487 = vshrl.u32 %v1486, 7
        %v1488 = vsub.s32 %v1485, %v1487
        %v1489 = vrot.slane %v1482, %v1488
        %v1490 = vcombine.high %v1489, %v1489
        %v1492 = vunpack.c.l.s4 1966171168
        %v1493 = vunpack.c.0.s8 %v1492
        %v1494 = vlaneseq
        %v1495 = vshrl.u32 %v1494, 7
        %v1496 = vsub.s32 %v1493, %v1495
        %v1497 = vrot.slane %v1489, %v1496
        %v1499 = vunpack.c.l.s4 1966171168
        %v1500 = vunpack.c.0.s8 %v1499
        %v1501 = vlaneseq
        %v1502 = vshrl.u32 %v1501, 7
        %v1503 = vsub.s32 %v1500, %v1502
        %v1504 = vrot.slane %v1490, %v1503
        %v1505 = vcombine.high %v1497, %v1497
        %v1506 = vcombine.high %v1504, %v1504
        %v1507 = vlaneseq
        %v1508 = vshrl.u32 %v1507, 7
        %v1509 = vsub.s32 0, %v1508
        %v1510 = vrot.slane %v1497, %v1509
        %v1511 = vlaneseq
        %v1512 = vshrl.u32 %v1511, 7
        %v1513 = vsub.s32 0, %v1512
        %v1514 = vrot.slane %v1504, %v1513
        %v1515 = vlaneseq
        %v1516 = vshrl.u32 %v1515, 7
        %v1517 = vsub.s32 0, %v1516
        %v1518 = vrot.slane %v1505, %v1517
        %v1519 = vlaneseq
        %v1520 = vshrl.u32 %v1519, 7
        %v1521 = vsub.s32 0, %v1520
        %v1522 = vrot.slane %v1506, %v1521
        %1523 = vrot.lane.b32.xlu0 %v1510, 96
        %v1524 = vpop.permute.xlu0 %1523
        %1525 = vrot.lane.b32.xlu0 %v1514, 96
        %v1526 = vpop.permute.xlu0 %1525
        %1527 = vrot.lane.b32.xlu0 %v1518, 96
        %v1528 = vpop.permute.xlu0 %1527
        %1529 = vrot.lane.b32.xlu0 %v1522, 96
        %v1530 = vpop.permute.xlu0 %1529
        %1535 = vst.msk [vmem:[%s1472 + $0x1] sm:$0x1] %vm1371, %v1524
        %1536 = vst.msk [vmem:[%s1472 + $0x21] sm:$0x1] %vm1371, %v1526
        %1537 = vst.msk [vmem:[%s1472 + $0x41] sm:$0x1] %vm1371, %v1528
        %1538 = vst.msk [vmem:[%s1472 + $0x61] sm:$0x1] %vm1371, %v1530
        %1539 = vrot.lane.b32.xlu0 %v1339, 64
        %v1540 = vpop.permute.xlu0 %1539
        %v1542 = vadd.f32 %v1292, %v1540
        %v1545 = vunpack.c.l.s4 1966171168
        %v1546 = vunpack.c.0.s8 %v1545
        %v1547 = vlaneseq
        %v1548 = vshrl.u32 %v1547, 7
        %v1549 = vsub.s32 %v1546, %v1548
        %v1550 = vrot.slane %v1542, %v1549
        %v1551 = vcombine.high %v1550, %v1550
        %v1553 = vunpack.c.l.s4 1966171168
        %v1554 = vunpack.c.0.s8 %v1553
        %v1555 = vlaneseq
        %v1556 = vshrl.u32 %v1555, 7
        %v1557 = vsub.s32 %v1554, %v1556
        %v1558 = vrot.slane %v1550, %v1557
        %v1560 = vunpack.c.l.s4 1966171168
        %v1561 = vunpack.c.0.s8 %v1560
        %v1562 = vlaneseq
        %v1563 = vshrl.u32 %v1562, 7
        %v1564 = vsub.s32 %v1561, %v1563
        %v1565 = vrot.slane %v1551, %v1564
        %v1566 = vcombine.high %v1558, %v1558
        %v1567 = vcombine.high %v1565, %v1565
        %v1568 = vlaneseq
        %v1569 = vshrl.u32 %v1568, 7
        %v1570 = vsub.s32 0, %v1569
        %v1571 = vrot.slane %v1558, %v1570
        %v1572 = vlaneseq
        %v1573 = vshrl.u32 %v1572, 7
        %v1574 = vsub.s32 0, %v1573
        %v1575 = vrot.slane %v1565, %v1574
        %v1576 = vlaneseq
        %v1577 = vshrl.u32 %v1576, 7
        %v1578 = vsub.s32 0, %v1577
        %v1579 = vrot.slane %v1566, %v1578
        %v1580 = vlaneseq
        %v1581 = vshrl.u32 %v1580, 7
        %v1582 = vsub.s32 0, %v1581
        %v1583 = vrot.slane %v1567, %v1582
        %1584 = vrot.lane.b32.xlu0 %v1571, 64
        %v1585 = vpop.permute.xlu0 %1584
        %1586 = vrot.lane.b32.xlu0 %v1575, 64
        %v1587 = vpop.permute.xlu0 %1586
        %1588 = vrot.lane.b32.xlu0 %v1579, 64
        %v1589 = vpop.permute.xlu0 %1588
        %1590 = vrot.lane.b32.xlu0 %v1583, 64
        %v1591 = vpop.permute.xlu0 %1590
        %s1596 = scalar_lea.vmem %s187, 4 [#allocation3]
        %1597 = vst.msk [vmem:[%s1596] sm:$0x1] %vm1371, %v1585
        %1598 = vst.msk [vmem:[%s1596 + $0x20] sm:$0x1] %vm1371, %v1587
        %1599 = vst.msk [vmem:[%s1596 + $0x40] sm:$0x1] %vm1371, %v1589
        %1600 = vst.msk [vmem:[%s1596 + $0x60] sm:$0x1] %vm1371, %v1591
        %1601 = vrot.lane.b32.xlu0 %v1377, 64
        %v1602 = vpop.permute.xlu0 %1601
        %v1604 = vadd.f32 %v1292, %v1602
        %v1606 = vcombine.high %v1604, %v1604
        %v1608 = vunpack.c.l.s4 1966171168
        %v1609 = vunpack.c.0.s8 %v1608
        %v1610 = vlaneseq
        %v1611 = vshrl.u32 %v1610, 7
        %v1612 = vsub.s32 %v1609, %v1611
        %v1613 = vrot.slane %v1606, %v1612
        %v1614 = vcombine.high %v1613, %v1613
        %v1616 = vunpack.c.l.s4 1966171168
        %v1617 = vunpack.c.0.s8 %v1616
        %v1618 = vlaneseq
        %v1619 = vshrl.u32 %v1618, 7
        %v1620 = vsub.s32 %v1617, %v1619
        %v1621 = vrot.slane %v1613, %v1620
        %v1623 = vunpack.c.l.s4 1966171168
        %v1624 = vunpack.c.0.s8 %v1623
        %v1625 = vlaneseq
        %v1626 = vshrl.u32 %v1625, 7
        %v1627 = vsub.s32 %v1624, %v1626
        %v1628 = vrot.slane %v1614, %v1627
        %v1629 = vcombine.high %v1621, %v1621
        %v1630 = vcombine.high %v1628, %v1628
        %v1631 = vlaneseq
        %v1632 = vshrl.u32 %v1631, 7
        %v1633 = vsub.s32 0, %v1632
        %v1634 = vrot.slane %v1621, %v1633
        %v1635 = vlaneseq
        %v1636 = vshrl.u32 %v1635, 7
        %v1637 = vsub.s32 0, %v1636
        %v1638 = vrot.slane %v1628, %v1637
        %v1639 = vlaneseq
        %v1640 = vshrl.u32 %v1639, 7
        %v1641 = vsub.s32 0, %v1640
        %v1642 = vrot.slane %v1629, %v1641
        %v1643 = vlaneseq
        %v1644 = vshrl.u32 %v1643, 7
        %v1645 = vsub.s32 0, %v1644
        %v1646 = vrot.slane %v1630, %v1645
        %1647 = vrot.lane.b32.xlu0 %v1634, 64
        %v1648 = vpop.permute.xlu0 %1647
        %1649 = vrot.lane.b32.xlu0 %v1638, 64
        %v1650 = vpop.permute.xlu0 %1649
        %1651 = vrot.lane.b32.xlu0 %v1642, 64
        %v1652 = vpop.permute.xlu0 %1651
        %1653 = vrot.lane.b32.xlu0 %v1646, 64
        %v1654 = vpop.permute.xlu0 %1653
        %1659 = vst.msk [vmem:[%s1596 + $0x1] sm:$0x1] %vm1371, %v1648
        %1660 = vst.msk [vmem:[%s1596 + $0x21] sm:$0x1] %vm1371, %v1650
        %1661 = vst.msk [vmem:[%s1596 + $0x41] sm:$0x1] %vm1371, %v1652
        %1662 = vst.msk [vmem:[%s1596 + $0x61] sm:$0x1] %vm1371, %v1654
        %1663 = vrot.lane.b32.xlu0 %v1339, 96
        %v1664 = vpop.permute.xlu0 %1663
        %v1666 = vadd.f32 %v1292, %v1664
        %v1669 = vunpack.c.l.s4 1966171168
        %v1670 = vunpack.c.0.s8 %v1669
        %v1671 = vlaneseq
        %v1672 = vshrl.u32 %v1671, 7
        %v1673 = vsub.s32 %v1670, %v1672
        %v1674 = vrot.slane %v1666, %v1673
        %v1675 = vcombine.high %v1674, %v1674
        %v1677 = vunpack.c.l.s4 1966171168
        %v1678 = vunpack.c.0.s8 %v1677
        %v1679 = vlaneseq
        %v1680 = vshrl.u32 %v1679, 7
        %v1681 = vsub.s32 %v1678, %v1680
        %v1682 = vrot.slane %v1674, %v1681
        %v1684 = vunpack.c.l.s4 1966171168
        %v1685 = vunpack.c.0.s8 %v1684
        %v1686 = vlaneseq
        %v1687 = vshrl.u32 %v1686, 7
        %v1688 = vsub.s32 %v1685, %v1687
        %v1689 = vrot.slane %v1675, %v1688
        %v1690 = vcombine.high %v1682, %v1682
        %v1691 = vcombine.high %v1689, %v1689
        %v1692 = vlaneseq
        %v1693 = vshrl.u32 %v1692, 7
        %v1694 = vsub.s32 0, %v1693
        %v1695 = vrot.slane %v1682, %v1694
        %v1696 = vlaneseq
        %v1697 = vshrl.u32 %v1696, 7
        %v1698 = vsub.s32 0, %v1697
        %v1699 = vrot.slane %v1689, %v1698
        %v1700 = vlaneseq
        %v1701 = vshrl.u32 %v1700, 7
        %v1702 = vsub.s32 0, %v1701
        %v1703 = vrot.slane %v1690, %v1702
        %v1704 = vlaneseq
        %v1705 = vshrl.u32 %v1704, 7
        %v1706 = vsub.s32 0, %v1705
        %v1707 = vrot.slane %v1691, %v1706
        %1708 = vrot.lane.b32.xlu0 %v1695, 32
        %v1709 = vpop.permute.xlu0 %1708
        %1710 = vrot.lane.b32.xlu0 %v1699, 32
        %v1711 = vpop.permute.xlu0 %1710
        %1712 = vrot.lane.b32.xlu0 %v1703, 32
        %v1713 = vpop.permute.xlu0 %1712
        %1714 = vrot.lane.b32.xlu0 %v1707, 32
        %v1715 = vpop.permute.xlu0 %1714
        %s1720 = scalar_lea.vmem %s187, 6 [#allocation3]
        %1721 = vst.msk [vmem:[%s1720] sm:$0x1] %vm1371, %v1709
        %1722 = vst.msk [vmem:[%s1720 + $0x20] sm:$0x1] %vm1371, %v1711
        %1723 = vst.msk [vmem:[%s1720 + $0x40] sm:$0x1] %vm1371, %v1713
        %1724 = vst.msk [vmem:[%s1720 + $0x60] sm:$0x1] %vm1371, %v1715
        %1725 = vrot.lane.b32.xlu0 %v1377, 96
        %v1726 = vpop.permute.xlu0 %1725
        %v1728 = vadd.f32 %v1292, %v1726
        %v1730 = vcombine.high %v1728, %v1728
        %v1732 = vunpack.c.l.s4 1966171168
        %v1733 = vunpack.c.0.s8 %v1732
        %v1734 = vlaneseq
        %v1735 = vshrl.u32 %v1734, 7
        %v1736 = vsub.s32 %v1733, %v1735
        %v1737 = vrot.slane %v1730, %v1736
        %v1738 = vcombine.high %v1737, %v1737
        %v1740 = vunpack.c.l.s4 1966171168
        %v1741 = vunpack.c.0.s8 %v1740
        %v1742 = vlaneseq
        %v1743 = vshrl.u32 %v1742, 7
        %v1744 = vsub.s32 %v1741, %v1743
        %v1745 = vrot.slane %v1737, %v1744
        %v1747 = vunpack.c.l.s4 1966171168
        %v1748 = vunpack.c.0.s8 %v1747
        %v1749 = vlaneseq
        %v1750 = vshrl.u32 %v1749, 7
        %v1751 = vsub.s32 %v1748, %v1750
        %v1752 = vrot.slane %v1738, %v1751
        %v1753 = vcombine.high %v1745, %v1745
        %v1754 = vcombine.high %v1752, %v1752
        %v1755 = vlaneseq
        %v1756 = vshrl.u32 %v1755, 7
        %v1757 = vsub.s32 0, %v1756
        %v1758 = vrot.slane %v1745, %v1757
        %v1759 = vlaneseq
        %v1760 = vshrl.u32 %v1759, 7
        %v1761 = vsub.s32 0, %v1760
        %v1762 = vrot.slane %v1752, %v1761
        %v1763 = vlaneseq
        %v1764 = vshrl.u32 %v1763, 7
        %v1765 = vsub.s32 0, %v1764
        %v1766 = vrot.slane %v1753, %v1765
        %v1767 = vlaneseq
        %v1768 = vshrl.u32 %v1767, 7
        %v1769 = vsub.s32 0, %v1768
        %v1770 = vrot.slane %v1754, %v1769
        %1771 = vrot.lane.b32.xlu0 %v1758, 32
        %v1772 = vpop.permute.xlu0 %1771
        %1773 = vrot.lane.b32.xlu0 %v1762, 32
        %v1774 = vpop.permute.xlu0 %1773
        %1775 = vrot.lane.b32.xlu0 %v1766, 32
        %v1776 = vpop.permute.xlu0 %1775
        %1777 = vrot.lane.b32.xlu0 %v1770, 32
        %v1778 = vpop.permute.xlu0 %1777
        %1783 = vst.msk [vmem:[%s1720 + $0x1] sm:$0x1] %vm1371, %v1772
        %1784 = vst.msk [vmem:[%s1720 + $0x21] sm:$0x1] %vm1371, %v1774
        %1785 = vst.msk [vmem:[%s1720 + $0x41] sm:$0x1] %vm1371, %v1776
        %1786 = vst.msk [vmem:[%s1720 + $0x61] sm:$0x1] %vm1371, %v1778
        %v1787 = vadd.f32 %v1294, %v1339
        %v1790 = vunpack.c.l.s4 1966171168
        %v1791 = vunpack.c.0.s8 %v1790
        %v1792 = vlaneseq
        %v1793 = vshrl.u32 %v1792, 7
        %v1794 = vsub.s32 %v1791, %v1793
        %v1795 = vrot.slane %v1787, %v1794
        %v1796 = vcombine.high %v1795, %v1795
        %v1798 = vunpack.c.l.s4 1966171168
        %v1799 = vunpack.c.0.s8 %v1798
        %v1800 = vlaneseq
        %v1801 = vshrl.u32 %v1800, 7
        %v1802 = vsub.s32 %v1799, %v1801
        %v1803 = vrot.slane %v1795, %v1802
        %v1805 = vunpack.c.l.s4 1966171168
        %v1806 = vunpack.c.0.s8 %v1805
        %v1807 = vlaneseq
        %v1808 = vshrl.u32 %v1807, 7
        %v1809 = vsub.s32 %v1806, %v1808
        %v1810 = vrot.slane %v1796, %v1809
        %v1811 = vcombine.high %v1803, %v1803
        %v1812 = vcombine.high %v1810, %v1810
        %s1817 = scalar_lea.vmem %s187, 8 [#allocation3]
        %1818 = vst.msk [vmem:[%s1817] sm:$0x1] %vm1371, %v1803
        %1819 = vst.msk [vmem:[%s1817 + $0x20] sm:$0x1] %vm1371, %v1810
        %1820 = vst.msk [vmem:[%s1817 + $0x40] sm:$0x1] %vm1371, %v1811
        %1821 = vst.msk [vmem:[%s1817 + $0x60] sm:$0x1] %vm1371, %v1812
        %v1822 = vadd.f32 %v1294, %v1377
        %v1824 = vcombine.high %v1822, %v1822
        %v1826 = vunpack.c.l.s4 1966171168
        %v1827 = vunpack.c.0.s8 %v1826
        %v1828 = vlaneseq
        %v1829 = vshrl.u32 %v1828, 7
        %v1830 = vsub.s32 %v1827, %v1829
        %v1831 = vrot.slane %v1824, %v1830
        %v1832 = vcombine.high %v1831, %v1831
        %v1834 = vunpack.c.l.s4 1966171168
        %v1835 = vunpack.c.0.s8 %v1834
        %v1836 = vlaneseq
        %v1837 = vshrl.u32 %v1836, 7
        %v1838 = vsub.s32 %v1835, %v1837
        %v1839 = vrot.slane %v1831, %v1838
        %v1841 = vunpack.c.l.s4 1966171168
        %v1842 = vunpack.c.0.s8 %v1841
        %v1843 = vlaneseq
        %v1844 = vshrl.u32 %v1843, 7
        %v1845 = vsub.s32 %v1842, %v1844
        %v1846 = vrot.slane %v1832, %v1845
        %v1847 = vcombine.high %v1839, %v1839
        %v1848 = vcombine.high %v1846, %v1846
        %1853 = vst.msk [vmem:[%s1817 + $0x1] sm:$0x1] %vm1371, %v1839
        %1854 = vst.msk [vmem:[%s1817 + $0x21] sm:$0x1] %vm1371, %v1846
        %1855 = vst.msk [vmem:[%s1817 + $0x41] sm:$0x1] %vm1371, %v1847
        %1856 = vst.msk [vmem:[%s1817 + $0x61] sm:$0x1] %vm1371, %v1848
        %v1857 = vadd.f32 %v1294, %v1416
        %v1860 = vunpack.c.l.s4 1966171168
        %v1861 = vunpack.c.0.s8 %v1860
        %v1862 = vlaneseq
        %v1863 = vshrl.u32 %v1862, 7
        %v1864 = vsub.s32 %v1861, %v1863
        %v1865 = vrot.slane %v1857, %v1864
        %v1866 = vcombine.high %v1865, %v1865
        %v1868 = vunpack.c.l.s4 1966171168
        %v1869 = vunpack.c.0.s8 %v1868
        %v1870 = vlaneseq
        %v1871 = vshrl.u32 %v1870, 7
        %v1872 = vsub.s32 %v1869, %v1871
        %v1873 = vrot.slane %v1865, %v1872
        %v1875 = vunpack.c.l.s4 1966171168
        %v1876 = vunpack.c.0.s8 %v1875
        %v1877 = vlaneseq
        %v1878 = vshrl.u32 %v1877, 7
        %v1879 = vsub.s32 %v1876, %v1878
        %v1880 = vrot.slane %v1866, %v1879
        %v1881 = vcombine.high %v1873, %v1873
        %v1882 = vcombine.high %v1880, %v1880
        %v1883 = vlaneseq
        %v1884 = vshrl.u32 %v1883, 7
        %v1885 = vsub.s32 0, %v1884
        %v1886 = vrot.slane %v1873, %v1885
        %v1887 = vlaneseq
        %v1888 = vshrl.u32 %v1887, 7
        %v1889 = vsub.s32 0, %v1888
        %v1890 = vrot.slane %v1880, %v1889
        %v1891 = vlaneseq
        %v1892 = vshrl.u32 %v1891, 7
        %v1893 = vsub.s32 0, %v1892
        %v1894 = vrot.slane %v1881, %v1893
        %v1895 = vlaneseq
        %v1896 = vshrl.u32 %v1895, 7
        %v1897 = vsub.s32 0, %v1896
        %v1898 = vrot.slane %v1882, %v1897
        %1899 = vrot.lane.b32.xlu0 %v1886, 96
        %v1900 = vpop.permute.xlu0 %1899
        %1901 = vrot.lane.b32.xlu0 %v1890, 96
        %v1902 = vpop.permute.xlu0 %1901
        %1903 = vrot.lane.b32.xlu0 %v1894, 96
        %v1904 = vpop.permute.xlu0 %1903
        %1905 = vrot.lane.b32.xlu0 %v1898, 96
        %v1906 = vpop.permute.xlu0 %1905
        %s1911 = scalar_lea.vmem %s187, 10 [#allocation3]
        %1912 = vst.msk [vmem:[%s1911] sm:$0x1] %vm1371, %v1900
        %1913 = vst.msk [vmem:[%s1911 + $0x20] sm:$0x1] %vm1371, %v1902
        %1914 = vst.msk [vmem:[%s1911 + $0x40] sm:$0x1] %vm1371, %v1904
        %1915 = vst.msk [vmem:[%s1911 + $0x60] sm:$0x1] %vm1371, %v1906
        %v1916 = vadd.f32 %v1294, %v1478
        %v1918 = vcombine.high %v1916, %v1916
        %v1920 = vunpack.c.l.s4 1966171168
        %v1921 = vunpack.c.0.s8 %v1920
        %v1922 = vlaneseq
        %v1923 = vshrl.u32 %v1922, 7
        %v1924 = vsub.s32 %v1921, %v1923
        %v1925 = vrot.slane %v1918, %v1924
        %v1926 = vcombine.high %v1925, %v1925
        %v1928 = vunpack.c.l.s4 1966171168
        %v1929 = vunpack.c.0.s8 %v1928
        %v1930 = vlaneseq
        %v1931 = vshrl.u32 %v1930, 7
        %v1932 = vsub.s32 %v1929, %v1931
        %v1933 = vrot.slane %v1925, %v1932
        %v1935 = vunpack.c.l.s4 1966171168
        %v1936 = vunpack.c.0.s8 %v1935
        %v1937 = vlaneseq
        %v1938 = vshrl.u32 %v1937, 7
        %v1939 = vsub.s32 %v1936, %v1938
        %v1940 = vrot.slane %v1926, %v1939
        %v1941 = vcombine.high %v1933, %v1933
        %v1942 = vcombine.high %v1940, %v1940
        %v1943 = vlaneseq
        %v1944 = vshrl.u32 %v1943, 7
        %v1945 = vsub.s32 0, %v1944
        %v1946 = vrot.slane %v1933, %v1945
        %v1947 = vlaneseq
        %v1948 = vshrl.u32 %v1947, 7
        %v1949 = vsub.s32 0, %v1948
        %v1950 = vrot.slane %v1940, %v1949
        %v1951 = vlaneseq
        %v1952 = vshrl.u32 %v1951, 7
        %v1953 = vsub.s32 0, %v1952
        %v1954 = vrot.slane %v1941, %v1953
        %v1955 = vlaneseq
        %v1956 = vshrl.u32 %v1955, 7
        %v1957 = vsub.s32 0, %v1956
        %v1958 = vrot.slane %v1942, %v1957
        %1959 = vrot.lane.b32.xlu0 %v1946, 96
        %v1960 = vpop.permute.xlu0 %1959
        %1961 = vrot.lane.b32.xlu0 %v1950, 96
        %v1962 = vpop.permute.xlu0 %1961
        %1963 = vrot.lane.b32.xlu0 %v1954, 96
        %v1964 = vpop.permute.xlu0 %1963
        %1965 = vrot.lane.b32.xlu0 %v1958, 96
        %v1966 = vpop.permute.xlu0 %1965
        %1971 = vst.msk [vmem:[%s1911 + $0x1] sm:$0x1] %vm1371, %v1960
        %1972 = vst.msk [vmem:[%s1911 + $0x21] sm:$0x1] %vm1371, %v1962
        %1973 = vst.msk [vmem:[%s1911 + $0x41] sm:$0x1] %vm1371, %v1964
        %1974 = vst.msk [vmem:[%s1911 + $0x61] sm:$0x1] %vm1371, %v1966
        %v1975 = vadd.f32 %v1294, %v1540
        %v1978 = vunpack.c.l.s4 1966171168
        %v1979 = vunpack.c.0.s8 %v1978
        %v1980 = vlaneseq
        %v1981 = vshrl.u32 %v1980, 7
        %v1982 = vsub.s32 %v1979, %v1981
        %v1983 = vrot.slane %v1975, %v1982
        %v1984 = vcombine.high %v1983, %v1983
        %v1986 = vunpack.c.l.s4 1966171168
        %v1987 = vunpack.c.0.s8 %v1986
        %v1988 = vlaneseq
        %v1989 = vshrl.u32 %v1988, 7
        %v1990 = vsub.s32 %v1987, %v1989
        %v1991 = vrot.slane %v1983, %v1990
        %v1993 = vunpack.c.l.s4 1966171168
        %v1994 = vunpack.c.0.s8 %v1993
        %v1995 = vlaneseq
        %v1996 = vshrl.u32 %v1995, 7
        %v1997 = vsub.s32 %v1994, %v1996
        %v1998 = vrot.slane %v1984, %v1997
        %v1999 = vcombine.high %v1991, %v1991
        %v2000 = vcombine.high %v1998, %v1998
        %v2001 = vlaneseq
        %v2002 = vshrl.u32 %v2001, 7
        %v2003 = vsub.s32 0, %v2002
        %v2004 = vrot.slane %v1991, %v2003
        %v2005 = vlaneseq
        %v2006 = vshrl.u32 %v2005, 7
        %v2007 = vsub.s32 0, %v2006
        %v2008 = vrot.slane %v1998, %v2007
        %v2009 = vlaneseq
        %v2010 = vshrl.u32 %v2009, 7
        %v2011 = vsub.s32 0, %v2010
        %v2012 = vrot.slane %v1999, %v2011
        %v2013 = vlaneseq
        %v2014 = vshrl.u32 %v2013, 7
        %v2015 = vsub.s32 0, %v2014
        %v2016 = vrot.slane %v2000, %v2015
        %2017 = vrot.lane.b32.xlu0 %v2004, 64
        %v2018 = vpop.permute.xlu0 %2017
        %2019 = vrot.lane.b32.xlu0 %v2008, 64
        %v2020 = vpop.permute.xlu0 %2019
        %2021 = vrot.lane.b32.xlu0 %v2012, 64
        %v2022 = vpop.permute.xlu0 %2021
        %2023 = vrot.lane.b32.xlu0 %v2016, 64
        %v2024 = vpop.permute.xlu0 %2023
        %s2029 = scalar_lea.vmem %s187, 12 [#allocation3]
        %2030 = vst.msk [vmem:[%s2029] sm:$0x1] %vm1371, %v2018
        %2031 = vst.msk [vmem:[%s2029 + $0x20] sm:$0x1] %vm1371, %v2020
        %2032 = vst.msk [vmem:[%s2029 + $0x40] sm:$0x1] %vm1371, %v2022
        %2033 = vst.msk [vmem:[%s2029 + $0x60] sm:$0x1] %vm1371, %v2024
        %v2034 = vadd.f32 %v1294, %v1602
        %v2036 = vcombine.high %v2034, %v2034
        %v2038 = vunpack.c.l.s4 1966171168
        %v2039 = vunpack.c.0.s8 %v2038
        %v2040 = vlaneseq
        %v2041 = vshrl.u32 %v2040, 7
        %v2042 = vsub.s32 %v2039, %v2041
        %v2043 = vrot.slane %v2036, %v2042
        %v2044 = vcombine.high %v2043, %v2043
        %v2046 = vunpack.c.l.s4 1966171168
        %v2047 = vunpack.c.0.s8 %v2046
        %v2048 = vlaneseq
        %v2049 = vshrl.u32 %v2048, 7
        %v2050 = vsub.s32 %v2047, %v2049
        %v2051 = vrot.slane %v2043, %v2050
        %v2053 = vunpack.c.l.s4 1966171168
        %v2054 = vunpack.c.0.s8 %v2053
        %v2055 = vlaneseq
        %v2056 = vshrl.u32 %v2055, 7
        %v2057 = vsub.s32 %v2054, %v2056
        %v2058 = vrot.slane %v2044, %v2057
        %v2059 = vcombine.high %v2051, %v2051
        %v2060 = vcombine.high %v2058, %v2058
        %v2061 = vlaneseq
        %v2062 = vshrl.u32 %v2061, 7
        %v2063 = vsub.s32 0, %v2062
        %v2064 = vrot.slane %v2051, %v2063
        %v2065 = vlaneseq
        %v2066 = vshrl.u32 %v2065, 7
        %v2067 = vsub.s32 0, %v2066
        %v2068 = vrot.slane %v2058, %v2067
        %v2069 = vlaneseq
        %v2070 = vshrl.u32 %v2069, 7
        %v2071 = vsub.s32 0, %v2070
        %v2072 = vrot.slane %v2059, %v2071
        %v2073 = vlaneseq
        %v2074 = vshrl.u32 %v2073, 7
        %v2075 = vsub.s32 0, %v2074
        %v2076 = vrot.slane %v2060, %v2075
        %2077 = vrot.lane.b32.xlu0 %v2064, 64
        %v2078 = vpop.permute.xlu0 %2077
        %2079 = vrot.lane.b32.xlu0 %v2068, 64
        %v2080 = vpop.permute.xlu0 %2079
        %2081 = vrot.lane.b32.xlu0 %v2072, 64
        %v2082 = vpop.permute.xlu0 %2081
        %2083 = vrot.lane.b32.xlu0 %v2076, 64
        %v2084 = vpop.permute.xlu0 %2083
        %2089 = vst.msk [vmem:[%s2029 + $0x1] sm:$0x1] %vm1371, %v2078
        %2090 = vst.msk [vmem:[%s2029 + $0x21] sm:$0x1] %vm1371, %v2080
        %2091 = vst.msk [vmem:[%s2029 + $0x41] sm:$0x1] %vm1371, %v2082
        %2092 = vst.msk [vmem:[%s2029 + $0x61] sm:$0x1] %vm1371, %v2084
        %v2093 = vadd.f32 %v1294, %v1664
        %v2096 = vunpack.c.l.s4 1966171168
        %v2097 = vunpack.c.0.s8 %v2096
        %v2098 = vlaneseq
        %v2099 = vshrl.u32 %v2098, 7
        %v2100 = vsub.s32 %v2097, %v2099
        %v2101 = vrot.slane %v2093, %v2100
        %v2102 = vcombine.high %v2101, %v2101
        %v2104 = vunpack.c.l.s4 1966171168
        %v2105 = vunpack.c.0.s8 %v2104
        %v2106 = vlaneseq
        %v2107 = vshrl.u32 %v2106, 7
        %v2108 = vsub.s32 %v2105, %v2107
        %v2109 = vrot.slane %v2101, %v2108
        %v2111 = vunpack.c.l.s4 1966171168
        %v2112 = vunpack.c.0.s8 %v2111
        %v2113 = vlaneseq
        %v2114 = vshrl.u32 %v2113, 7
        %v2115 = vsub.s32 %v2112, %v2114
        %v2116 = vrot.slane %v2102, %v2115
        %v2117 = vcombine.high %v2109, %v2109
        %v2118 = vcombine.high %v2116, %v2116
        %v2119 = vlaneseq
        %v2120 = vshrl.u32 %v2119, 7
        %v2121 = vsub.s32 0, %v2120
        %v2122 = vrot.slane %v2109, %v2121
        %v2123 = vlaneseq
        %v2124 = vshrl.u32 %v2123, 7
        %v2125 = vsub.s32 0, %v2124
        %v2126 = vrot.slane %v2116, %v2125
        %v2127 = vlaneseq
        %v2128 = vshrl.u32 %v2127, 7
        %v2129 = vsub.s32 0, %v2128
        %v2130 = vrot.slane %v2117, %v2129
        %v2131 = vlaneseq
        %v2132 = vshrl.u32 %v2131, 7
        %v2133 = vsub.s32 0, %v2132
        %v2134 = vrot.slane %v2118, %v2133
        %2135 = vrot.lane.b32.xlu0 %v2122, 32
        %v2136 = vpop.permute.xlu0 %2135
        %2137 = vrot.lane.b32.xlu0 %v2126, 32
        %v2138 = vpop.permute.xlu0 %2137
        %2139 = vrot.lane.b32.xlu0 %v2130, 32
        %v2140 = vpop.permute.xlu0 %2139
        %2141 = vrot.lane.b32.xlu0 %v2134, 32
        %v2142 = vpop.permute.xlu0 %2141
        %s2147 = scalar_lea.vmem %s187, 14 [#allocation3]
        %2148 = vst.msk [vmem:[%s2147] sm:$0x1] %vm1371, %v2136
        %2149 = vst.msk [vmem:[%s2147 + $0x20] sm:$0x1] %vm1371, %v2138
        %2150 = vst.msk [vmem:[%s2147 + $0x40] sm:$0x1] %vm1371, %v2140
        %2151 = vst.msk [vmem:[%s2147 + $0x60] sm:$0x1] %vm1371, %v2142
        %v2152 = vadd.f32 %v1294, %v1726
        %v2154 = vcombine.high %v2152, %v2152
        %v2156 = vunpack.c.l.s4 1966171168
        %v2157 = vunpack.c.0.s8 %v2156
        %v2158 = vlaneseq
        %v2159 = vshrl.u32 %v2158, 7
        %v2160 = vsub.s32 %v2157, %v2159
        %v2161 = vrot.slane %v2154, %v2160
        %v2162 = vcombine.high %v2161, %v2161
        %v2164 = vunpack.c.l.s4 1966171168
        %v2165 = vunpack.c.0.s8 %v2164
        %v2166 = vlaneseq
        %v2167 = vshrl.u32 %v2166, 7
        %v2168 = vsub.s32 %v2165, %v2167
        %v2169 = vrot.slane %v2161, %v2168
        %v2171 = vunpack.c.l.s4 1966171168
        %v2172 = vunpack.c.0.s8 %v2171
        %v2173 = vlaneseq
        %v2174 = vshrl.u32 %v2173, 7
        %v2175 = vsub.s32 %v2172, %v2174
        %v2176 = vrot.slane %v2162, %v2175
        %v2177 = vcombine.high %v2169, %v2169
        %v2178 = vcombine.high %v2176, %v2176
        %v2179 = vlaneseq
        %v2180 = vshrl.u32 %v2179, 7
        %v2181 = vsub.s32 0, %v2180
        %v2182 = vrot.slane %v2169, %v2181
        %v2183 = vlaneseq
        %v2184 = vshrl.u32 %v2183, 7
        %v2185 = vsub.s32 0, %v2184
        %v2186 = vrot.slane %v2176, %v2185
        %v2187 = vlaneseq
        %v2188 = vshrl.u32 %v2187, 7
        %v2189 = vsub.s32 0, %v2188
        %v2190 = vrot.slane %v2177, %v2189
        %v2191 = vlaneseq
        %v2192 = vshrl.u32 %v2191, 7
        %v2193 = vsub.s32 0, %v2192
        %v2194 = vrot.slane %v2178, %v2193
        %2195 = vrot.lane.b32.xlu0 %v2182, 32
        %v2196 = vpop.permute.xlu0 %2195
        %2197 = vrot.lane.b32.xlu0 %v2186, 32
        %v2198 = vpop.permute.xlu0 %2197
        %2199 = vrot.lane.b32.xlu0 %v2190, 32
        %v2200 = vpop.permute.xlu0 %2199
        %2201 = vrot.lane.b32.xlu0 %v2194, 32
        %v2202 = vpop.permute.xlu0 %2201
        %2207 = vst.msk [vmem:[%s2147 + $0x1] sm:$0x1] %vm1371, %v2196
        %2208 = vst.msk [vmem:[%s2147 + $0x21] sm:$0x1] %vm1371, %v2198
        %2209 = vst.msk [vmem:[%s2147 + $0x41] sm:$0x1] %vm1371, %v2200
        %2210 = vst.msk [vmem:[%s2147 + $0x61] sm:$0x1] %vm1371, %v2202
        %v2211 = vadd.f32 %v1333, %v1339
        %v2214 = vunpack.c.l.s4 1966171168
        %v2215 = vunpack.c.0.s8 %v2214
        %v2216 = vlaneseq
        %v2217 = vshrl.u32 %v2216, 7
        %v2218 = vsub.s32 %v2215, %v2217
        %v2219 = vrot.slane %v2211, %v2218
        %v2220 = vcombine.high %v2219, %v2219
        %v2222 = vunpack.c.l.s4 1966171168
        %v2223 = vunpack.c.0.s8 %v2222
        %v2224 = vlaneseq
        %v2225 = vshrl.u32 %v2224, 7
        %v2226 = vsub.s32 %v2223, %v2225
        %v2227 = vrot.slane %v2219, %v2226
        %v2229 = vunpack.c.l.s4 1966171168
        %v2230 = vunpack.c.0.s8 %v2229
        %v2231 = vlaneseq
        %v2232 = vshrl.u32 %v2231, 7
        %v2233 = vsub.s32 %v2230, %v2232
        %v2234 = vrot.slane %v2220, %v2233
        %v2235 = vcombine.high %v2227, %v2227
        %v2236 = vcombine.high %v2234, %v2234
        %s2241 = scalar_lea.vmem %s187, 16 [#allocation3]
        %2242 = vst.msk [vmem:[%s2241] sm:$0x1] %vm1371, %v2227
        %2243 = vst.msk [vmem:[%s2241 + $0x20] sm:$0x1] %vm1371, %v2234
        %2244 = vst.msk [vmem:[%s2241 + $0x40] sm:$0x1] %vm1371, %v2235
        %2245 = vst.msk [vmem:[%s2241 + $0x60] sm:$0x1] %vm1371, %v2236
        %v2246 = vadd.f32 %v1333, %v1377
        %v2248 = vcombine.high %v2246, %v2246
        %v2250 = vunpack.c.l.s4 1966171168
        %v2251 = vunpack.c.0.s8 %v2250
        %v2252 = vlaneseq
        %v2253 = vshrl.u32 %v2252, 7
        %v2254 = vsub.s32 %v2251, %v2253
        %v2255 = vrot.slane %v2248, %v2254
        %v2256 = vcombine.high %v2255, %v2255
        %v2258 = vunpack.c.l.s4 1966171168
        %v2259 = vunpack.c.0.s8 %v2258
        %v2260 = vlaneseq
        %v2261 = vshrl.u32 %v2260, 7
        %v2262 = vsub.s32 %v2259, %v2261
        %v2263 = vrot.slane %v2255, %v2262
        %v2265 = vunpack.c.l.s4 1966171168
        %v2266 = vunpack.c.0.s8 %v2265
        %v2267 = vlaneseq
        %v2268 = vshrl.u32 %v2267, 7
        %v2269 = vsub.s32 %v2266, %v2268
        %v2270 = vrot.slane %v2256, %v2269
        %v2271 = vcombine.high %v2263, %v2263
        %v2272 = vcombine.high %v2270, %v2270
        %2277 = vst.msk [vmem:[%s2241 + $0x1] sm:$0x1] %vm1371, %v2263
        %2278 = vst.msk [vmem:[%s2241 + $0x21] sm:$0x1] %vm1371, %v2270
        %2279 = vst.msk [vmem:[%s2241 + $0x41] sm:$0x1] %vm1371, %v2271
        %2280 = vst.msk [vmem:[%s2241 + $0x61] sm:$0x1] %vm1371, %v2272
        %v2281 = vadd.f32 %v1333, %v1416
        %v2284 = vunpack.c.l.s4 1966171168
        %v2285 = vunpack.c.0.s8 %v2284
        %v2286 = vlaneseq
        %v2287 = vshrl.u32 %v2286, 7
        %v2288 = vsub.s32 %v2285, %v2287
        %v2289 = vrot.slane %v2281, %v2288
        %v2290 = vcombine.high %v2289, %v2289
        %v2292 = vunpack.c.l.s4 1966171168
        %v2293 = vunpack.c.0.s8 %v2292
        %v2294 = vlaneseq
        %v2295 = vshrl.u32 %v2294, 7
        %v2296 = vsub.s32 %v2293, %v2295
        %v2297 = vrot.slane %v2289, %v2296
        %v2299 = vunpack.c.l.s4 1966171168
        %v2300 = vunpack.c.0.s8 %v2299
        %v2301 = vlaneseq
        %v2302 = vshrl.u32 %v2301, 7
        %v2303 = vsub.s32 %v2300, %v2302
        %v2304 = vrot.slane %v2290, %v2303
        %v2305 = vcombine.high %v2297, %v2297
        %v2306 = vcombine.high %v2304, %v2304
        %v2307 = vlaneseq
        %v2308 = vshrl.u32 %v2307, 7
        %v2309 = vsub.s32 0, %v2308
        %v2310 = vrot.slane %v2297, %v2309
        %v2311 = vlaneseq
        %v2312 = vshrl.u32 %v2311, 7
        %v2313 = vsub.s32 0, %v2312
        %v2314 = vrot.slane %v2304, %v2313
        %v2315 = vlaneseq
        %v2316 = vshrl.u32 %v2315, 7
        %v2317 = vsub.s32 0, %v2316
        %v2318 = vrot.slane %v2305, %v2317
        %v2319 = vlaneseq
        %v2320 = vshrl.u32 %v2319, 7
        %v2321 = vsub.s32 0, %v2320
        %v2322 = vrot.slane %v2306, %v2321
        %2323 = vrot.lane.b32.xlu0 %v2310, 96
        %v2324 = vpop.permute.xlu0 %2323
        %2325 = vrot.lane.b32.xlu0 %v2314, 96
        %v2326 = vpop.permute.xlu0 %2325
        %2327 = vrot.lane.b32.xlu0 %v2318, 96
        %v2328 = vpop.permute.xlu0 %2327
        %2329 = vrot.lane.b32.xlu0 %v2322, 96
        %v2330 = vpop.permute.xlu0 %2329
        %s2335 = scalar_lea.vmem %s187, 18 [#allocation3]
        %2336 = vst.msk [vmem:[%s2335] sm:$0x1] %vm1371, %v2324
        %2337 = vst.msk [vmem:[%s2335 + $0x20] sm:$0x1] %vm1371, %v2326
        %2338 = vst.msk [vmem:[%s2335 + $0x40] sm:$0x1] %vm1371, %v2328
        %2339 = vst.msk [vmem:[%s2335 + $0x60] sm:$0x1] %vm1371, %v2330
        %v2340 = vadd.f32 %v1333, %v1478
        %v2342 = vcombine.high %v2340, %v2340
        %v2344 = vunpack.c.l.s4 1966171168
        %v2345 = vunpack.c.0.s8 %v2344
        %v2346 = vlaneseq
        %v2347 = vshrl.u32 %v2346, 7
        %v2348 = vsub.s32 %v2345, %v2347
        %v2349 = vrot.slane %v2342, %v2348
        %v2350 = vcombine.high %v2349, %v2349
        %v2352 = vunpack.c.l.s4 1966171168
        %v2353 = vunpack.c.0.s8 %v2352
        %v2354 = vlaneseq
        %v2355 = vshrl.u32 %v2354, 7
        %v2356 = vsub.s32 %v2353, %v2355
        %v2357 = vrot.slane %v2349, %v2356
        %v2359 = vunpack.c.l.s4 1966171168
        %v2360 = vunpack.c.0.s8 %v2359
        %v2361 = vlaneseq
        %v2362 = vshrl.u32 %v2361, 7
        %v2363 = vsub.s32 %v2360, %v2362
        %v2364 = vrot.slane %v2350, %v2363
        %v2365 = vcombine.high %v2357, %v2357
        %v2366 = vcombine.high %v2364, %v2364
        %v2367 = vlaneseq
        %v2368 = vshrl.u32 %v2367, 7
        %v2369 = vsub.s32 0, %v2368
        %v2370 = vrot.slane %v2357, %v2369
        %v2371 = vlaneseq
        %v2372 = vshrl.u32 %v2371, 7
        %v2373 = vsub.s32 0, %v2372
        %v2374 = vrot.slane %v2364, %v2373
        %v2375 = vlaneseq
        %v2376 = vshrl.u32 %v2375, 7
        %v2377 = vsub.s32 0, %v2376
        %v2378 = vrot.slane %v2365, %v2377
        %v2379 = vlaneseq
        %v2380 = vshrl.u32 %v2379, 7
        %v2381 = vsub.s32 0, %v2380
        %v2382 = vrot.slane %v2366, %v2381
        %2383 = vrot.lane.b32.xlu0 %v2370, 96
        %v2384 = vpop.permute.xlu0 %2383
        %2385 = vrot.lane.b32.xlu0 %v2374, 96
        %v2386 = vpop.permute.xlu0 %2385
        %2387 = vrot.lane.b32.xlu0 %v2378, 96
        %v2388 = vpop.permute.xlu0 %2387
        %2389 = vrot.lane.b32.xlu0 %v2382, 96
        %v2390 = vpop.permute.xlu0 %2389
        %2395 = vst.msk [vmem:[%s2335 + $0x1] sm:$0x1] %vm1371, %v2384
        %2396 = vst.msk [vmem:[%s2335 + $0x21] sm:$0x1] %vm1371, %v2386
        %2397 = vst.msk [vmem:[%s2335 + $0x41] sm:$0x1] %vm1371, %v2388
        %2398 = vst.msk [vmem:[%s2335 + $0x61] sm:$0x1] %vm1371, %v2390
        %v2399 = vadd.f32 %v1333, %v1540
        %v2402 = vunpack.c.l.s4 1966171168
        %v2403 = vunpack.c.0.s8 %v2402
        %v2404 = vlaneseq
        %v2405 = vshrl.u32 %v2404, 7
        %v2406 = vsub.s32 %v2403, %v2405
        %v2407 = vrot.slane %v2399, %v2406
        %v2408 = vcombine.high %v2407, %v2407
        %v2410 = vunpack.c.l.s4 1966171168
        %v2411 = vunpack.c.0.s8 %v2410
        %v2412 = vlaneseq
        %v2413 = vshrl.u32 %v2412, 7
        %v2414 = vsub.s32 %v2411, %v2413
        %v2415 = vrot.slane %v2407, %v2414
        %v2417 = vunpack.c.l.s4 1966171168
        %v2418 = vunpack.c.0.s8 %v2417
        %v2419 = vlaneseq
        %v2420 = vshrl.u32 %v2419, 7
        %v2421 = vsub.s32 %v2418, %v2420
        %v2422 = vrot.slane %v2408, %v2421
        %v2423 = vcombine.high %v2415, %v2415
        %v2424 = vcombine.high %v2422, %v2422
        %v2425 = vlaneseq
        %v2426 = vshrl.u32 %v2425, 7
        %v2427 = vsub.s32 0, %v2426
        %v2428 = vrot.slane %v2415, %v2427
        %v2429 = vlaneseq
        %v2430 = vshrl.u32 %v2429, 7
        %v2431 = vsub.s32 0, %v2430
        %v2432 = vrot.slane %v2422, %v2431
        %v2433 = vlaneseq
        %v2434 = vshrl.u32 %v2433, 7
        %v2435 = vsub.s32 0, %v2434
        %v2436 = vrot.slane %v2423, %v2435
        %v2437 = vlaneseq
        %v2438 = vshrl.u32 %v2437, 7
        %v2439 = vsub.s32 0, %v2438
        %v2440 = vrot.slane %v2424, %v2439
        %2441 = vrot.lane.b32.xlu0 %v2428, 64
        %v2442 = vpop.permute.xlu0 %2441
        %2443 = vrot.lane.b32.xlu0 %v2432, 64
        %v2444 = vpop.permute.xlu0 %2443
        %2445 = vrot.lane.b32.xlu0 %v2436, 64
        %v2446 = vpop.permute.xlu0 %2445
        %2447 = vrot.lane.b32.xlu0 %v2440, 64
        %v2448 = vpop.permute.xlu0 %2447
        %s2453 = scalar_lea.vmem %s187, 20 [#allocation3]
        %2454 = vst.msk [vmem:[%s2453] sm:$0x1] %vm1371, %v2442
        %2455 = vst.msk [vmem:[%s2453 + $0x20] sm:$0x1] %vm1371, %v2444
        %2456 = vst.msk [vmem:[%s2453 + $0x40] sm:$0x1] %vm1371, %v2446
        %2457 = vst.msk [vmem:[%s2453 + $0x60] sm:$0x1] %vm1371, %v2448
        %v2458 = vadd.f32 %v1333, %v1602
        %v2460 = vcombine.high %v2458, %v2458
        %v2462 = vunpack.c.l.s4 1966171168
        %v2463 = vunpack.c.0.s8 %v2462
        %v2464 = vlaneseq
        %v2465 = vshrl.u32 %v2464, 7
        %v2466 = vsub.s32 %v2463, %v2465
        %v2467 = vrot.slane %v2460, %v2466
        %v2468 = vcombine.high %v2467, %v2467
        %v2470 = vunpack.c.l.s4 1966171168
        %v2471 = vunpack.c.0.s8 %v2470
        %v2472 = vlaneseq
        %v2473 = vshrl.u32 %v2472, 7
        %v2474 = vsub.s32 %v2471, %v2473
        %v2475 = vrot.slane %v2467, %v2474
        %v2477 = vunpack.c.l.s4 1966171168
        %v2478 = vunpack.c.0.s8 %v2477
        %v2479 = vlaneseq
        %v2480 = vshrl.u32 %v2479, 7
        %v2481 = vsub.s32 %v2478, %v2480
        %v2482 = vrot.slane %v2468, %v2481
        %v2483 = vcombine.high %v2475, %v2475
        %v2484 = vcombine.high %v2482, %v2482
        %v2485 = vlaneseq
        %v2486 = vshrl.u32 %v2485, 7
        %v2487 = vsub.s32 0, %v2486
        %v2488 = vrot.slane %v2475, %v2487
        %v2489 = vlaneseq
        %v2490 = vshrl.u32 %v2489, 7
        %v2491 = vsub.s32 0, %v2490
        %v2492 = vrot.slane %v2482, %v2491
        %v2493 = vlaneseq
        %v2494 = vshrl.u32 %v2493, 7
        %v2495 = vsub.s32 0, %v2494
        %v2496 = vrot.slane %v2483, %v2495
        %v2497 = vlaneseq
        %v2498 = vshrl.u32 %v2497, 7
        %v2499 = vsub.s32 0, %v2498
        %v2500 = vrot.slane %v2484, %v2499
        %2501 = vrot.lane.b32.xlu0 %v2488, 64
        %v2502 = vpop.permute.xlu0 %2501
        %2503 = vrot.lane.b32.xlu0 %v2492, 64
        %v2504 = vpop.permute.xlu0 %2503
        %2505 = vrot.lane.b32.xlu0 %v2496, 64
        %v2506 = vpop.permute.xlu0 %2505
        %2507 = vrot.lane.b32.xlu0 %v2500, 64
        %v2508 = vpop.permute.xlu0 %2507
        %2513 = vst.msk [vmem:[%s2453 + $0x1] sm:$0x1] %vm1371, %v2502
        %2514 = vst.msk [vmem:[%s2453 + $0x21] sm:$0x1] %vm1371, %v2504
        %2515 = vst.msk [vmem:[%s2453 + $0x41] sm:$0x1] %vm1371, %v2506
        %2516 = vst.msk [vmem:[%s2453 + $0x61] sm:$0x1] %vm1371, %v2508
        %v2517 = vadd.f32 %v1333, %v1664
        %v2520 = vunpack.c.l.s4 1966171168
        %v2521 = vunpack.c.0.s8 %v2520
        %v2522 = vlaneseq
        %v2523 = vshrl.u32 %v2522, 7
        %v2524 = vsub.s32 %v2521, %v2523
        %v2525 = vrot.slane %v2517, %v2524
        %v2526 = vcombine.high %v2525, %v2525
        %v2528 = vunpack.c.l.s4 1966171168
        %v2529 = vunpack.c.0.s8 %v2528
        %v2530 = vlaneseq
        %v2531 = vshrl.u32 %v2530, 7
        %v2532 = vsub.s32 %v2529, %v2531
        %v2533 = vrot.slane %v2525, %v2532
        %v2535 = vunpack.c.l.s4 1966171168
        %v2536 = vunpack.c.0.s8 %v2535
        %v2537 = vlaneseq
        %v2538 = vshrl.u32 %v2537, 7
        %v2539 = vsub.s32 %v2536, %v2538
        %v2540 = vrot.slane %v2526, %v2539
        %v2541 = vcombine.high %v2533, %v2533
        %v2542 = vcombine.high %v2540, %v2540
        %v2543 = vlaneseq
        %v2544 = vshrl.u32 %v2543, 7
        %v2545 = vsub.s32 0, %v2544
        %v2546 = vrot.slane %v2533, %v2545
        %v2547 = vlaneseq
        %v2548 = vshrl.u32 %v2547, 7
        %v2549 = vsub.s32 0, %v2548
        %v2550 = vrot.slane %v2540, %v2549
        %v2551 = vlaneseq
        %v2552 = vshrl.u32 %v2551, 7
        %v2553 = vsub.s32 0, %v2552
        %v2554 = vrot.slane %v2541, %v2553
        %v2555 = vlaneseq
        %v2556 = vshrl.u32 %v2555, 7
        %v2557 = vsub.s32 0, %v2556
        %v2558 = vrot.slane %v2542, %v2557
        %2559 = vrot.lane.b32.xlu0 %v2546, 32
        %v2560 = vpop.permute.xlu0 %2559
        %2561 = vrot.lane.b32.xlu0 %v2550, 32
        %v2562 = vpop.permute.xlu0 %2561
        %2563 = vrot.lane.b32.xlu0 %v2554, 32
        %v2564 = vpop.permute.xlu0 %2563
        %2565 = vrot.lane.b32.xlu0 %v2558, 32
        %v2566 = vpop.permute.xlu0 %2565
        %s2571 = scalar_lea.vmem %s187, 22 [#allocation3]
        %2572 = vst.msk [vmem:[%s2571] sm:$0x1] %vm1371, %v2560
        %2573 = vst.msk [vmem:[%s2571 + $0x20] sm:$0x1] %vm1371, %v2562
        %2574 = vst.msk [vmem:[%s2571 + $0x40] sm:$0x1] %vm1371, %v2564
        %2575 = vst.msk [vmem:[%s2571 + $0x60] sm:$0x1] %vm1371, %v2566
        %v2576 = vadd.f32 %v1333, %v1726
        %v2578 = vcombine.high %v2576, %v2576
        %v2580 = vunpack.c.l.s4 1966171168
        %v2581 = vunpack.c.0.s8 %v2580
        %v2582 = vlaneseq
        %v2583 = vshrl.u32 %v2582, 7
        %v2584 = vsub.s32 %v2581, %v2583
        %v2585 = vrot.slane %v2578, %v2584
        %v2586 = vcombine.high %v2585, %v2585
        %v2588 = vunpack.c.l.s4 1966171168
        %v2589 = vunpack.c.0.s8 %v2588
        %v2590 = vlaneseq
        %v2591 = vshrl.u32 %v2590, 7
        %v2592 = vsub.s32 %v2589, %v2591
        %v2593 = vrot.slane %v2585, %v2592
        %v2595 = vunpack.c.l.s4 1966171168
        %v2596 = vunpack.c.0.s8 %v2595
        %v2597 = vlaneseq
        %v2598 = vshrl.u32 %v2597, 7
        %v2599 = vsub.s32 %v2596, %v2598
        %v2600 = vrot.slane %v2586, %v2599
        %v2601 = vcombine.high %v2593, %v2593
        %v2602 = vcombine.high %v2600, %v2600
        %v2603 = vlaneseq
        %v2604 = vshrl.u32 %v2603, 7
        %v2605 = vsub.s32 0, %v2604
        %v2606 = vrot.slane %v2593, %v2605
        %v2607 = vlaneseq
        %v2608 = vshrl.u32 %v2607, 7
        %v2609 = vsub.s32 0, %v2608
        %v2610 = vrot.slane %v2600, %v2609
        %v2611 = vlaneseq
        %v2612 = vshrl.u32 %v2611, 7
        %v2613 = vsub.s32 0, %v2612
        %v2614 = vrot.slane %v2601, %v2613
        %v2615 = vlaneseq
        %v2616 = vshrl.u32 %v2615, 7
        %v2617 = vsub.s32 0, %v2616
        %v2618 = vrot.slane %v2602, %v2617
        %2619 = vrot.lane.b32.xlu0 %v2606, 32
        %v2620 = vpop.permute.xlu0 %2619
        %2621 = vrot.lane.b32.xlu0 %v2610, 32
        %v2622 = vpop.permute.xlu0 %2621
        %2623 = vrot.lane.b32.xlu0 %v2614, 32
        %v2624 = vpop.permute.xlu0 %2623
        %2625 = vrot.lane.b32.xlu0 %v2618, 32
        %v2626 = vpop.permute.xlu0 %2625
        %2631 = vst.msk [vmem:[%s2571 + $0x1] sm:$0x1] %vm1371, %v2620
        %2632 = vst.msk [vmem:[%s2571 + $0x21] sm:$0x1] %vm1371, %v2622
        %2633 = vst.msk [vmem:[%s2571 + $0x41] sm:$0x1] %vm1371, %v2624
        %2634 = vst.msk [vmem:[%s2571 + $0x61] sm:$0x1] %vm1371, %v2626
        %v2635 = vadd.f32 %v1335, %v1339
        %v2638 = vunpack.c.l.s4 1966171168
        %v2639 = vunpack.c.0.s8 %v2638
        %v2640 = vlaneseq
        %v2641 = vshrl.u32 %v2640, 7
        %v2642 = vsub.s32 %v2639, %v2641
        %v2643 = vrot.slane %v2635, %v2642
        %v2644 = vcombine.high %v2643, %v2643
        %v2646 = vunpack.c.l.s4 1966171168
        %v2647 = vunpack.c.0.s8 %v2646
        %v2648 = vlaneseq
        %v2649 = vshrl.u32 %v2648, 7
        %v2650 = vsub.s32 %v2647, %v2649
        %v2651 = vrot.slane %v2643, %v2650
        %v2653 = vunpack.c.l.s4 1966171168
        %v2654 = vunpack.c.0.s8 %v2653
        %v2655 = vlaneseq
        %v2656 = vshrl.u32 %v2655, 7
        %v2657 = vsub.s32 %v2654, %v2656
        %v2658 = vrot.slane %v2644, %v2657
        %v2659 = vcombine.high %v2651, %v2651
        %v2660 = vcombine.high %v2658, %v2658
        %s2665 = scalar_lea.vmem %s187, 24 [#allocation3]
        %2666 = vst.msk [vmem:[%s2665] sm:$0x1] %vm1371, %v2651
        %2667 = vst.msk [vmem:[%s2665 + $0x20] sm:$0x1] %vm1371, %v2658
        %2668 = vst.msk [vmem:[%s2665 + $0x40] sm:$0x1] %vm1371, %v2659
        %2669 = vst.msk [vmem:[%s2665 + $0x60] sm:$0x1] %vm1371, %v2660
        %v2670 = vadd.f32 %v1335, %v1377
        %v2672 = vcombine.high %v2670, %v2670
        %v2674 = vunpack.c.l.s4 1966171168
        %v2675 = vunpack.c.0.s8 %v2674
        %v2676 = vlaneseq
        %v2677 = vshrl.u32 %v2676, 7
        %v2678 = vsub.s32 %v2675, %v2677
        %v2679 = vrot.slane %v2672, %v2678
        %v2680 = vcombine.high %v2679, %v2679
        %v2682 = vunpack.c.l.s4 1966171168
        %v2683 = vunpack.c.0.s8 %v2682
        %v2684 = vlaneseq
        %v2685 = vshrl.u32 %v2684, 7
        %v2686 = vsub.s32 %v2683, %v2685
        %v2687 = vrot.slane %v2679, %v2686
        %v2689 = vunpack.c.l.s4 1966171168
        %v2690 = vunpack.c.0.s8 %v2689
        %v2691 = vlaneseq
        %v2692 = vshrl.u32 %v2691, 7
        %v2693 = vsub.s32 %v2690, %v2692
        %v2694 = vrot.slane %v2680, %v2693
        %v2695 = vcombine.high %v2687, %v2687
        %v2696 = vcombine.high %v2694, %v2694
        %2701 = vst.msk [vmem:[%s2665 + $0x1] sm:$0x1] %vm1371, %v2687
        %2702 = vst.msk [vmem:[%s2665 + $0x21] sm:$0x1] %vm1371, %v2694
        %2703 = vst.msk [vmem:[%s2665 + $0x41] sm:$0x1] %vm1371, %v2695
        %2704 = vst.msk [vmem:[%s2665 + $0x61] sm:$0x1] %vm1371, %v2696
        %v2705 = vadd.f32 %v1335, %v1416
        %v2708 = vunpack.c.l.s4 1966171168
        %v2709 = vunpack.c.0.s8 %v2708
        %v2710 = vlaneseq
        %v2711 = vshrl.u32 %v2710, 7
        %v2712 = vsub.s32 %v2709, %v2711
        %v2713 = vrot.slane %v2705, %v2712
        %v2714 = vcombine.high %v2713, %v2713
        %v2716 = vunpack.c.l.s4 1966171168
        %v2717 = vunpack.c.0.s8 %v2716
        %v2718 = vlaneseq
        %v2719 = vshrl.u32 %v2718, 7
        %v2720 = vsub.s32 %v2717, %v2719
        %v2721 = vrot.slane %v2713, %v2720
        %v2723 = vunpack.c.l.s4 1966171168
        %v2724 = vunpack.c.0.s8 %v2723
        %v2725 = vlaneseq
        %v2726 = vshrl.u32 %v2725, 7
        %v2727 = vsub.s32 %v2724, %v2726
        %v2728 = vrot.slane %v2714, %v2727
        %v2729 = vcombine.high %v2721, %v2721
        %v2730 = vcombine.high %v2728, %v2728
        %v2731 = vlaneseq
        %v2732 = vshrl.u32 %v2731, 7
        %v2733 = vsub.s32 0, %v2732
        %v2734 = vrot.slane %v2721, %v2733
        %v2735 = vlaneseq
        %v2736 = vshrl.u32 %v2735, 7
        %v2737 = vsub.s32 0, %v2736
        %v2738 = vrot.slane %v2728, %v2737
        %v2739 = vlaneseq
        %v2740 = vshrl.u32 %v2739, 7
        %v2741 = vsub.s32 0, %v2740
        %v2742 = vrot.slane %v2729, %v2741
        %v2743 = vlaneseq
        %v2744 = vshrl.u32 %v2743, 7
        %v2745 = vsub.s32 0, %v2744
        %v2746 = vrot.slane %v2730, %v2745
        %2747 = vrot.lane.b32.xlu0 %v2734, 96
        %v2748 = vpop.permute.xlu0 %2747
        %2749 = vrot.lane.b32.xlu0 %v2738, 96
        %v2750 = vpop.permute.xlu0 %2749
        %2751 = vrot.lane.b32.xlu0 %v2742, 96
        %v2752 = vpop.permute.xlu0 %2751
        %2753 = vrot.lane.b32.xlu0 %v2746, 96
        %v2754 = vpop.permute.xlu0 %2753
        %s2759 = scalar_lea.vmem %s187, 26 [#allocation3]
        %2760 = vst.msk [vmem:[%s2759] sm:$0x1] %vm1371, %v2748
        %2761 = vst.msk [vmem:[%s2759 + $0x20] sm:$0x1] %vm1371, %v2750
        %2762 = vst.msk [vmem:[%s2759 + $0x40] sm:$0x1] %vm1371, %v2752
        %2763 = vst.msk [vmem:[%s2759 + $0x60] sm:$0x1] %vm1371, %v2754
        %v2764 = vadd.f32 %v1335, %v1478
        %v2766 = vcombine.high %v2764, %v2764
        %v2768 = vunpack.c.l.s4 1966171168
        %v2769 = vunpack.c.0.s8 %v2768
        %v2770 = vlaneseq
        %v2771 = vshrl.u32 %v2770, 7
        %v2772 = vsub.s32 %v2769, %v2771
        %v2773 = vrot.slane %v2766, %v2772
        %v2774 = vcombine.high %v2773, %v2773
        %v2776 = vunpack.c.l.s4 1966171168
        %v2777 = vunpack.c.0.s8 %v2776
        %v2778 = vlaneseq
        %v2779 = vshrl.u32 %v2778, 7
        %v2780 = vsub.s32 %v2777, %v2779
        %v2781 = vrot.slane %v2773, %v2780
        %v2783 = vunpack.c.l.s4 1966171168
        %v2784 = vunpack.c.0.s8 %v2783
        %v2785 = vlaneseq
        %v2786 = vshrl.u32 %v2785, 7
        %v2787 = vsub.s32 %v2784, %v2786
        %v2788 = vrot.slane %v2774, %v2787
        %v2789 = vcombine.high %v2781, %v2781
        %v2790 = vcombine.high %v2788, %v2788
        %v2791 = vlaneseq
        %v2792 = vshrl.u32 %v2791, 7
        %v2793 = vsub.s32 0, %v2792
        %v2794 = vrot.slane %v2781, %v2793
        %v2795 = vlaneseq
        %v2796 = vshrl.u32 %v2795, 7
        %v2797 = vsub.s32 0, %v2796
        %v2798 = vrot.slane %v2788, %v2797
        %v2799 = vlaneseq
        %v2800 = vshrl.u32 %v2799, 7
        %v2801 = vsub.s32 0, %v2800
        %v2802 = vrot.slane %v2789, %v2801
        %v2803 = vlaneseq
        %v2804 = vshrl.u32 %v2803, 7
        %v2805 = vsub.s32 0, %v2804
        %v2806 = vrot.slane %v2790, %v2805
        %2807 = vrot.lane.b32.xlu0 %v2794, 96
        %v2808 = vpop.permute.xlu0 %2807
        %2809 = vrot.lane.b32.xlu0 %v2798, 96
        %v2810 = vpop.permute.xlu0 %2809
        %2811 = vrot.lane.b32.xlu0 %v2802, 96
        %v2812 = vpop.permute.xlu0 %2811
        %2813 = vrot.lane.b32.xlu0 %v2806, 96
        %v2814 = vpop.permute.xlu0 %2813
        %2819 = vst.msk [vmem:[%s2759 + $0x1] sm:$0x1] %vm1371, %v2808
        %2820 = vst.msk [vmem:[%s2759 + $0x21] sm:$0x1] %vm1371, %v2810
        %2821 = vst.msk [vmem:[%s2759 + $0x41] sm:$0x1] %vm1371, %v2812
        %2822 = vst.msk [vmem:[%s2759 + $0x61] sm:$0x1] %vm1371, %v2814
        %v2823 = vadd.f32 %v1335, %v1540
        %v2826 = vunpack.c.l.s4 1966171168
        %v2827 = vunpack.c.0.s8 %v2826
        %v2828 = vlaneseq
        %v2829 = vshrl.u32 %v2828, 7
        %v2830 = vsub.s32 %v2827, %v2829
        %v2831 = vrot.slane %v2823, %v2830
        %v2832 = vcombine.high %v2831, %v2831
        %v2834 = vunpack.c.l.s4 1966171168
        %v2835 = vunpack.c.0.s8 %v2834
        %v2836 = vlaneseq
        %v2837 = vshrl.u32 %v2836, 7
        %v2838 = vsub.s32 %v2835, %v2837
        %v2839 = vrot.slane %v2831, %v2838
        %v2841 = vunpack.c.l.s4 1966171168
        %v2842 = vunpack.c.0.s8 %v2841
        %v2843 = vlaneseq
        %v2844 = vshrl.u32 %v2843, 7
        %v2845 = vsub.s32 %v2842, %v2844
        %v2846 = vrot.slane %v2832, %v2845
        %v2847 = vcombine.high %v2839, %v2839
        %v2848 = vcombine.high %v2846, %v2846
        %v2849 = vlaneseq
        %v2850 = vshrl.u32 %v2849, 7
        %v2851 = vsub.s32 0, %v2850
        %v2852 = vrot.slane %v2839, %v2851
        %v2853 = vlaneseq
        %v2854 = vshrl.u32 %v2853, 7
        %v2855 = vsub.s32 0, %v2854
        %v2856 = vrot.slane %v2846, %v2855
        %v2857 = vlaneseq
        %v2858 = vshrl.u32 %v2857, 7
        %v2859 = vsub.s32 0, %v2858
        %v2860 = vrot.slane %v2847, %v2859
        %v2861 = vlaneseq
        %v2862 = vshrl.u32 %v2861, 7
        %v2863 = vsub.s32 0, %v2862
        %v2864 = vrot.slane %v2848, %v2863
        %2865 = vrot.lane.b32.xlu0 %v2852, 64
        %v2866 = vpop.permute.xlu0 %2865
        %2867 = vrot.lane.b32.xlu0 %v2856, 64
        %v2868 = vpop.permute.xlu0 %2867
        %2869 = vrot.lane.b32.xlu0 %v2860, 64
        %v2870 = vpop.permute.xlu0 %2869
        %2871 = vrot.lane.b32.xlu0 %v2864, 64
        %v2872 = vpop.permute.xlu0 %2871
        %s2877 = scalar_lea.vmem %s187, 28 [#allocation3]
        %2878 = vst.msk [vmem:[%s2877] sm:$0x1] %vm1371, %v2866
        %2879 = vst.msk [vmem:[%s2877 + $0x20] sm:$0x1] %vm1371, %v2868
        %2880 = vst.msk [vmem:[%s2877 + $0x40] sm:$0x1] %vm1371, %v2870
        %2881 = vst.msk [vmem:[%s2877 + $0x60] sm:$0x1] %vm1371, %v2872
        %v2882 = vadd.f32 %v1335, %v1602
        %v2884 = vcombine.high %v2882, %v2882
        %v2886 = vunpack.c.l.s4 1966171168
        %v2887 = vunpack.c.0.s8 %v2886
        %v2888 = vlaneseq
        %v2889 = vshrl.u32 %v2888, 7
        %v2890 = vsub.s32 %v2887, %v2889
        %v2891 = vrot.slane %v2884, %v2890
        %v2892 = vcombine.high %v2891, %v2891
        %v2894 = vunpack.c.l.s4 1966171168
        %v2895 = vunpack.c.0.s8 %v2894
        %v2896 = vlaneseq
        %v2897 = vshrl.u32 %v2896, 7
        %v2898 = vsub.s32 %v2895, %v2897
        %v2899 = vrot.slane %v2891, %v2898
        %v2901 = vunpack.c.l.s4 1966171168
        %v2902 = vunpack.c.0.s8 %v2901
        %v2903 = vlaneseq
        %v2904 = vshrl.u32 %v2903, 7
        %v2905 = vsub.s32 %v2902, %v2904
        %v2906 = vrot.slane %v2892, %v2905
        %v2907 = vcombine.high %v2899, %v2899
        %v2908 = vcombine.high %v2906, %v2906
        %v2909 = vlaneseq
        %v2910 = vshrl.u32 %v2909, 7
        %v2911 = vsub.s32 0, %v2910
        %v2912 = vrot.slane %v2899, %v2911
        %v2913 = vlaneseq
        %v2914 = vshrl.u32 %v2913, 7
        %v2915 = vsub.s32 0, %v2914
        %v2916 = vrot.slane %v2906, %v2915
        %v2917 = vlaneseq
        %v2918 = vshrl.u32 %v2917, 7
        %v2919 = vsub.s32 0, %v2918
        %v2920 = vrot.slane %v2907, %v2919
        %v2921 = vlaneseq
        %v2922 = vshrl.u32 %v2921, 7
        %v2923 = vsub.s32 0, %v2922
        %v2924 = vrot.slane %v2908, %v2923
        %2925 = vrot.lane.b32.xlu0 %v2912, 64
        %v2926 = vpop.permute.xlu0 %2925
        %2927 = vrot.lane.b32.xlu0 %v2916, 64
        %v2928 = vpop.permute.xlu0 %2927
        %2929 = vrot.lane.b32.xlu0 %v2920, 64
        %v2930 = vpop.permute.xlu0 %2929
        %2931 = vrot.lane.b32.xlu0 %v2924, 64
        %v2932 = vpop.permute.xlu0 %2931
        %2937 = vst.msk [vmem:[%s2877 + $0x1] sm:$0x1] %vm1371, %v2926
        %2938 = vst.msk [vmem:[%s2877 + $0x21] sm:$0x1] %vm1371, %v2928
        %2939 = vst.msk [vmem:[%s2877 + $0x41] sm:$0x1] %vm1371, %v2930
        %2940 = vst.msk [vmem:[%s2877 + $0x61] sm:$0x1] %vm1371, %v2932
        %v2941 = vadd.f32 %v1335, %v1664
        %v2944 = vunpack.c.l.s4 1966171168
        %v2945 = vunpack.c.0.s8 %v2944
        %v2946 = vlaneseq
        %v2947 = vshrl.u32 %v2946, 7
        %v2948 = vsub.s32 %v2945, %v2947
        %v2949 = vrot.slane %v2941, %v2948
        %v2950 = vcombine.high %v2949, %v2949
        %v2952 = vunpack.c.l.s4 1966171168
        %v2953 = vunpack.c.0.s8 %v2952
        %v2954 = vlaneseq
        %v2955 = vshrl.u32 %v2954, 7
        %v2956 = vsub.s32 %v2953, %v2955
        %v2957 = vrot.slane %v2949, %v2956
        %v2959 = vunpack.c.l.s4 1966171168
        %v2960 = vunpack.c.0.s8 %v2959
        %v2961 = vlaneseq
        %v2962 = vshrl.u32 %v2961, 7
        %v2963 = vsub.s32 %v2960, %v2962
        %v2964 = vrot.slane %v2950, %v2963
        %v2965 = vcombine.high %v2957, %v2957
        %v2966 = vcombine.high %v2964, %v2964
        %v2967 = vlaneseq
        %v2968 = vshrl.u32 %v2967, 7
        %v2969 = vsub.s32 0, %v2968
        %v2970 = vrot.slane %v2957, %v2969
        %v2971 = vlaneseq
        %v2972 = vshrl.u32 %v2971, 7
        %v2973 = vsub.s32 0, %v2972
        %v2974 = vrot.slane %v2964, %v2973
        %v2975 = vlaneseq
        %v2976 = vshrl.u32 %v2975, 7
        %v2977 = vsub.s32 0, %v2976
        %v2978 = vrot.slane %v2965, %v2977
        %v2979 = vlaneseq
        %v2980 = vshrl.u32 %v2979, 7
        %v2981 = vsub.s32 0, %v2980
        %v2982 = vrot.slane %v2966, %v2981
        %2983 = vrot.lane.b32.xlu0 %v2970, 32
        %v2984 = vpop.permute.xlu0 %2983
        %2985 = vrot.lane.b32.xlu0 %v2974, 32
        %v2986 = vpop.permute.xlu0 %2985
        %2987 = vrot.lane.b32.xlu0 %v2978, 32
        %v2988 = vpop.permute.xlu0 %2987
        %2989 = vrot.lane.b32.xlu0 %v2982, 32
        %v2990 = vpop.permute.xlu0 %2989
        %s2995 = scalar_lea.vmem %s187, 30 [#allocation3]
        %2996 = vst.msk [vmem:[%s2995] sm:$0x1] %vm1371, %v2984
        %2997 = vst.msk [vmem:[%s2995 + $0x20] sm:$0x1] %vm1371, %v2986
        %2998 = vst.msk [vmem:[%s2995 + $0x40] sm:$0x1] %vm1371, %v2988
        %2999 = vst.msk [vmem:[%s2995 + $0x60] sm:$0x1] %vm1371, %v2990
        %v3000 = vadd.f32 %v1335, %v1726
        %v3002 = vcombine.high %v3000, %v3000
        %v3004 = vunpack.c.l.s4 1966171168
        %v3005 = vunpack.c.0.s8 %v3004
        %v3006 = vlaneseq
        %v3007 = vshrl.u32 %v3006, 7
        %v3008 = vsub.s32 %v3005, %v3007
        %v3009 = vrot.slane %v3002, %v3008
        %v3010 = vcombine.high %v3009, %v3009
        %v3012 = vunpack.c.l.s4 1966171168
        %v3013 = vunpack.c.0.s8 %v3012
        %v3014 = vlaneseq
        %v3015 = vshrl.u32 %v3014, 7
        %v3016 = vsub.s32 %v3013, %v3015
        %v3017 = vrot.slane %v3009, %v3016
        %v3019 = vunpack.c.l.s4 1966171168
        %v3020 = vunpack.c.0.s8 %v3019
        %v3021 = vlaneseq
        %v3022 = vshrl.u32 %v3021, 7
        %v3023 = vsub.s32 %v3020, %v3022
        %v3024 = vrot.slane %v3010, %v3023
        %v3025 = vcombine.high %v3017, %v3017
        %v3026 = vcombine.high %v3024, %v3024
        %v3027 = vlaneseq
        %v3028 = vshrl.u32 %v3027, 7
        %v3029 = vsub.s32 0, %v3028
        %v3030 = vrot.slane %v3017, %v3029
        %v3031 = vlaneseq
        %v3032 = vshrl.u32 %v3031, 7
        %v3033 = vsub.s32 0, %v3032
        %v3034 = vrot.slane %v3024, %v3033
        %v3035 = vlaneseq
        %v3036 = vshrl.u32 %v3035, 7
        %v3037 = vsub.s32 0, %v3036
        %v3038 = vrot.slane %v3025, %v3037
        %v3039 = vlaneseq
        %v3040 = vshrl.u32 %v3039, 7
        %v3041 = vsub.s32 0, %v3040
        %v3042 = vrot.slane %v3026, %v3041
        %3043 = vrot.lane.b32.xlu0 %v3030, 32
        %v3044 = vpop.permute.xlu0 %3043
        %3045 = vrot.lane.b32.xlu0 %v3034, 32
        %v3046 = vpop.permute.xlu0 %3045
        %3047 = vrot.lane.b32.xlu0 %v3038, 32
        %v3048 = vpop.permute.xlu0 %3047
        %3049 = vrot.lane.b32.xlu0 %v3042, 32
        %v3050 = vpop.permute.xlu0 %3049
        %3055 = vst.msk [vmem:[%s2995 + $0x1] sm:$0x1] %vm1371, %v3044
        %3056 = vst.msk [vmem:[%s2995 + $0x21] sm:$0x1] %vm1371, %v3046
        %3057 = vst.msk [vmem:[%s2995 + $0x41] sm:$0x1] %vm1371, %v3048
        %3058 = vst.msk [vmem:[%s2995 + $0x61] sm:$0x1] %vm1371, %v3050
        %s3059 = sand.u32 %s109, 1
        %s3060 = scalar_lea.sflag [#allocation4], %s3059
        %s3061 = sand.u32 %s109, 1
        %s3062 = smul.addr %s3061, 128
        %s3063 = scalar_lea.vmem [#allocation3], %s3062
        // Predicated region
        $region33: #{upconv_forward.1} parent=31 // pred_check
          %p3064 = pneg %p119
        $region34: #{upconv_forward.1} parent=31 // pred_check_branch
          %3066 = sbr.rel (%p3064) target = $region36
        $region35: #{upconv_forward.1} parent=31 // pred_region
          %s3067 = smul.u32 16, %s22
          %s3069 = ssub.s32 2048, 2048
          %3070 = vsyncadd %s3060, %s3069
          %s3071 = smul.addr %s21, 64
          %s3072 = sadd.s32 %s3067, %s3071
          %s3073 = smul.addr %s3072, 32
          %s3074 = scalar_lea.hbm %s3, %s3073
          %s3075 = sshll.u32 %s3063, 4
          %s3076 = int_to_ptr.vmem [resolvable:$true] %s3075
          %3081 = dma.vmem_to_hbm [thread:$0]  %s3076, 2048, %s3074, %s3060, 32, 32, 2
        $region36: #{upconv_forward.1} parent=31 // pred_fallthru
          _
      $region32: #{upconv_forward.1} parent=5 // pred_fallthru
        _
      %p3082 = scmp.le.s32.totalorder 2, %s12
      // Predicated region
      $region37: #{upconv_forward.1} parent=5 // pred_check
        %p3083 = pneg %p3082
      $region38: #{upconv_forward.1} parent=5 // pred_check_branch
        %3085 = sbr.rel (%p3083) target = $region40
      $region39: #{upconv_forward.1} parent=5 // pred_region
        %s3086 = ssub.s32 %s12, 2
        // Predicated region
        $region41: #{upconv_forward.1} parent=39 // pred_check
          %p3087 = pneg %p125
        $region42: #{upconv_forward.1} parent=39 // pred_check_branch
          %3089 = sbr.rel (%p3087) target = $region44
        $region43: #{upconv_forward.1} parent=39 // pred_region
          %s3090 = sand.u32 %s110, 1
          %s3091 = scalar_lea.sflag [#allocation4], %s3090
          %s3092 = sand.u32 %s110, 1
          %s3093 = smul.addr %s3092, 128
          %s3094 = scalar_lea.vmem [#allocation3], %s3093
          %3095 = dma.done %s3091, 2048
        $region44: #{upconv_forward.1} parent=39 // pred_fallthru
          _
      $region40: #{upconv_forward.1} parent=5 // pred_fallthru
        _
    $region6: #{upconv_forward.1} parent=1 // loop_footer
      %s16 = sadd.s32 1, %s12
    $region7: #{upconv_forward.1} parent=1 // loop_footer_branch
      %11 = sbr.rel target = $region3
    $region8: #{upconv_forward.1} parent=1 // loop_exit
      _
    %3096 = vsyncpa [#allocation4], 1
    %s3097 = scalar_lea.sflag [#allocation4], 1
    %3098 = vsyncpa %s3097, 1

</llo_original>
